<compile_context>
chip_gen: v7x
topology: tpu7x:2x2x1
jax: 0.10.0
libtpu: 0.0.40
codegen_flags: <defaults>
</compile_context>

<pallas_src>
import math

import numpy as np
import jax
import jax.numpy as jnp
from jax.experimental import pallas as pl
from jax.experimental.pallas import tpu as pltpu


def _cdiv(a, b):
    return -(-a // b)


def _round_up(a, b):
    return _cdiv(a, b) * b


def _omega_table(axes_dim, theta):
    """(n_axes, d_half) f32 table: row a holds axis a's omega in its own column
    range, zero elsewhere.  Computed with the exact same f32 ops as the reference
    so the kernel's angles are bit-identical to it."""
    d_half = sum(d // 2 for d in axes_dim)
    rows = []
    col = 0
    for d in axes_dim:
        h = d // 2
        scale = jnp.arange(0, d, 2, dtype=jnp.float32) / d
        om = 1.0 / (float(theta) ** scale)                     # same expr as reference
        rows.append(jnp.zeros((d_half,), jnp.float32).at[col:col + h].set(om))
        col += h
    return jnp.stack(rows, axis=0), d_half


def _choose_tiling(total, tile_max):
    """Tile = multiple of 128, <= tile_max; grid steps even and >= 2 (v7x megacore)."""
    tile_max = max(128, (tile_max // 128) * 128)
    total_r = _round_up(max(total, 1), 128)
    steps = max(2, _cdiv(total_r, tile_max))
    if steps % 2:
        steps += 1
    tile = _round_up(_cdiv(total_r, steps), 128)
    return tile, steps, steps * tile


def _embed_nd_kernel(ids_ref, omega_ref, cos_ref, sin_ref):
    # ids_ref:   (8, tile) f32, axis-major (rows >= n_axes are zero padding).
    # omega_ref: (n_axes, d_half) f32, per-axis zero-padded omega rows.
    n_axes = omega_ref.shape[0]
    # One small lane->sublane transpose per step; XLU slot is otherwise idle.
    idc = jnp.transpose(ids_ref[...], (1, 0))                  # (tile, 8)
    # Exact f32 VPU broadcast multiplies; padded omega entries contribute exact 0,
    # so every column equals the reference's single f32 product bit-for-bit.
    freqs = idc[:, 0:1] * omega_ref[0:1, :]                    # (tile, d_half)
    for a in range(1, n_axes):
        freqs = freqs + idc[:, a:a + 1] * omega_ref[a:a + 1, :]
    cos_ref[...] = jnp.cos(freqs).astype(cos_ref.dtype)
    sin_ref[...] = jnp.sin(freqs).astype(sin_ref.dtype)


def embed_nd(ids, axes_dim, theta, *, tile_max=4096, out_dtype=jnp.float32):
    """Pallas implementation of EmbedND.forward.  Returns (cos, sin).

    ids: (..., n_axes) integer (or float) positions.
    Output: cos, sin of shape (..., sum(axes_dim)//2), dtype `out_dtype`.
    """
    *lead, n_axes = ids.shape
    assert n_axes == len(axes_dim)
    assert all(d % 2 == 0 for d in axes_dim)
    total = math.prod(lead) if lead else 1

    omega, d_half = _omega_table(axes_dim, theta)
    tile, steps, total_pad = _choose_tiling(total, tile_max)

    # Axis-major, 8-sublane-padded ids for a contiguous, lane-dense input DMA.
    # The array is tiny (8 * total_pad * 4 bytes); this transpose is negligible.
    ids_flat = ids.reshape(total, n_axes)
    ids_t = jnp.zeros((8, total_pad), jnp.float32)
    ids_t = ids_t.at[:n_axes, :total].set(ids_flat.T.astype(jnp.float32))

    cos_pad, sin_pad = pl.pallas_call(
        _embed_nd_kernel,
        out_shape=(
            jax.ShapeDtypeStruct((total_pad, d_half), out_dtype),
            jax.ShapeDtypeStruct((total_pad, d_half), out_dtype),
        ),
        grid=(steps,),
        in_specs=[
            pl.BlockSpec((8, tile), lambda i: (0, i)),          # ids (axis-major)
            pl.BlockSpec((n_axes, d_half), lambda i: (0, 0)),   # omega table (tiny)
        ],
        out_specs=(
            pl.BlockSpec((tile, d_half), lambda i: (i, 0)),     # cos
            pl.BlockSpec((tile, d_half), lambda i: (i, 0)),     # sin
        ),
        compiler_params=pltpu.CompilerParams(
            dimension_semantics=("parallel",)),
    )(ids_t, omega)

    cos = cos_pad[:total].reshape(*lead, d_half)
    sin = sin_pad[:total].reshape(*lead, d_half)
    return cos, sin


def embed_nd_reference(ids, axes_dim, theta):
    """Pure-JAX reference mirroring the PyTorch module (f32 math)."""
    cos_parts, sin_parts = [], []
    for i, d in enumerate(axes_dim):
        scale = jnp.arange(0, d, 2, dtype=jnp.float32) / d
        omega = 1.0 / (float(theta) ** scale)
        freqs = ids[..., i].astype(jnp.float32)[..., None] * omega
        cos_parts.append(jnp.cos(freqs))
        sin_parts.append(jnp.sin(freqs))
    return (jnp.concatenate(cos_parts, axis=-1),
            jnp.concatenate(sin_parts, axis=-1))


if __name__ == "__main__":
    axes_dim = [8, 12, 12]          # dim = 32 config; d_half = 16
    theta = 10000
    n_axes = len(axes_dim)
    k1, k2, k3 = jax.random.split(jax.random.PRNGKey(0), 3)

    # Test 1: small EmbedND-shaped ids, small positions -> tight parity.
    ids1 = jax.random.randint(k1, (2, 8, n_axes), 0, 64, dtype=jnp.int32)
    cos1, sin1 = embed_nd(ids1, axes_dim, theta)
    cos1, sin1 = jax.block_until_ready(cos1), jax.block_until_ready(sin1)
    cr1, sr1 = embed_nd_reference(ids1, axes_dim, theta)
    np.testing.assert_allclose(np.asarray(cos1), np.asarray(cr1), rtol=1e-5, atol=1e-5)
    np.testing.assert_allclose(np.asarray(sin1), np.asarray(sr1), rtol=1e-5, atol=1e-5)

    # Test 2: ragged length + larger positions (exercises padding + slice path).
    # Angles are bit-identical to the reference; the looser tolerance only covers
    # possible ulp-level differences in the trig implementations at larger angles.
    ids2 = jax.random.randint(k2, (1, 13, n_axes), 0, 2048, dtype=jnp.int32)
    cos2, sin2 = embed_nd(ids2, axes_dim, theta)
    cos2, sin2 = jax.block_until_ready(cos2), jax.block_until_ready(sin2)
    cr2, sr2 = embed_nd_reference(ids2, axes_dim, theta)
    np.testing.assert_allclose(np.asarray(cos2), np.asarray(cr2), rtol=1e-4, atol=1e-4)
    np.testing.assert_allclose(np.asarray(sin2), np.asarray(sr2), rtol=1e-4, atol=1e-4)

    # Test 3: multi-step (even >= 2) grid with a smaller tile cap.
    ids3 = jax.random.randint(k3, (2, 3000, n_axes), 0, 1024, dtype=jnp.int32)
    cos3, sin3 = embed_nd(ids3, axes_dim, theta, tile_max=1024)
    cos3, sin3 = jax.block_until_ready(cos3), jax.block_until_ready(sin3)
    cr3, sr3 = embed_nd_reference(ids3, axes_dim, theta)
    np.testing.assert_allclose(np.asarray(cos3), np.asarray(cr3), rtol=1e-4, atol=1e-4)
    np.testing.assert_allclose(np.asarray(sin3), np.asarray(sr3), rtol=1e-4, atol=1e-4)

    print("KERNEL_OK")
</pallas_src>

<mosaic_0001>
module attributes {stable_mosaic.version = 11 : i64} {
  func.func @_embed_nd_kernel(%arg0: i32, %arg1: memref<8x128xf32, #tpu.memory_space<vmem>>, %arg2: memref<3x16xf32, #tpu.memory_space<vmem>>, %arg3: memref<128x16xf32, #tpu.memory_space<vmem>>, %arg4: memref<128x16xf32, #tpu.memory_space<vmem>>) attributes {dimension_semantics = [#tpu.dimension_semantics<parallel>], iteration_bounds = array<i64: 2>, scalar_prefetch = 0 : i64, scratch_operands = 0 : i64, tpu.core_type = #tpu.core_type<tc>, window_params = [{transform_indices = @transform_0, window_bounds = array<i64: 8, 128>}, {pipeline_mode = #tpu.pipeline_mode<synchronous>, transform_indices = @transform_1, window_bounds = array<i64: 3, 16>}, {transform_indices = @transform_2, window_bounds = array<i64: 128, 16>}, {transform_indices = @transform_3, window_bounds = array<i64: 128, 16>}]} {
    %c0 = arith.constant 0 : index
    %c0_0 = arith.constant 0 : index
    %0 = vector.load %arg1[%c0, %c0_0] : memref<8x128xf32, #tpu.memory_space<vmem>>, vector<8x128xf32>
    %1 = tpu.transpose %0, [1, 0] : vector<8x128xf32> -> vector<128x8xf32>
    %2 = vector.extract_strided_slice %1 {offsets = [0, 0], sizes = [128, 1], strides = [1, 1]} : vector<128x8xf32> to vector<128x1xf32>
    %c0_1 = arith.constant 0 : index
    %c0_2 = arith.constant 0 : index
    %3 = vector.load %arg2[%c0_1, %c0_2] : memref<3x16xf32, #tpu.memory_space<vmem>>, vector<1x16xf32>
    %4 = vector.broadcast %2 : vector<128x1xf32> to vector<128x16xf32>
    %5 = vector.broadcast %3 : vector<1x16xf32> to vector<128x16xf32>
    %6 = arith.mulf %4, %5 : vector<128x16xf32>
    %7 = vector.extract_strided_slice %1 {offsets = [0, 1], sizes = [128, 1], strides = [1, 1]} : vector<128x8xf32> to vector<128x1xf32>
    %c1 = arith.constant 1 : index
    %c0_3 = arith.constant 0 : index
    %8 = vector.load %arg2[%c1, %c0_3] : memref<3x16xf32, #tpu.memory_space<vmem>>, vector<1x16xf32>
    %9 = vector.broadcast %7 : vector<128x1xf32> to vector<128x16xf32>
    %10 = vector.broadcast %8 : vector<1x16xf32> to vector<128x16xf32>
    %11 = arith.mulf %9, %10 : vector<128x16xf32>
    %12 = arith.addf %6, %11 : vector<128x16xf32>
    %13 = vector.extract_strided_slice %1 {offsets = [0, 2], sizes = [128, 1], strides = [1, 1]} : vector<128x8xf32> to vector<128x1xf32>
    %c2 = arith.constant 2 : index
    %c0_4 = arith.constant 0 : index
    %14 = vector.load %arg2[%c2, %c0_4] : memref<3x16xf32, #tpu.memory_space<vmem>>, vector<1x16xf32>
    %15 = vector.broadcast %13 : vector<128x1xf32> to vector<128x16xf32>
    %16 = vector.broadcast %14 : vector<1x16xf32> to vector<128x16xf32>
    %17 = arith.mulf %15, %16 : vector<128x16xf32>
    %18 = arith.addf %12, %17 : vector<128x16xf32>
    %19 = math.cos %18 : vector<128x16xf32>
    %c0_5 = arith.constant 0 : index
    %c0_6 = arith.constant 0 : index
    %20 = vector.load %arg3[%c0_5, %c0_6] : memref<128x16xf32, #tpu.memory_space<vmem>>, vector<128x16xf32>
    tpu.vector_store %arg3[%c0_5, %c0_6], %19 {strides = array<i32>} : memref<128x16xf32, #tpu.memory_space<vmem>>, vector<128x16xf32>,
    %21 = math.sin %18 : vector<128x16xf32>
    %c0_7 = arith.constant 0 : index
    %c0_8 = arith.constant 0 : index
    %22 = vector.load %arg4[%c0_7, %c0_8] : memref<128x16xf32, #tpu.memory_space<vmem>>, vector<128x16xf32>
    tpu.vector_store %arg4[%c0_7, %c0_8], %21 {strides = array<i32>} : memref<128x16xf32, #tpu.memory_space<vmem>>, vector<128x16xf32>,
    return
  }
  func.func @transform_0(%arg0: i32) -> (i32, i32) {
    %c0_i32 = arith.constant 0 : i32
    %c0_i32_0 = arith.constant 0 : i32
    return %c0_i32, %arg0 : i32, i32
  }
  func.func @transform_1(%arg0: i32) -> (i32, i32) {
    %c0_i32 = arith.constant 0 : i32
    %c0_i32_0 = arith.constant 0 : i32
    %c0_i32_1 = arith.constant 0 : i32
    return %c0_i32, %c0_i32_0 : i32, i32
  }
  func.func @transform_2(%arg0: i32) -> (i32, i32) {
    %c0_i32 = arith.constant 0 : i32
    %c0_i32_0 = arith.constant 0 : i32
    return %arg0, %c0_i32 : i32, i32
  }
  func.func @transform_3(%arg0: i32) -> (i32, i32) {
    %c0_i32 = arith.constant 0 : i32
    %c0_i32_0 = arith.constant 0 : i32
    return %arg0, %c0_i32 : i32, i32
  }
}

</mosaic_0001>

<llo_original>
// kernel: tpu_custom_call.1
$region0: #{tpu_custom_call.1}
  #allocation0 [shape = 'u32[]', space=smem, size = 0x4, offset = 0x4, fixed_abs, tag = 'smem constant byte address 0x4 - core index']
  #allocation1 [shape = 'u32[144,128]{1,0:T(1,128)}', space=vmem, size = 0x12000, scoped, tag = 'internal scratch']
  %s0 = inlined_call_operand.hbm [shape: f32[8,256], index: 0, kind: input, shape index: {}]
  %s1 = inlined_call_operand.hbm [shape: f32[3,16], index: 1, kind: input, shape index: {}]
  %s2 = inlined_call_operand.vmem [shape: f32[256,16], index: 2, kind: output, shape index: {0}]
  %s3 = inlined_call_operand.vmem [shape: f32[256,16], index: 3, kind: output, shape index: {1}]
  %4 = xla_tuple %s2, %s3
  %s5 = sld [smem:[#allocation0]]
  $region57: #{tpu_custom_call.1} parent=0
    _
  %s7 = ssub.s32 1, %s5
  %s8 = scalar_select 0, %s7, %s5
  $region1: #{tpu_custom_call.1} parent=0
    #allocation2 [shape = 'u8[8192]{0}', space=vmem, size = 0x2000, scoped, tag = 'input window, operand 0']
    #allocation3 [shape = 's32[2]{0}', space=sflag, size = 0x8, scoped, tag = 'scoped memory for tpu_custom_call.1']
    #allocation4 [shape = 'u8[2048]{0}', space=vmem, size = 0x800, scoped, tag = 'input window, operand 1, single buffered']
    #allocation5 [shape = 's32[1]{0}', space=sflag, size = 0x4, scoped, tag = 'scoped memory for tpu_custom_call.1']
    %9 = vsyncpa [#allocation3], 0
    %s10 = scalar_lea.sflag [#allocation3], 1
    %11 = vsyncpa %s10, 0
    %12 = vsyncpa [#allocation5], 0
    loop: start=0, step=1, limit=4
    $region2: #{tpu_custom_call.1} parent=1 // loop_pre_header
      _
    $region3: #{tpu_custom_call.1} parent=1 // loop_header
      %s14 = sphi 0, %s18
      %p15 = scmp.ge.s32.totalorder %s14, 4
      %s24 = sphi 0, %s26
      %s27 = sphi 0, %s24
      %s28 = sphi 0, %s27
      %s44 = sphi 0, %s28
      %s48 = sphi 0, %s48
      %s50 = sphi 0, %s48
      %s51 = sphi 0, %s50
      %s65 = sphi 0, %s51
      %s71 = sphi 0, %s73
      %s74 = sphi 0, %s71
      %s75 = sphi 0, %s74
      %s91 = sphi 0, %s75
      %s97 = sphi 0, %s99
      %s100 = sphi 0, %s97
      %s101 = sphi 0, %s100
      %s117 = sphi 0, %s101
    $region4: #{tpu_custom_call.1} parent=1 // loop_header_branch
      %17 = sbr.rel (%p15) target = $region8
    $region5: #{tpu_custom_call.1} parent=1 // loop_body
      %s19 = ssub.s32 %s14, 1
      %s20 = ssub.s32 %s14, 2
      %s21 = sadd.s32 %s14, 1
      %s22 = ssub.s32 %s14, %s21
      %p23 = scmp.eq.s32.totalorder %s22, 0
      %s25 = sadd.s32 %s24, 1
      %s26 = scalar_select %p23, %s24, %s25
      %p29 = pneg %p23
      %p30 = scmp.eq.s32.totalorder %s14, 1
      %p31 = por %p29, %p30
      %p32 = scmp.ne.s32.totalorder %s24, %s27
      %p33 = scmp.eq.s32.totalorder %s14, 0
      %p34 = por %p32, %p33
      %p35 = scmp.ne.s32.totalorder %s24, %s27
      %p36 = scmp.eq.s32.totalorder %s19, 1
      %p37 = por %p35, %p36
      %p38 = scmp.ne.s32.totalorder %s27, %s28
      %p39 = scmp.eq.s32.totalorder %s19, 0
      %p40 = por %p38, %p39
      %p41 = scmp.ne.s32.totalorder %s27, %s28
      %p42 = scmp.eq.s32.totalorder %s20, 1
      %p43 = por %p41, %p42
      %p45 = scmp.ne.s32.totalorder %s28, %s44
      %p46 = scmp.eq.s32.totalorder %s20, 0
      %p47 = por %p45, %p46
      %s49 = sadd.s32 %s48, 1
      %p52 = scmp.eq.s32.totalorder %s14, 1
      %p53 = scmp.ne.s32.totalorder %s48, %s50
      %p54 = scmp.eq.s32.totalorder %s14, 0
      %p55 = por %p53, %p54
      %p56 = scmp.ne.s32.totalorder %s48, %s50
      %p57 = scmp.eq.s32.totalorder %s19, 1
      %p58 = por %p56, %p57
      %p59 = scmp.ne.s32.totalorder %s50, %s51
      %p60 = scmp.eq.s32.totalorder %s19, 0
      %p61 = por %p59, %p60
      %p62 = scmp.ne.s32.totalorder %s50, %s51
      %p63 = scmp.eq.s32.totalorder %s20, 1
      %p64 = por %p62, %p63
      %p66 = scmp.ne.s32.totalorder %s51, %s65
      %p67 = scmp.eq.s32.totalorder %s20, 0
      %p68 = por %p66, %p67
      %s69 = ssub.s32 %s14, %s21
      %p70 = scmp.eq.s32.totalorder %s69, 0
      %s72 = sadd.s32 %s71, 1
      %s73 = scalar_select %p70, %s71, %s72
      %p76 = pneg %p70
      %p77 = scmp.eq.s32.totalorder %s14, 1
      %p78 = por %p76, %p77
      %p79 = scmp.ne.s32.totalorder %s71, %s74
      %p80 = scmp.eq.s32.totalorder %s14, 0
      %p81 = por %p79, %p80
      %p82 = scmp.ne.s32.totalorder %s71, %s74
      %p83 = scmp.eq.s32.totalorder %s19, 1
      %p84 = por %p82, %p83
      %p85 = scmp.ne.s32.totalorder %s74, %s75
      %p86 = scmp.eq.s32.totalorder %s19, 0
      %p87 = por %p85, %p86
      %p88 = scmp.ne.s32.totalorder %s74, %s75
      %p89 = scmp.eq.s32.totalorder %s20, 1
      %p90 = por %p88, %p89
      %p92 = scmp.ne.s32.totalorder %s75, %s91
      %p93 = scmp.eq.s32.totalorder %s20, 0
      %p94 = por %p92, %p93
      %s95 = ssub.s32 %s14, %s21
      %p96 = scmp.eq.s32.totalorder %s95, 0
      %s98 = sadd.s32 %s97, 1
      %s99 = scalar_select %p96, %s97, %s98
      %p102 = pneg %p96
      %p103 = scmp.eq.s32.totalorder %s14, 1
      %p104 = por %p102, %p103
      %p105 = scmp.ne.s32.totalorder %s97, %s100
      %p106 = scmp.eq.s32.totalorder %s14, 0
      %p107 = por %p105, %p106
      %p108 = scmp.ne.s32.totalorder %s97, %s100
      %p109 = scmp.eq.s32.totalorder %s19, 1
      %p110 = por %p108, %p109
      %p111 = scmp.ne.s32.totalorder %s100, %s101
      %p112 = scmp.eq.s32.totalorder %s19, 0
      %p113 = por %p111, %p112
      %p114 = scmp.ne.s32.totalorder %s100, %s101
      %p115 = scmp.eq.s32.totalorder %s20, 1
      %p116 = por %p114, %p115
      %p118 = scmp.ne.s32.totalorder %s101, %s117
      %p119 = scmp.eq.s32.totalorder %s20, 0
      %p120 = por %p118, %p119
      %p121 = scmp.le.s32.totalorder 1, %s14
      %p122 = scmp.lt.s32.totalorder %s14, 3
      %p123 = pnand %p121, %p122
      %p124 = pneg %p123
      // Predicated region
      $region9: #{tpu_custom_call.1} parent=5 // pred_check
        _
      $region10: #{tpu_custom_call.1} parent=5 // pred_check_branch
        %126 = sbr.rel (%p123) target = $region12
      $region11: #{tpu_custom_call.1} parent=5 // pred_region
        %s127 = ssub.s32 %s14, 1
        // Predicated region
        $region13: #{tpu_custom_call.1} parent=11 // pred_check
          %p128 = pneg %p61
        $region14: #{tpu_custom_call.1} parent=11 // pred_check_branch
          %130 = sbr.rel (%p128) target = $region16
        $region15: #{tpu_custom_call.1} parent=11 // pred_region
          %s132 = ssub.s32 64, 64
          %133 = vsyncadd [#allocation5], %s132
          %s135 = sshll.u32 [#allocation4], 4
          %s136 = int_to_ptr.vmem [resolvable:$true] %s135
          %138 = dma.hbm_to_vmem [thread:$0]  %s1, 64, %s136, [#allocation5]
        $region16: #{tpu_custom_call.1} parent=11 // pred_fallthru
          _
      $region12: #{tpu_custom_call.1} parent=5 // pred_fallthru
        _
      %p139 = scmp.lt.s32.totalorder %s14, 2
      // Predicated region
      $region17: #{tpu_custom_call.1} parent=5 // pred_check
        %p140 = pneg %p139
      $region18: #{tpu_custom_call.1} parent=5 // pred_check_branch
        %142 = sbr.rel (%p140) target = $region20
      $region19: #{tpu_custom_call.1} parent=5 // pred_region
        // Predicated region
        $region21: #{tpu_custom_call.1} parent=19 // pred_check
          %p143 = pneg %p34
        $region22: #{tpu_custom_call.1} parent=19 // pred_check_branch
          %145 = sbr.rel (%p143) target = $region24
        $region23: #{tpu_custom_call.1} parent=19 // pred_region
          %s146 = sand.u32 %s24, 1
          %s147 = scalar_lea.sflag [#allocation3], %s146
          %s148 = sand.u32 %s24, 1
          %s149 = smul.addr %s148, 8
          %s150 = scalar_lea.vmem [#allocation2], %s149
          %s152 = ssub.s32 128, 128
          %153 = vsyncadd %s147, %s152
          %s154 = smul.addr %s14, 128
          %s155 = scalar_lea.hbm %s0, %s154
          %s157 = sshll.u32 %s150, 4
          %s158 = int_to_ptr.vmem [resolvable:$true] %s157
          %160 = dma.hbm_to_vmem [thread:$0]  %s155, 128, %s158, %s147
        $region24: #{tpu_custom_call.1} parent=19 // pred_fallthru
          _
      $region20: #{tpu_custom_call.1} parent=5 // pred_fallthru
        _
      %p161 = scmp.le.s32.totalorder 1, %s14
      %p162 = scmp.lt.s32.totalorder %s14, 3
      %p163 = pnand %p161, %p162
      %p164 = pneg %p163
      // Predicated region
      $region25: #{tpu_custom_call.1} parent=5 // pred_check
        _
      $region26: #{tpu_custom_call.1} parent=5 // pred_check_branch
        %166 = sbr.rel (%p163) target = $region28
      $region27: #{tpu_custom_call.1} parent=5 // pred_region
        %s167 = ssub.s32 %s14, 1
        %s168 = sand.u32 %s27, 1
        %s169 = scalar_lea.sflag [#allocation3], %s168
        %s170 = sand.u32 %s27, 1
        %s171 = smul.addr %s170, 8
        %s172 = scalar_lea.vmem [#allocation2], %s171
        // Predicated region
        $region29: #{tpu_custom_call.1} parent=27 // pred_check
          %p173 = pneg %p40
        $region30: #{tpu_custom_call.1} parent=27 // pred_check_branch
          %175 = sbr.rel (%p173) target = $region32
        $region31: #{tpu_custom_call.1} parent=27 // pred_region
          %176 = dma.done %s169, 128
        $region32: #{tpu_custom_call.1} parent=27 // pred_fallthru
          _
        // Predicated region
        $region33: #{tpu_custom_call.1} parent=27 // pred_check
          %p177 = pneg %p61
        $region34: #{tpu_custom_call.1} parent=27 // pred_check_branch
          %179 = sbr.rel (%p177) target = $region36
        $region35: #{tpu_custom_call.1} parent=27 // pred_region
          %180 = dma.done [#allocation5], 64
        $region36: #{tpu_custom_call.1} parent=27 // pred_fallthru
          _
        %s181 = sand.u32 %s27, 1
        %s182 = scalar_lea.sflag [#allocation3], %s181
        %s183 = sand.u32 %s27, 1
        %s184 = smul.addr %s183, 8
        %s185 = scalar_lea.vmem [#allocation2], %s184
        %p186 = pneg %p40
        %p187 = pneg %p37
        %p188 = pneg %p61
        %p189 = pneg %p58
        %p190 = pneg %p87
        %p191 = pneg %p84
        %s192 = smul.u32 16, %s19
        %p193 = scmp.lt.s32.totalorder %s192, 31
        %s194 = scalar_select %p193, %s192, 31
        %s195 = smul.addr %s194, 8
        %s196 = scalar_lea.vmem %s2, %s195
        %p197 = pneg %p113
        %p198 = pneg %p110
        %s199 = smul.u32 16, %s19
        %p200 = scmp.lt.s32.totalorder %s199, 31
        %s201 = scalar_select %p200, %s199, 31
        %s202 = smul.addr %s201, 8
        %s203 = scalar_lea.vmem %s3, %s202
        %s204 = smul.u32 16, %s19
        %p205 = scmp.lt.s32.totalorder %s204, 31
        %s206 = scalar_select %p205, %s204, 31
        %s207 = smul.addr %s206, 8
        %s208 = scalar_lea.vmem %s2, %s207
        %s209 = smul.u32 16, %s19
        %s210 = smul.u32 16, %s19
        %p211 = scmp.lt.s32.totalorder %s210, 31
        %s212 = scalar_select %p211, %s210, 31
        %s213 = smul.addr %s212, 8
        %s214 = scalar_lea.vmem %s3, %s213
        %s215 = smul.u32 16, %s19
        %v216 = vld [vmem:[%s172] sm:$0xff]
        %217 = vxpose.xlu0.b32.start [1/16] %v216, 128
        %218 = vxpose.xlu0.b32.cont [2/16] 0.0, 128
        %219 = vxpose.xlu0.b32.cont [3/16] 0.0, 128
        %220 = vxpose.xlu0.b32.cont [4/16] 0.0, 128
        %221 = vxpose.xlu0.b32.cont [5/16] 0.0, 128
        %222 = vxpose.xlu0.b32.cont [6/16] 0.0, 128
        %223 = vxpose.xlu0.b32.cont [7/16] 0.0, 128
        %224 = vxpose.xlu0.b32.cont [8/16] 0.0, 128
        %225 = vxpose.xlu0.b32.cont [9/16] 0.0, 128
        %226 = vxpose.xlu0.b32.cont [10/16] 0.0, 128
        %227 = vxpose.xlu0.b32.cont [11/16] 0.0, 128
        %228 = vxpose.xlu0.b32.cont [12/16] 0.0, 128
        %229 = vxpose.xlu0.b32.cont [13/16] 0.0, 128
        %230 = vxpose.xlu0.b32.cont [14/16] 0.0, 128
        %231 = vxpose.xlu0.b32.cont [15/16] 0.0, 128
        %232 = vxpose.xlu0.b32.end [16/16] 0.0, 128
        %v233 = vpop.trf.xlu0
        %v234 = vpop.trf.xlu0
        %v235 = vpop.trf.xlu0
        %v236 = vpop.trf.xlu0
        %v237 = vpop.trf.xlu0
        %v238 = vpop.trf.xlu0
        %v239 = vpop.trf.xlu0
        %v240 = vpop.trf.xlu0
        %v241 = vpop.trf.xlu0
        %v242 = vpop.trf.xlu0
        %v243 = vpop.trf.xlu0
        %v244 = vpop.trf.xlu0
        %v245 = vpop.trf.xlu0
        %v246 = vpop.trf.xlu0
        %v247 = vpop.trf.xlu0
        %v248 = vpop.trf.xlu0
        %v249 = vld [vmem:[#allocation4] sm:$0x1]
        %251 = vset.pattern.permute.xlu0 0
        %252 = vperm.xlu0 %251, %v233
        %v253 = vpop.permute.xlu0 %252
        %256 = vset.pattern.permute.xlu0 0
        %257 = vperm.xlu0 %256, %v234
        %v258 = vpop.permute.xlu0 %257
        %261 = vset.pattern.permute.xlu0 0
        %262 = vperm.xlu0 %261, %v235
        %v263 = vpop.permute.xlu0 %262
        %266 = vset.pattern.permute.xlu0 0
        %267 = vperm.xlu0 %266, %v236
        %v268 = vpop.permute.xlu0 %267
        %271 = vset.pattern.permute.xlu0 0
        %272 = vperm.xlu0 %271, %v237
        %v273 = vpop.permute.xlu0 %272
        %276 = vset.pattern.permute.xlu0 0
        %277 = vperm.xlu0 %276, %v238
        %v278 = vpop.permute.xlu0 %277
        %281 = vset.pattern.permute.xlu0 0
        %282 = vperm.xlu0 %281, %v239
        %v283 = vpop.permute.xlu0 %282
        %286 = vset.pattern.permute.xlu0 0
        %287 = vperm.xlu0 %286, %v240
        %v288 = vpop.permute.xlu0 %287
        %291 = vset.pattern.permute.xlu0 0
        %292 = vperm.xlu0 %291, %v241
        %v293 = vpop.permute.xlu0 %292
        %296 = vset.pattern.permute.xlu0 0
        %297 = vperm.xlu0 %296, %v242
        %v298 = vpop.permute.xlu0 %297
        %301 = vset.pattern.permute.xlu0 0
        %302 = vperm.xlu0 %301, %v243
        %v303 = vpop.permute.xlu0 %302
        %306 = vset.pattern.permute.xlu0 0
        %307 = vperm.xlu0 %306, %v244
        %v308 = vpop.permute.xlu0 %307
        %311 = vset.pattern.permute.xlu0 0
        %312 = vperm.xlu0 %311, %v245
        %v313 = vpop.permute.xlu0 %312
        %316 = vset.pattern.permute.xlu0 0
        %317 = vperm.xlu0 %316, %v246
        %v318 = vpop.permute.xlu0 %317
        %321 = vset.pattern.permute.xlu0 0
        %322 = vperm.xlu0 %321, %v247
        %v323 = vpop.permute.xlu0 %322
        %326 = vset.pattern.permute.xlu0 0
        %327 = vperm.xlu0 %326, %v248
        %v328 = vpop.permute.xlu0 %327
        %v330 = vlaneseq
        %v331 = vshrl.u32 %v330, 7
        %v332 = vsub.s32 0, %v331
        %v333 = vrot.slane %v249, %v332
        %v334 = vmul.f32 %v253, %v333
        %v335 = vmul.f32 %v258, %v333
        %v336 = vmul.f32 %v263, %v333
        %v337 = vmul.f32 %v268, %v333
        %v338 = vmul.f32 %v273, %v333
        %v339 = vmul.f32 %v278, %v333
        %v340 = vmul.f32 %v283, %v333
        %v341 = vmul.f32 %v288, %v333
        %v342 = vmul.f32 %v293, %v333
        %v343 = vmul.f32 %v298, %v333
        %v344 = vmul.f32 %v303, %v333
        %v345 = vmul.f32 %v308, %v333
        %v346 = vmul.f32 %v313, %v333
        %v347 = vmul.f32 %v318, %v333
        %v348 = vmul.f32 %v323, %v333
        %v349 = vmul.f32 %v328, %v333
        %v350 = vld [vmem:[#allocation4 + $0x1] sm:$0x1]
        %351 = vset.pattern.permute.xlu0 1
        %352 = vperm.xlu0 %351, %v233
        %v353 = vpop.permute.xlu0 %352
        %355 = vset.pattern.permute.xlu0 1
        %356 = vperm.xlu0 %355, %v234
        %v357 = vpop.permute.xlu0 %356
        %359 = vset.pattern.permute.xlu0 1
        %360 = vperm.xlu0 %359, %v235
        %v361 = vpop.permute.xlu0 %360
        %363 = vset.pattern.permute.xlu0 1
        %364 = vperm.xlu0 %363, %v236
        %v365 = vpop.permute.xlu0 %364
        %367 = vset.pattern.permute.xlu0 1
        %368 = vperm.xlu0 %367, %v237
        %v369 = vpop.permute.xlu0 %368
        %371 = vset.pattern.permute.xlu0 1
        %372 = vperm.xlu0 %371, %v238
        %v373 = vpop.permute.xlu0 %372
        %375 = vset.pattern.permute.xlu0 1
        %376 = vperm.xlu0 %375, %v239
        %v377 = vpop.permute.xlu0 %376
        %379 = vset.pattern.permute.xlu0 1
        %380 = vperm.xlu0 %379, %v240
        %v381 = vpop.permute.xlu0 %380
        %383 = vset.pattern.permute.xlu0 1
        %384 = vperm.xlu0 %383, %v241
        %v385 = vpop.permute.xlu0 %384
        %387 = vset.pattern.permute.xlu0 1
        %388 = vperm.xlu0 %387, %v242
        %v389 = vpop.permute.xlu0 %388
        %391 = vset.pattern.permute.xlu0 1
        %392 = vperm.xlu0 %391, %v243
        %v393 = vpop.permute.xlu0 %392
        %395 = vset.pattern.permute.xlu0 1
        %396 = vperm.xlu0 %395, %v244
        %v397 = vpop.permute.xlu0 %396
        %399 = vset.pattern.permute.xlu0 1
        %400 = vperm.xlu0 %399, %v245
        %v401 = vpop.permute.xlu0 %400
        %403 = vset.pattern.permute.xlu0 1
        %404 = vperm.xlu0 %403, %v246
        %v405 = vpop.permute.xlu0 %404
        %407 = vset.pattern.permute.xlu0 1
        %408 = vperm.xlu0 %407, %v247
        %v409 = vpop.permute.xlu0 %408
        %411 = vset.pattern.permute.xlu0 1
        %412 = vperm.xlu0 %411, %v248
        %v413 = vpop.permute.xlu0 %412
        %v415 = vlaneseq
        %v416 = vshrl.u32 %v415, 7
        %v417 = vsub.s32 0, %v416
        %v418 = vrot.slane %v350, %v417
        %v419 = vmul.f32 %v353, %v418
        %v420 = vmul.f32 %v357, %v418
        %v421 = vmul.f32 %v361, %v418
        %v422 = vmul.f32 %v365, %v418
        %v423 = vmul.f32 %v369, %v418
        %v424 = vmul.f32 %v373, %v418
        %v425 = vmul.f32 %v377, %v418
        %v426 = vmul.f32 %v381, %v418
        %v427 = vmul.f32 %v385, %v418
        %v428 = vmul.f32 %v389, %v418
        %v429 = vmul.f32 %v393, %v418
        %v430 = vmul.f32 %v397, %v418
        %v431 = vmul.f32 %v401, %v418
        %v432 = vmul.f32 %v405, %v418
        %v433 = vmul.f32 %v409, %v418
        %v434 = vmul.f32 %v413, %v418
        %v435 = vadd.f32 %v334, %v419
        %v436 = vadd.f32 %v335, %v420
        %v437 = vadd.f32 %v336, %v421
        %v438 = vadd.f32 %v337, %v422
        %v439 = vadd.f32 %v338, %v423
        %v440 = vadd.f32 %v339, %v424
        %v441 = vadd.f32 %v340, %v425
        %v442 = vadd.f32 %v341, %v426
        %v443 = vadd.f32 %v342, %v427
        %v444 = vadd.f32 %v343, %v428
        %v445 = vadd.f32 %v344, %v429
        %v446 = vadd.f32 %v345, %v430
        %v447 = vadd.f32 %v346, %v431
        %v448 = vadd.f32 %v347, %v432
        %v449 = vadd.f32 %v348, %v433
        %v450 = vadd.f32 %v349, %v434
        %v451 = vld [vmem:[#allocation4 + $0x2] sm:$0x1]
        %452 = vset.pattern.permute.xlu0 2
        %453 = vperm.xlu0 %452, %v233
        %v454 = vpop.permute.xlu0 %453
        %456 = vset.pattern.permute.xlu0 2
        %457 = vperm.xlu0 %456, %v234
        %v458 = vpop.permute.xlu0 %457
        %460 = vset.pattern.permute.xlu0 2
        %461 = vperm.xlu0 %460, %v235
        %v462 = vpop.permute.xlu0 %461
        %464 = vset.pattern.permute.xlu0 2
        %465 = vperm.xlu0 %464, %v236
        %v466 = vpop.permute.xlu0 %465
        %468 = vset.pattern.permute.xlu0 2
        %469 = vperm.xlu0 %468, %v237
        %v470 = vpop.permute.xlu0 %469
        %472 = vset.pattern.permute.xlu0 2
        %473 = vperm.xlu0 %472, %v238
        %v474 = vpop.permute.xlu0 %473
        %476 = vset.pattern.permute.xlu0 2
        %477 = vperm.xlu0 %476, %v239
        %v478 = vpop.permute.xlu0 %477
        %480 = vset.pattern.permute.xlu0 2
        %481 = vperm.xlu0 %480, %v240
        %v482 = vpop.permute.xlu0 %481
        %484 = vset.pattern.permute.xlu0 2
        %485 = vperm.xlu0 %484, %v241
        %v486 = vpop.permute.xlu0 %485
        %488 = vset.pattern.permute.xlu0 2
        %489 = vperm.xlu0 %488, %v242
        %v490 = vpop.permute.xlu0 %489
        %492 = vset.pattern.permute.xlu0 2
        %493 = vperm.xlu0 %492, %v243
        %v494 = vpop.permute.xlu0 %493
        %496 = vset.pattern.permute.xlu0 2
        %497 = vperm.xlu0 %496, %v244
        %v498 = vpop.permute.xlu0 %497
        %500 = vset.pattern.permute.xlu0 2
        %501 = vperm.xlu0 %500, %v245
        %v502 = vpop.permute.xlu0 %501
        %504 = vset.pattern.permute.xlu0 2
        %505 = vperm.xlu0 %504, %v246
        %v506 = vpop.permute.xlu0 %505
        %508 = vset.pattern.permute.xlu0 2
        %509 = vperm.xlu0 %508, %v247
        %v510 = vpop.permute.xlu0 %509
        %512 = vset.pattern.permute.xlu0 2
        %513 = vperm.xlu0 %512, %v248
        %v514 = vpop.permute.xlu0 %513
        %v516 = vlaneseq
        %v517 = vshrl.u32 %v516, 7
        %v518 = vsub.s32 0, %v517
        %v519 = vrot.slane %v451, %v518
        %v520 = vmul.f32 %v454, %v519
        %v521 = vmul.f32 %v458, %v519
        %v522 = vmul.f32 %v462, %v519
        %v523 = vmul.f32 %v466, %v519
        %v524 = vmul.f32 %v470, %v519
        %v525 = vmul.f32 %v474, %v519
        %v526 = vmul.f32 %v478, %v519
        %v527 = vmul.f32 %v482, %v519
        %v528 = vmul.f32 %v486, %v519
        %v529 = vmul.f32 %v490, %v519
        %v530 = vmul.f32 %v494, %v519
        %v531 = vmul.f32 %v498, %v519
        %v532 = vmul.f32 %v502, %v519
        %v533 = vmul.f32 %v506, %v519
        %v534 = vmul.f32 %v510, %v519
        %v535 = vmul.f32 %v514, %v519
        %v536 = vadd.f32 %v435, %v520
        %v537 = vadd.f32 %v436, %v521
        %v538 = vadd.f32 %v437, %v522
        %v539 = vadd.f32 %v438, %v523
        %v540 = vadd.f32 %v439, %v524
        %v541 = vadd.f32 %v440, %v525
        %v542 = vadd.f32 %v441, %v526
        %v543 = vadd.f32 %v442, %v527
        %v544 = vadd.f32 %v443, %v528
        %v545 = vadd.f32 %v444, %v529
        %v546 = vadd.f32 %v445, %v530
        %v547 = vadd.f32 %v446, %v531
        %v548 = vadd.f32 %v447, %v532
        %v549 = vadd.f32 %v448, %v533
        %v550 = vadd.f32 %v449, %v534
        %v551 = vadd.f32 %v450, %v535
        %v552 = vand.u32 2147483647, %v536
        %vm553 = vcmp.le.f32.partialorder %v552, 0.7853982
        %vm554 = vcmp.lt.s32.totalorder %v536, 0
        %v555 = vand.u32 %v536, 2139095040
        %v556 = vshrl.u32 %v555, 23
        %v557 = vsub.s32 %v556, 127
        %v558 = vand.u32 2147483647, %v536
        %v559 = vand.u32 %v558, 8388607
        %v560 = vor.u32 %v559, 8388608
        %v561 = vsub.s32 0, %v560
        %v562 = vadd.s32 %v557, 1
        %vm563 = vcmp.gt.s32.totalorder %v562, 0
        %v564 = vsel %vm563, %v562, 0
        %v565 = vshrl.u32 %v564, 5
        %v566 = vand.u32 %v564, 31
        %v567 = vsub.s32 32, %v566
        %v568 = vshrl.u32 683565275, %v567
        %v569 = vshll.u32 683565275, %v566
        %v570 = vshrl.u32 2475754826, %v567
        %v571 = vor.u32 %v569, %v570
        %v572 = vshll.u32 2475754826, %v566
        %v573 = vshrl.u32 2131351028, %v567
        %v574 = vor.u32 %v572, %v573
        %v575 = vshll.u32 2131351028, %v566
        %v576 = vshrl.u32 2102212464, %v567
        %v577 = vor.u32 %v575, %v576
        %v578 = vshll.u32 2102212464, %v566
        %v579 = vshrl.u32 920167782, %v567
        %v580 = vor.u32 %v578, %v579
        %v581 = vshll.u32 920167782, %v566
        %v582 = vshrl.u32 1326507024, %v567
        %v583 = vor.u32 %v581, %v582
        %vm584 = vcmp.lt.s32.totalorder %v565, 1
        %vm585 = vcmp.lt.s32.totalorder %v565, 2
        %vm586 = vcmp.lt.s32.totalorder %v565, 3
        %vm587 = vcmp.lt.s32.totalorder %v565, 4
        %v588 = vsel %vm584, %v568, %v571
        %v589 = vsel %vm587, %v577, 2102212464
        %v590 = vsel %vm586, %v574, %v589
        %v591 = vsel %vm585, %v588, %v590
        %v592 = vsel %vm584, %v571, %v574
        %v593 = vsel %vm587, %v580, 920167782
        %v594 = vsel %vm586, %v577, %v593
        %v595 = vsel %vm585, %v592, %v594
        %v596 = vsel %vm584, %v574, %v577
        %v597 = vsel %vm587, %v583, 1326507024
        %v598 = vsel %vm586, %v580, %v597
        %v599 = vsel %vm585, %v596, %v598
        %v600 = vshll.u32 %v560, 8
        %v601 = vmul.u32.u64.compose %v600, %v599
        %v602 = vextract.low.u32 %v601
        %v603 = vextract.high.u32 %v601
        %v604 = vmul.u32.u64.compose %v600, %v595
        %v605 = vextract.low.u32 %v604
        %v606 = vextract.high.u32 %v604
        %v607 = vmul.u32 %v600, %v591
        %v608 = vadd.s32 %v603, %v605
        %vm609 = vc.u32 %v603, %v605
        %v610 = vadd.s32 %v606, 1
        %v611 = vsel %vm609, %v610, %v606
        %v612 = vadd.s32 %v607, %v611
        %v613 = vadd.s32 %v612, 536870912
        %v614 = vshrl.u32 %v613, 30
        %v615 = vshll.u32 %v614, 30
        %v616 = vsub.s32 %v612, %v615
        %vm617 = vcmp.lt.s32.totalorder %v616, 0
        %v618 = vsub.s32 0, %v616
        %v619 = vsel %vm617, %v618, %v616
        %v620 = vclz %v619
        %v621 = vsub.s32 %v620, 2
        %vm622 = vcmp.gt.s32.totalorder 0, %v621
        %v623 = vsel %vm622, 0, %v621
        %v624 = vsub.s32 32, %v623
        %v625 = vshll.u32 %v616, %v623
        %v626 = vshrl.u32 %v608, %v624
        %v627 = vor.u32 %v625, %v626
        %v628 = vsub.s32 4294967266, %v623
        %v629 = vadd.s32 %v628, 127
        %v630 = vshll.u32 %v629, 23
        %v631 = vor.u32 4788187, %v630
        %v632 = vand.u32 2147483647, %v631
        %v634 = vcvt.s32.f32 %v627
        %v635 = vmul.f32 %v634, %v632
        %v636 = vxor.u32 %v635, 2147483648
        %v637 = vsel %vm554, %v636, %v635
        %v638 = vsub.s32 4, %v614
        %v639 = vsel %vm554, %v638, %v614
        %v640 = vsel %vm553, %v536, %v637
        %v641 = vsel %vm553, 0, %v639
        %v642 = vcosq.f32.pop %v640
        %v643 = vsinq.f32.pop %v640
        %vm644 = vweird.f32 %v536
        %v645 = vand.u32 %v641, 3
        %vm646 = vcmp.lt.s32.totalorder %v645, 2
        %vm647 = vcmp.eq.s32.totalorder %v645, 0
        %v648 = vxor.u32 %v643, 2147483648
        %v649 = vsel %vm647, %v642, %v648
        %vm650 = vcmp.eq.s32.totalorder %v645, 2
        %v651 = vxor.u32 %v642, 2147483648
        %v652 = vsel %vm650, %v651, %v643
        %v653 = vsel %vm646, %v649, %v652
        %v654 = vsel %vm644, nan, %v653
        %v655 = vand.u32 2147483647, %v537
        %vm656 = vcmp.le.f32.partialorder %v655, 0.7853982
        %vm657 = vcmp.lt.s32.totalorder %v537, 0
        %v658 = vand.u32 %v537, 2139095040
        %v659 = vshrl.u32 %v658, 23
        %v660 = vsub.s32 %v659, 127
        %v661 = vand.u32 2147483647, %v537
        %v662 = vand.u32 %v661, 8388607
        %v663 = vor.u32 %v662, 8388608
        %v664 = vsub.s32 0, %v663
        %v665 = vadd.s32 %v660, 1
        %vm666 = vcmp.gt.s32.totalorder %v665, 0
        %v667 = vsel %vm666, %v665, 0
        %v668 = vshrl.u32 %v667, 5
        %v669 = vand.u32 %v667, 31
        %v670 = vsub.s32 32, %v669
        %v671 = vshrl.u32 683565275, %v670
        %v672 = vshll.u32 683565275, %v669
        %v673 = vshrl.u32 2475754826, %v670
        %v674 = vor.u32 %v672, %v673
        %v675 = vshll.u32 2475754826, %v669
        %v676 = vshrl.u32 2131351028, %v670
        %v677 = vor.u32 %v675, %v676
        %v678 = vshll.u32 2131351028, %v669
        %v679 = vshrl.u32 2102212464, %v670
        %v680 = vor.u32 %v678, %v679
        %v681 = vshll.u32 2102212464, %v669
        %v682 = vshrl.u32 920167782, %v670
        %v683 = vor.u32 %v681, %v682
        %v684 = vshll.u32 920167782, %v669
        %v685 = vshrl.u32 1326507024, %v670
        %v686 = vor.u32 %v684, %v685
        %vm687 = vcmp.lt.s32.totalorder %v668, 1
        %vm688 = vcmp.lt.s32.totalorder %v668, 2
        %vm689 = vcmp.lt.s32.totalorder %v668, 3
        %vm690 = vcmp.lt.s32.totalorder %v668, 4
        %v691 = vsel %vm687, %v671, %v674
        %v692 = vsel %vm690, %v680, 2102212464
        %v693 = vsel %vm689, %v677, %v692
        %v694 = vsel %vm688, %v691, %v693
        %v695 = vsel %vm687, %v674, %v677
        %v696 = vsel %vm690, %v683, 920167782
        %v697 = vsel %vm689, %v680, %v696
        %v698 = vsel %vm688, %v695, %v697
        %v699 = vsel %vm687, %v677, %v680
        %v700 = vsel %vm690, %v686, 1326507024
        %v701 = vsel %vm689, %v683, %v700
        %v702 = vsel %vm688, %v699, %v701
        %v703 = vshll.u32 %v663, 8
        %v704 = vmul.u32.u64.compose %v703, %v702
        %v705 = vextract.low.u32 %v704
        %v706 = vextract.high.u32 %v704
        %v707 = vmul.u32.u64.compose %v703, %v698
        %v708 = vextract.low.u32 %v707
        %v709 = vextract.high.u32 %v707
        %v710 = vmul.u32 %v703, %v694
        %v711 = vadd.s32 %v706, %v708
        %vm712 = vc.u32 %v706, %v708
        %v713 = vadd.s32 %v709, 1
        %v714 = vsel %vm712, %v713, %v709
        %v715 = vadd.s32 %v710, %v714
        %v716 = vadd.s32 %v715, 536870912
        %v717 = vshrl.u32 %v716, 30
        %v718 = vshll.u32 %v717, 30
        %v719 = vsub.s32 %v715, %v718
        %vm720 = vcmp.lt.s32.totalorder %v719, 0
        %v721 = vsub.s32 0, %v719
        %v722 = vsel %vm720, %v721, %v719
        %v723 = vclz %v722
        %v724 = vsub.s32 %v723, 2
        %vm725 = vcmp.gt.s32.totalorder 0, %v724
        %v726 = vsel %vm725, 0, %v724
        %v727 = vsub.s32 32, %v726
        %v728 = vshll.u32 %v719, %v726
        %v729 = vshrl.u32 %v711, %v727
        %v730 = vor.u32 %v728, %v729
        %v731 = vsub.s32 4294967266, %v726
        %v732 = vadd.s32 %v731, 127
        %v733 = vshll.u32 %v732, 23
        %v734 = vor.u32 4788187, %v733
        %v735 = vand.u32 2147483647, %v734
        %v737 = vcvt.s32.f32 %v730
        %v738 = vmul.f32 %v737, %v735
        %v739 = vxor.u32 %v738, 2147483648
        %v740 = vsel %vm657, %v739, %v738
        %v741 = vsub.s32 4, %v717
        %v742 = vsel %vm657, %v741, %v717
        %v743 = vsel %vm656, %v537, %v740
        %v744 = vsel %vm656, 0, %v742
        %v745 = vcosq.f32.pop %v743
        %v746 = vsinq.f32.pop %v743
        %vm747 = vweird.f32 %v537
        %v748 = vand.u32 %v744, 3
        %vm749 = vcmp.lt.s32.totalorder %v748, 2
        %vm750 = vcmp.eq.s32.totalorder %v748, 0
        %v751 = vxor.u32 %v746, 2147483648
        %v752 = vsel %vm750, %v745, %v751
        %vm753 = vcmp.eq.s32.totalorder %v748, 2
        %v754 = vxor.u32 %v745, 2147483648
        %v755 = vsel %vm753, %v754, %v746
        %v756 = vsel %vm749, %v752, %v755
        %v757 = vsel %vm747, nan, %v756
        %v758 = vand.u32 2147483647, %v538
        %vm759 = vcmp.le.f32.partialorder %v758, 0.7853982
        %vm760 = vcmp.lt.s32.totalorder %v538, 0
        %v761 = vand.u32 %v538, 2139095040
        %v762 = vshrl.u32 %v761, 23
        %v763 = vsub.s32 %v762, 127
        %v764 = vand.u32 2147483647, %v538
        %v765 = vand.u32 %v764, 8388607
        %v766 = vor.u32 %v765, 8388608
        %v767 = vsub.s32 0, %v766
        %v768 = vadd.s32 %v763, 1
        %vm769 = vcmp.gt.s32.totalorder %v768, 0
        %v770 = vsel %vm769, %v768, 0
        %v771 = vshrl.u32 %v770, 5
        %v772 = vand.u32 %v770, 31
        %v773 = vsub.s32 32, %v772
        %v774 = vshrl.u32 683565275, %v773
        %v775 = vshll.u32 683565275, %v772
        %v776 = vshrl.u32 2475754826, %v773
        %v777 = vor.u32 %v775, %v776
        %v778 = vshll.u32 2475754826, %v772
        %v779 = vshrl.u32 2131351028, %v773
        %v780 = vor.u32 %v778, %v779
        %v781 = vshll.u32 2131351028, %v772
        %v782 = vshrl.u32 2102212464, %v773
        %v783 = vor.u32 %v781, %v782
        %v784 = vshll.u32 2102212464, %v772
        %v785 = vshrl.u32 920167782, %v773
        %v786 = vor.u32 %v784, %v785
        %v787 = vshll.u32 920167782, %v772
        %v788 = vshrl.u32 1326507024, %v773
        %v789 = vor.u32 %v787, %v788
        %vm790 = vcmp.lt.s32.totalorder %v771, 1
        %vm791 = vcmp.lt.s32.totalorder %v771, 2
        %vm792 = vcmp.lt.s32.totalorder %v771, 3
        %vm793 = vcmp.lt.s32.totalorder %v771, 4
        %v794 = vsel %vm790, %v774, %v777
        %v795 = vsel %vm793, %v783, 2102212464
        %v796 = vsel %vm792, %v780, %v795
        %v797 = vsel %vm791, %v794, %v796
        %v798 = vsel %vm790, %v777, %v780
        %v799 = vsel %vm793, %v786, 920167782
        %v800 = vsel %vm792, %v783, %v799
        %v801 = vsel %vm791, %v798, %v800
        %v802 = vsel %vm790, %v780, %v783
        %v803 = vsel %vm793, %v789, 1326507024
        %v804 = vsel %vm792, %v786, %v803
        %v805 = vsel %vm791, %v802, %v804
        %v806 = vshll.u32 %v766, 8
        %v807 = vmul.u32.u64.compose %v806, %v805
        %v808 = vextract.low.u32 %v807
        %v809 = vextract.high.u32 %v807
        %v810 = vmul.u32.u64.compose %v806, %v801
        %v811 = vextract.low.u32 %v810
        %v812 = vextract.high.u32 %v810
        %v813 = vmul.u32 %v806, %v797
        %v814 = vadd.s32 %v809, %v811
        %vm815 = vc.u32 %v809, %v811
        %v816 = vadd.s32 %v812, 1
        %v817 = vsel %vm815, %v816, %v812
        %v818 = vadd.s32 %v813, %v817
        %v819 = vadd.s32 %v818, 536870912
        %v820 = vshrl.u32 %v819, 30
        %v821 = vshll.u32 %v820, 30
        %v822 = vsub.s32 %v818, %v821
        %vm823 = vcmp.lt.s32.totalorder %v822, 0
        %v824 = vsub.s32 0, %v822
        %v825 = vsel %vm823, %v824, %v822
        %v826 = vclz %v825
        %v827 = vsub.s32 %v826, 2
        %vm828 = vcmp.gt.s32.totalorder 0, %v827
        %v829 = vsel %vm828, 0, %v827
        %v830 = vsub.s32 32, %v829
        %v831 = vshll.u32 %v822, %v829
        %v832 = vshrl.u32 %v814, %v830
        %v833 = vor.u32 %v831, %v832
        %v834 = vsub.s32 4294967266, %v829
        %v835 = vadd.s32 %v834, 127
        %v836 = vshll.u32 %v835, 23
        %v837 = vor.u32 4788187, %v836
        %v838 = vand.u32 2147483647, %v837
        %v840 = vcvt.s32.f32 %v833
        %v841 = vmul.f32 %v840, %v838
        %v842 = vxor.u32 %v841, 2147483648
        %v843 = vsel %vm760, %v842, %v841
        %v844 = vsub.s32 4, %v820
        %v845 = vsel %vm760, %v844, %v820
        %v846 = vsel %vm759, %v538, %v843
        %v847 = vsel %vm759, 0, %v845
        %v848 = vcosq.f32.pop %v846
        %v849 = vsinq.f32.pop %v846
        %vm850 = vweird.f32 %v538
        %v851 = vand.u32 %v847, 3
        %vm852 = vcmp.lt.s32.totalorder %v851, 2
        %vm853 = vcmp.eq.s32.totalorder %v851, 0
        %v854 = vxor.u32 %v849, 2147483648
        %v855 = vsel %vm853, %v848, %v854
        %vm856 = vcmp.eq.s32.totalorder %v851, 2
        %v857 = vxor.u32 %v848, 2147483648
        %v858 = vsel %vm856, %v857, %v849
        %v859 = vsel %vm852, %v855, %v858
        %v860 = vsel %vm850, nan, %v859
        %v861 = vand.u32 2147483647, %v539
        %vm862 = vcmp.le.f32.partialorder %v861, 0.7853982
        %vm863 = vcmp.lt.s32.totalorder %v539, 0
        %v864 = vand.u32 %v539, 2139095040
        %v865 = vshrl.u32 %v864, 23
        %v866 = vsub.s32 %v865, 127
        %v867 = vand.u32 2147483647, %v539
        %v868 = vand.u32 %v867, 8388607
        %v869 = vor.u32 %v868, 8388608
        %v870 = vsub.s32 0, %v869
        %v871 = vadd.s32 %v866, 1
        %vm872 = vcmp.gt.s32.totalorder %v871, 0
        %v873 = vsel %vm872, %v871, 0
        %v874 = vshrl.u32 %v873, 5
        %v875 = vand.u32 %v873, 31
        %v876 = vsub.s32 32, %v875
        %v877 = vshrl.u32 683565275, %v876
        %v878 = vshll.u32 683565275, %v875
        %v879 = vshrl.u32 2475754826, %v876
        %v880 = vor.u32 %v878, %v879
        %v881 = vshll.u32 2475754826, %v875
        %v882 = vshrl.u32 2131351028, %v876
        %v883 = vor.u32 %v881, %v882
        %v884 = vshll.u32 2131351028, %v875
        %v885 = vshrl.u32 2102212464, %v876
        %v886 = vor.u32 %v884, %v885
        %v887 = vshll.u32 2102212464, %v875
        %v888 = vshrl.u32 920167782, %v876
        %v889 = vor.u32 %v887, %v888
        %v890 = vshll.u32 920167782, %v875
        %v891 = vshrl.u32 1326507024, %v876
        %v892 = vor.u32 %v890, %v891
        %vm893 = vcmp.lt.s32.totalorder %v874, 1
        %vm894 = vcmp.lt.s32.totalorder %v874, 2
        %vm895 = vcmp.lt.s32.totalorder %v874, 3
        %vm896 = vcmp.lt.s32.totalorder %v874, 4
        %v897 = vsel %vm893, %v877, %v880
        %v898 = vsel %vm896, %v886, 2102212464
        %v899 = vsel %vm895, %v883, %v898
        %v900 = vsel %vm894, %v897, %v899
        %v901 = vsel %vm893, %v880, %v883
        %v902 = vsel %vm896, %v889, 920167782
        %v903 = vsel %vm895, %v886, %v902
        %v904 = vsel %vm894, %v901, %v903
        %v905 = vsel %vm893, %v883, %v886
        %v906 = vsel %vm896, %v892, 1326507024
        %v907 = vsel %vm895, %v889, %v906
        %v908 = vsel %vm894, %v905, %v907
        %v909 = vshll.u32 %v869, 8
        %v910 = vmul.u32.u64.compose %v909, %v908
        %v911 = vextract.low.u32 %v910
        %v912 = vextract.high.u32 %v910
        %v913 = vmul.u32.u64.compose %v909, %v904
        %v914 = vextract.low.u32 %v913
        %v915 = vextract.high.u32 %v913
        %v916 = vmul.u32 %v909, %v900
        %v917 = vadd.s32 %v912, %v914
        %vm918 = vc.u32 %v912, %v914
        %v919 = vadd.s32 %v915, 1
        %v920 = vsel %vm918, %v919, %v915
        %v921 = vadd.s32 %v916, %v920
        %v922 = vadd.s32 %v921, 536870912
        %v923 = vshrl.u32 %v922, 30
        %v924 = vshll.u32 %v923, 30
        %v925 = vsub.s32 %v921, %v924
        %vm926 = vcmp.lt.s32.totalorder %v925, 0
        %v927 = vsub.s32 0, %v925
        %v928 = vsel %vm926, %v927, %v925
        %v929 = vclz %v928
        %v930 = vsub.s32 %v929, 2
        %vm931 = vcmp.gt.s32.totalorder 0, %v930
        %v932 = vsel %vm931, 0, %v930
        %v933 = vsub.s32 32, %v932
        %v934 = vshll.u32 %v925, %v932
        %v935 = vshrl.u32 %v917, %v933
        %v936 = vor.u32 %v934, %v935
        %v937 = vsub.s32 4294967266, %v932
        %v938 = vadd.s32 %v937, 127
        %v939 = vshll.u32 %v938, 23
        %v940 = vor.u32 4788187, %v939
        %v941 = vand.u32 2147483647, %v940
        %v943 = vcvt.s32.f32 %v936
        %v944 = vmul.f32 %v943, %v941
        %v945 = vxor.u32 %v944, 2147483648
        %v946 = vsel %vm863, %v945, %v944
        %v947 = vsub.s32 4, %v923
        %v948 = vsel %vm863, %v947, %v923
        %v949 = vsel %vm862, %v539, %v946
        %v950 = vsel %vm862, 0, %v948
        %v951 = vcosq.f32.pop %v949
        %v952 = vsinq.f32.pop %v949
        %vm953 = vweird.f32 %v539
        %v954 = vand.u32 %v950, 3
        %vm955 = vcmp.lt.s32.totalorder %v954, 2
        %vm956 = vcmp.eq.s32.totalorder %v954, 0
        %v957 = vxor.u32 %v952, 2147483648
        %v958 = vsel %vm956, %v951, %v957
        %vm959 = vcmp.eq.s32.totalorder %v954, 2
        %v960 = vxor.u32 %v951, 2147483648
        %v961 = vsel %vm959, %v960, %v952
        %v962 = vsel %vm955, %v958, %v961
        %v963 = vsel %vm953, nan, %v962
        %v964 = vand.u32 2147483647, %v540
        %vm965 = vcmp.le.f32.partialorder %v964, 0.7853982
        %vm966 = vcmp.lt.s32.totalorder %v540, 0
        %v967 = vand.u32 %v540, 2139095040
        %v968 = vshrl.u32 %v967, 23
        %v969 = vsub.s32 %v968, 127
        %v970 = vand.u32 2147483647, %v540
        %v971 = vand.u32 %v970, 8388607
        %v972 = vor.u32 %v971, 8388608
        %v973 = vsub.s32 0, %v972
        %v974 = vadd.s32 %v969, 1
        %vm975 = vcmp.gt.s32.totalorder %v974, 0
        %v976 = vsel %vm975, %v974, 0
        %v977 = vshrl.u32 %v976, 5
        %v978 = vand.u32 %v976, 31
        %v979 = vsub.s32 32, %v978
        %v980 = vshrl.u32 683565275, %v979
        %v981 = vshll.u32 683565275, %v978
        %v982 = vshrl.u32 2475754826, %v979
        %v983 = vor.u32 %v981, %v982
        %v984 = vshll.u32 2475754826, %v978
        %v985 = vshrl.u32 2131351028, %v979
        %v986 = vor.u32 %v984, %v985
        %v987 = vshll.u32 2131351028, %v978
        %v988 = vshrl.u32 2102212464, %v979
        %v989 = vor.u32 %v987, %v988
        %v990 = vshll.u32 2102212464, %v978
        %v991 = vshrl.u32 920167782, %v979
        %v992 = vor.u32 %v990, %v991
        %v993 = vshll.u32 920167782, %v978
        %v994 = vshrl.u32 1326507024, %v979
        %v995 = vor.u32 %v993, %v994
        %vm996 = vcmp.lt.s32.totalorder %v977, 1
        %vm997 = vcmp.lt.s32.totalorder %v977, 2
        %vm998 = vcmp.lt.s32.totalorder %v977, 3
        %vm999 = vcmp.lt.s32.totalorder %v977, 4
        %v1000 = vsel %vm996, %v980, %v983
        %v1001 = vsel %vm999, %v989, 2102212464
        %v1002 = vsel %vm998, %v986, %v1001
        %v1003 = vsel %vm997, %v1000, %v1002
        %v1004 = vsel %vm996, %v983, %v986
        %v1005 = vsel %vm999, %v992, 920167782
        %v1006 = vsel %vm998, %v989, %v1005
        %v1007 = vsel %vm997, %v1004, %v1006
        %v1008 = vsel %vm996, %v986, %v989
        %v1009 = vsel %vm999, %v995, 1326507024
        %v1010 = vsel %vm998, %v992, %v1009
        %v1011 = vsel %vm997, %v1008, %v1010
        %v1012 = vshll.u32 %v972, 8
        %v1013 = vmul.u32.u64.compose %v1012, %v1011
        %v1014 = vextract.low.u32 %v1013
        %v1015 = vextract.high.u32 %v1013
        %v1016 = vmul.u32.u64.compose %v1012, %v1007
        %v1017 = vextract.low.u32 %v1016
        %v1018 = vextract.high.u32 %v1016
        %v1019 = vmul.u32 %v1012, %v1003
        %v1020 = vadd.s32 %v1015, %v1017
        %vm1021 = vc.u32 %v1015, %v1017
        %v1022 = vadd.s32 %v1018, 1
        %v1023 = vsel %vm1021, %v1022, %v1018
        %v1024 = vadd.s32 %v1019, %v1023
        %v1025 = vadd.s32 %v1024, 536870912
        %v1026 = vshrl.u32 %v1025, 30
        %v1027 = vshll.u32 %v1026, 30
        %v1028 = vsub.s32 %v1024, %v1027
        %vm1029 = vcmp.lt.s32.totalorder %v1028, 0
        %v1030 = vsub.s32 0, %v1028
        %v1031 = vsel %vm1029, %v1030, %v1028
        %v1032 = vclz %v1031
        %v1033 = vsub.s32 %v1032, 2
        %vm1034 = vcmp.gt.s32.totalorder 0, %v1033
        %v1035 = vsel %vm1034, 0, %v1033
        %v1036 = vsub.s32 32, %v1035
        %v1037 = vshll.u32 %v1028, %v1035
        %v1038 = vshrl.u32 %v1020, %v1036
        %v1039 = vor.u32 %v1037, %v1038
        %v1040 = vsub.s32 4294967266, %v1035
        %v1041 = vadd.s32 %v1040, 127
        %v1042 = vshll.u32 %v1041, 23
        %v1043 = vor.u32 4788187, %v1042
        %v1044 = vand.u32 2147483647, %v1043
        %v1046 = vcvt.s32.f32 %v1039
        %v1047 = vmul.f32 %v1046, %v1044
        %v1048 = vxor.u32 %v1047, 2147483648
        %v1049 = vsel %vm966, %v1048, %v1047
        %v1050 = vsub.s32 4, %v1026
        %v1051 = vsel %vm966, %v1050, %v1026
        %v1052 = vsel %vm965, %v540, %v1049
        %v1053 = vsel %vm965, 0, %v1051
        %v1054 = vcosq.f32.pop %v1052
        %v1055 = vsinq.f32.pop %v1052
        %vm1056 = vweird.f32 %v540
        %v1057 = vand.u32 %v1053, 3
        %vm1058 = vcmp.lt.s32.totalorder %v1057, 2
        %vm1059 = vcmp.eq.s32.totalorder %v1057, 0
        %v1060 = vxor.u32 %v1055, 2147483648
        %v1061 = vsel %vm1059, %v1054, %v1060
        %vm1062 = vcmp.eq.s32.totalorder %v1057, 2
        %v1063 = vxor.u32 %v1054, 2147483648
        %v1064 = vsel %vm1062, %v1063, %v1055
        %v1065 = vsel %vm1058, %v1061, %v1064
        %v1066 = vsel %vm1056, nan, %v1065
        %v1067 = vand.u32 2147483647, %v541
        %vm1068 = vcmp.le.f32.partialorder %v1067, 0.7853982
        %vm1069 = vcmp.lt.s32.totalorder %v541, 0
        %v1070 = vand.u32 %v541, 2139095040
        %v1071 = vshrl.u32 %v1070, 23
        %v1072 = vsub.s32 %v1071, 127
        %v1073 = vand.u32 2147483647, %v541
        %v1074 = vand.u32 %v1073, 8388607
        %v1075 = vor.u32 %v1074, 8388608
        %v1076 = vsub.s32 0, %v1075
        %v1077 = vadd.s32 %v1072, 1
        %vm1078 = vcmp.gt.s32.totalorder %v1077, 0
        %v1079 = vsel %vm1078, %v1077, 0
        %v1080 = vshrl.u32 %v1079, 5
        %v1081 = vand.u32 %v1079, 31
        %v1082 = vsub.s32 32, %v1081
        %v1083 = vshrl.u32 683565275, %v1082
        %v1084 = vshll.u32 683565275, %v1081
        %v1085 = vshrl.u32 2475754826, %v1082
        %v1086 = vor.u32 %v1084, %v1085
        %v1087 = vshll.u32 2475754826, %v1081
        %v1088 = vshrl.u32 2131351028, %v1082
        %v1089 = vor.u32 %v1087, %v1088
        %v1090 = vshll.u32 2131351028, %v1081
        %v1091 = vshrl.u32 2102212464, %v1082
        %v1092 = vor.u32 %v1090, %v1091
        %v1093 = vshll.u32 2102212464, %v1081
        %v1094 = vshrl.u32 920167782, %v1082
        %v1095 = vor.u32 %v1093, %v1094
        %v1096 = vshll.u32 920167782, %v1081
        %v1097 = vshrl.u32 1326507024, %v1082
        %v1098 = vor.u32 %v1096, %v1097
        %vm1099 = vcmp.lt.s32.totalorder %v1080, 1
        %vm1100 = vcmp.lt.s32.totalorder %v1080, 2
        %vm1101 = vcmp.lt.s32.totalorder %v1080, 3
        %vm1102 = vcmp.lt.s32.totalorder %v1080, 4
        %v1103 = vsel %vm1099, %v1083, %v1086
        %v1104 = vsel %vm1102, %v1092, 2102212464
        %v1105 = vsel %vm1101, %v1089, %v1104
        %v1106 = vsel %vm1100, %v1103, %v1105
        %v1107 = vsel %vm1099, %v1086, %v1089
        %v1108 = vsel %vm1102, %v1095, 920167782
        %v1109 = vsel %vm1101, %v1092, %v1108
        %v1110 = vsel %vm1100, %v1107, %v1109
        %v1111 = vsel %vm1099, %v1089, %v1092
        %v1112 = vsel %vm1102, %v1098, 1326507024
        %v1113 = vsel %vm1101, %v1095, %v1112
        %v1114 = vsel %vm1100, %v1111, %v1113
        %v1115 = vshll.u32 %v1075, 8
        %v1116 = vmul.u32.u64.compose %v1115, %v1114
        %v1117 = vextract.low.u32 %v1116
        %v1118 = vextract.high.u32 %v1116
        %v1119 = vmul.u32.u64.compose %v1115, %v1110
        %v1120 = vextract.low.u32 %v1119
        %v1121 = vextract.high.u32 %v1119
        %v1122 = vmul.u32 %v1115, %v1106
        %v1123 = vadd.s32 %v1118, %v1120
        %vm1124 = vc.u32 %v1118, %v1120
        %v1125 = vadd.s32 %v1121, 1
        %v1126 = vsel %vm1124, %v1125, %v1121
        %v1127 = vadd.s32 %v1122, %v1126
        %v1128 = vadd.s32 %v1127, 536870912
        %v1129 = vshrl.u32 %v1128, 30
        %v1130 = vshll.u32 %v1129, 30
        %v1131 = vsub.s32 %v1127, %v1130
        %vm1132 = vcmp.lt.s32.totalorder %v1131, 0
        %v1133 = vsub.s32 0, %v1131
        %v1134 = vsel %vm1132, %v1133, %v1131
        %v1135 = vclz %v1134
        %v1136 = vsub.s32 %v1135, 2
        %vm1137 = vcmp.gt.s32.totalorder 0, %v1136
        %v1138 = vsel %vm1137, 0, %v1136
        %v1139 = vsub.s32 32, %v1138
        %v1140 = vshll.u32 %v1131, %v1138
        %v1141 = vshrl.u32 %v1123, %v1139
        %v1142 = vor.u32 %v1140, %v1141
        %v1143 = vsub.s32 4294967266, %v1138
        %v1144 = vadd.s32 %v1143, 127
        %v1145 = vshll.u32 %v1144, 23
        %v1146 = vor.u32 4788187, %v1145
        %v1147 = vand.u32 2147483647, %v1146
        %v1149 = vcvt.s32.f32 %v1142
        %v1150 = vmul.f32 %v1149, %v1147
        %v1151 = vxor.u32 %v1150, 2147483648
        %v1152 = vsel %vm1069, %v1151, %v1150
        %v1153 = vsub.s32 4, %v1129
        %v1154 = vsel %vm1069, %v1153, %v1129
        %v1155 = vsel %vm1068, %v541, %v1152
        %v1156 = vsel %vm1068, 0, %v1154
        %v1157 = vcosq.f32.pop %v1155
        %v1158 = vsinq.f32.pop %v1155
        %vm1159 = vweird.f32 %v541
        %v1160 = vand.u32 %v1156, 3
        %vm1161 = vcmp.lt.s32.totalorder %v1160, 2
        %vm1162 = vcmp.eq.s32.totalorder %v1160, 0
        %v1163 = vxor.u32 %v1158, 2147483648
        %v1164 = vsel %vm1162, %v1157, %v1163
        %vm1165 = vcmp.eq.s32.totalorder %v1160, 2
        %v1166 = vxor.u32 %v1157, 2147483648
        %v1167 = vsel %vm1165, %v1166, %v1158
        %v1168 = vsel %vm1161, %v1164, %v1167
        %v1169 = vsel %vm1159, nan, %v1168
        %v1170 = vand.u32 2147483647, %v542
        %vm1171 = vcmp.le.f32.partialorder %v1170, 0.7853982
        %vm1172 = vcmp.lt.s32.totalorder %v542, 0
        %v1173 = vand.u32 %v542, 2139095040
        %v1174 = vshrl.u32 %v1173, 23
        %v1175 = vsub.s32 %v1174, 127
        %v1176 = vand.u32 2147483647, %v542
        %v1177 = vand.u32 %v1176, 8388607
        %v1178 = vor.u32 %v1177, 8388608
        %v1179 = vsub.s32 0, %v1178
        %v1180 = vadd.s32 %v1175, 1
        %vm1181 = vcmp.gt.s32.totalorder %v1180, 0
        %v1182 = vsel %vm1181, %v1180, 0
        %v1183 = vshrl.u32 %v1182, 5
        %v1184 = vand.u32 %v1182, 31
        %v1185 = vsub.s32 32, %v1184
        %v1186 = vshrl.u32 683565275, %v1185
        %v1187 = vshll.u32 683565275, %v1184
        %v1188 = vshrl.u32 2475754826, %v1185
        %v1189 = vor.u32 %v1187, %v1188
        %v1190 = vshll.u32 2475754826, %v1184
        %v1191 = vshrl.u32 2131351028, %v1185
        %v1192 = vor.u32 %v1190, %v1191
        %v1193 = vshll.u32 2131351028, %v1184
        %v1194 = vshrl.u32 2102212464, %v1185
        %v1195 = vor.u32 %v1193, %v1194
        %v1196 = vshll.u32 2102212464, %v1184
        %v1197 = vshrl.u32 920167782, %v1185
        %v1198 = vor.u32 %v1196, %v1197
        %v1199 = vshll.u32 920167782, %v1184
        %v1200 = vshrl.u32 1326507024, %v1185
        %v1201 = vor.u32 %v1199, %v1200
        %vm1202 = vcmp.lt.s32.totalorder %v1183, 1
        %vm1203 = vcmp.lt.s32.totalorder %v1183, 2
        %vm1204 = vcmp.lt.s32.totalorder %v1183, 3
        %vm1205 = vcmp.lt.s32.totalorder %v1183, 4
        %v1206 = vsel %vm1202, %v1186, %v1189
        %v1207 = vsel %vm1205, %v1195, 2102212464
        %v1208 = vsel %vm1204, %v1192, %v1207
        %v1209 = vsel %vm1203, %v1206, %v1208
        %v1210 = vsel %vm1202, %v1189, %v1192
        %v1211 = vsel %vm1205, %v1198, 920167782
        %v1212 = vsel %vm1204, %v1195, %v1211
        %v1213 = vsel %vm1203, %v1210, %v1212
        %v1214 = vsel %vm1202, %v1192, %v1195
        %v1215 = vsel %vm1205, %v1201, 1326507024
        %v1216 = vsel %vm1204, %v1198, %v1215
        %v1217 = vsel %vm1203, %v1214, %v1216
        %v1218 = vshll.u32 %v1178, 8
        %v1219 = vmul.u32.u64.compose %v1218, %v1217
        %v1220 = vextract.low.u32 %v1219
        %v1221 = vextract.high.u32 %v1219
        %v1222 = vmul.u32.u64.compose %v1218, %v1213
        %v1223 = vextract.low.u32 %v1222
        %v1224 = vextract.high.u32 %v1222
        %v1225 = vmul.u32 %v1218, %v1209
        %v1226 = vadd.s32 %v1221, %v1223
        %vm1227 = vc.u32 %v1221, %v1223
        %v1228 = vadd.s32 %v1224, 1
        %v1229 = vsel %vm1227, %v1228, %v1224
        %v1230 = vadd.s32 %v1225, %v1229
        %v1231 = vadd.s32 %v1230, 536870912
        %v1232 = vshrl.u32 %v1231, 30
        %v1233 = vshll.u32 %v1232, 30
        %v1234 = vsub.s32 %v1230, %v1233
        %vm1235 = vcmp.lt.s32.totalorder %v1234, 0
        %v1236 = vsub.s32 0, %v1234
        %v1237 = vsel %vm1235, %v1236, %v1234
        %v1238 = vclz %v1237
        %v1239 = vsub.s32 %v1238, 2
        %vm1240 = vcmp.gt.s32.totalorder 0, %v1239
        %v1241 = vsel %vm1240, 0, %v1239
        %v1242 = vsub.s32 32, %v1241
        %v1243 = vshll.u32 %v1234, %v1241
        %v1244 = vshrl.u32 %v1226, %v1242
        %v1245 = vor.u32 %v1243, %v1244
        %v1246 = vsub.s32 4294967266, %v1241
        %v1247 = vadd.s32 %v1246, 127
        %v1248 = vshll.u32 %v1247, 23
        %v1249 = vor.u32 4788187, %v1248
        %v1250 = vand.u32 2147483647, %v1249
        %v1252 = vcvt.s32.f32 %v1245
        %v1253 = vmul.f32 %v1252, %v1250
        %v1254 = vxor.u32 %v1253, 2147483648
        %v1255 = vsel %vm1172, %v1254, %v1253
        %v1256 = vsub.s32 4, %v1232
        %v1257 = vsel %vm1172, %v1256, %v1232
        %v1258 = vsel %vm1171, %v542, %v1255
        %v1259 = vsel %vm1171, 0, %v1257
        %v1260 = vcosq.f32.pop %v1258
        %v1261 = vsinq.f32.pop %v1258
        %vm1262 = vweird.f32 %v542
        %v1263 = vand.u32 %v1259, 3
        %vm1264 = vcmp.lt.s32.totalorder %v1263, 2
        %vm1265 = vcmp.eq.s32.totalorder %v1263, 0
        %v1266 = vxor.u32 %v1261, 2147483648
        %v1267 = vsel %vm1265, %v1260, %v1266
        %vm1268 = vcmp.eq.s32.totalorder %v1263, 2
        %v1269 = vxor.u32 %v1260, 2147483648
        %v1270 = vsel %vm1268, %v1269, %v1261
        %v1271 = vsel %vm1264, %v1267, %v1270
        %v1272 = vsel %vm1262, nan, %v1271
        %v1273 = vand.u32 2147483647, %v543
        %vm1274 = vcmp.le.f32.partialorder %v1273, 0.7853982
        %vm1275 = vcmp.lt.s32.totalorder %v543, 0
        %v1276 = vand.u32 %v543, 2139095040
        %v1277 = vshrl.u32 %v1276, 23
        %v1278 = vsub.s32 %v1277, 127
        %v1279 = vand.u32 2147483647, %v543
        %v1280 = vand.u32 %v1279, 8388607
        %v1281 = vor.u32 %v1280, 8388608
        %v1282 = vsub.s32 0, %v1281
        %v1283 = vadd.s32 %v1278, 1
        %vm1284 = vcmp.gt.s32.totalorder %v1283, 0
        %v1285 = vsel %vm1284, %v1283, 0
        %v1286 = vshrl.u32 %v1285, 5
        %v1287 = vand.u32 %v1285, 31
        %v1288 = vsub.s32 32, %v1287
        %v1289 = vshrl.u32 683565275, %v1288
        %v1290 = vshll.u32 683565275, %v1287
        %v1291 = vshrl.u32 2475754826, %v1288
        %v1292 = vor.u32 %v1290, %v1291
        %v1293 = vshll.u32 2475754826, %v1287
        %v1294 = vshrl.u32 2131351028, %v1288
        %v1295 = vor.u32 %v1293, %v1294
        %v1296 = vshll.u32 2131351028, %v1287
        %v1297 = vshrl.u32 2102212464, %v1288
        %v1298 = vor.u32 %v1296, %v1297
        %v1299 = vshll.u32 2102212464, %v1287
        %v1300 = vshrl.u32 920167782, %v1288
        %v1301 = vor.u32 %v1299, %v1300
        %v1302 = vshll.u32 920167782, %v1287
        %v1303 = vshrl.u32 1326507024, %v1288
        %v1304 = vor.u32 %v1302, %v1303
        %vm1305 = vcmp.lt.s32.totalorder %v1286, 1
        %vm1306 = vcmp.lt.s32.totalorder %v1286, 2
        %vm1307 = vcmp.lt.s32.totalorder %v1286, 3
        %vm1308 = vcmp.lt.s32.totalorder %v1286, 4
        %v1309 = vsel %vm1305, %v1289, %v1292
        %v1310 = vsel %vm1308, %v1298, 2102212464
        %v1311 = vsel %vm1307, %v1295, %v1310
        %v1312 = vsel %vm1306, %v1309, %v1311
        %v1313 = vsel %vm1305, %v1292, %v1295
        %v1314 = vsel %vm1308, %v1301, 920167782
        %v1315 = vsel %vm1307, %v1298, %v1314
        %v1316 = vsel %vm1306, %v1313, %v1315
        %v1317 = vsel %vm1305, %v1295, %v1298
        %v1318 = vsel %vm1308, %v1304, 1326507024
        %v1319 = vsel %vm1307, %v1301, %v1318
        %v1320 = vsel %vm1306, %v1317, %v1319
        %v1321 = vshll.u32 %v1281, 8
        %v1322 = vmul.u32.u64.compose %v1321, %v1320
        %v1323 = vextract.low.u32 %v1322
        %v1324 = vextract.high.u32 %v1322
        %v1325 = vmul.u32.u64.compose %v1321, %v1316
        %v1326 = vextract.low.u32 %v1325
        %v1327 = vextract.high.u32 %v1325
        %v1328 = vmul.u32 %v1321, %v1312
        %v1329 = vadd.s32 %v1324, %v1326
        %vm1330 = vc.u32 %v1324, %v1326
        %v1331 = vadd.s32 %v1327, 1
        %v1332 = vsel %vm1330, %v1331, %v1327
        %v1333 = vadd.s32 %v1328, %v1332
        %v1334 = vadd.s32 %v1333, 536870912
        %v1335 = vshrl.u32 %v1334, 30
        %v1336 = vshll.u32 %v1335, 30
        %v1337 = vsub.s32 %v1333, %v1336
        %vm1338 = vcmp.lt.s32.totalorder %v1337, 0
        %v1339 = vsub.s32 0, %v1337
        %v1340 = vsel %vm1338, %v1339, %v1337
        %v1341 = vclz %v1340
        %v1342 = vsub.s32 %v1341, 2
        %vm1343 = vcmp.gt.s32.totalorder 0, %v1342
        %v1344 = vsel %vm1343, 0, %v1342
        %v1345 = vsub.s32 32, %v1344
        %v1346 = vshll.u32 %v1337, %v1344
        %v1347 = vshrl.u32 %v1329, %v1345
        %v1348 = vor.u32 %v1346, %v1347
        %v1349 = vsub.s32 4294967266, %v1344
        %v1350 = vadd.s32 %v1349, 127
        %v1351 = vshll.u32 %v1350, 23
        %v1352 = vor.u32 4788187, %v1351
        %v1353 = vand.u32 2147483647, %v1352
        %v1355 = vcvt.s32.f32 %v1348
        %v1356 = vmul.f32 %v1355, %v1353
        %v1357 = vxor.u32 %v1356, 2147483648
        %v1358 = vsel %vm1275, %v1357, %v1356
        %v1359 = vsub.s32 4, %v1335
        %v1360 = vsel %vm1275, %v1359, %v1335
        %v1361 = vsel %vm1274, %v543, %v1358
        %v1362 = vsel %vm1274, 0, %v1360
        %v1363 = vcosq.f32.pop %v1361
        %v1364 = vsinq.f32.pop %v1361
        %vm1365 = vweird.f32 %v543
        %v1366 = vand.u32 %v1362, 3
        %vm1367 = vcmp.lt.s32.totalorder %v1366, 2
        %vm1368 = vcmp.eq.s32.totalorder %v1366, 0
        %v1369 = vxor.u32 %v1364, 2147483648
        %v1370 = vsel %vm1368, %v1363, %v1369
        %vm1371 = vcmp.eq.s32.totalorder %v1366, 2
        %v1372 = vxor.u32 %v1363, 2147483648
        %v1373 = vsel %vm1371, %v1372, %v1364
        %v1374 = vsel %vm1367, %v1370, %v1373
        %v1375 = vsel %vm1365, nan, %v1374
        %v1376 = vand.u32 2147483647, %v544
        %vm1377 = vcmp.le.f32.partialorder %v1376, 0.7853982
        %vm1378 = vcmp.lt.s32.totalorder %v544, 0
        %v1379 = vand.u32 %v544, 2139095040
        %v1380 = vshrl.u32 %v1379, 23
        %v1381 = vsub.s32 %v1380, 127
        %v1382 = vand.u32 2147483647, %v544
        %v1383 = vand.u32 %v1382, 8388607
        %v1384 = vor.u32 %v1383, 8388608
        %v1385 = vsub.s32 0, %v1384
        %v1386 = vadd.s32 %v1381, 1
        %vm1387 = vcmp.gt.s32.totalorder %v1386, 0
        %v1388 = vsel %vm1387, %v1386, 0
        %v1389 = vshrl.u32 %v1388, 5
        %v1390 = vand.u32 %v1388, 31
        %v1391 = vsub.s32 32, %v1390
        %v1392 = vshrl.u32 683565275, %v1391
        %v1393 = vshll.u32 683565275, %v1390
        %v1394 = vshrl.u32 2475754826, %v1391
        %v1395 = vor.u32 %v1393, %v1394
        %v1396 = vshll.u32 2475754826, %v1390
        %v1397 = vshrl.u32 2131351028, %v1391
        %v1398 = vor.u32 %v1396, %v1397
        %v1399 = vshll.u32 2131351028, %v1390
        %v1400 = vshrl.u32 2102212464, %v1391
        %v1401 = vor.u32 %v1399, %v1400
        %v1402 = vshll.u32 2102212464, %v1390
        %v1403 = vshrl.u32 920167782, %v1391
        %v1404 = vor.u32 %v1402, %v1403
        %v1405 = vshll.u32 920167782, %v1390
        %v1406 = vshrl.u32 1326507024, %v1391
        %v1407 = vor.u32 %v1405, %v1406
        %vm1408 = vcmp.lt.s32.totalorder %v1389, 1
        %vm1409 = vcmp.lt.s32.totalorder %v1389, 2
        %vm1410 = vcmp.lt.s32.totalorder %v1389, 3
        %vm1411 = vcmp.lt.s32.totalorder %v1389, 4
        %v1412 = vsel %vm1408, %v1392, %v1395
        %v1413 = vsel %vm1411, %v1401, 2102212464
        %v1414 = vsel %vm1410, %v1398, %v1413
        %v1415 = vsel %vm1409, %v1412, %v1414
        %v1416 = vsel %vm1408, %v1395, %v1398
        %v1417 = vsel %vm1411, %v1404, 920167782
        %v1418 = vsel %vm1410, %v1401, %v1417
        %v1419 = vsel %vm1409, %v1416, %v1418
        %v1420 = vsel %vm1408, %v1398, %v1401
        %v1421 = vsel %vm1411, %v1407, 1326507024
        %v1422 = vsel %vm1410, %v1404, %v1421
        %v1423 = vsel %vm1409, %v1420, %v1422
        %v1424 = vshll.u32 %v1384, 8
        %v1425 = vmul.u32.u64.compose %v1424, %v1423
        %v1426 = vextract.low.u32 %v1425
        %v1427 = vextract.high.u32 %v1425
        %v1428 = vmul.u32.u64.compose %v1424, %v1419
        %v1429 = vextract.low.u32 %v1428
        %v1430 = vextract.high.u32 %v1428
        %v1431 = vmul.u32 %v1424, %v1415
        %v1432 = vadd.s32 %v1427, %v1429
        %vm1433 = vc.u32 %v1427, %v1429
        %v1434 = vadd.s32 %v1430, 1
        %v1435 = vsel %vm1433, %v1434, %v1430
        %v1436 = vadd.s32 %v1431, %v1435
        %v1437 = vadd.s32 %v1436, 536870912
        %v1438 = vshrl.u32 %v1437, 30
        %v1439 = vshll.u32 %v1438, 30
        %v1440 = vsub.s32 %v1436, %v1439
        %vm1441 = vcmp.lt.s32.totalorder %v1440, 0
        %v1442 = vsub.s32 0, %v1440
        %v1443 = vsel %vm1441, %v1442, %v1440
        %v1444 = vclz %v1443
        %v1445 = vsub.s32 %v1444, 2
        %vm1446 = vcmp.gt.s32.totalorder 0, %v1445
        %v1447 = vsel %vm1446, 0, %v1445
        %v1448 = vsub.s32 32, %v1447
        %v1449 = vshll.u32 %v1440, %v1447
        %v1450 = vshrl.u32 %v1432, %v1448
        %v1451 = vor.u32 %v1449, %v1450
        %v1452 = vsub.s32 4294967266, %v1447
        %v1453 = vadd.s32 %v1452, 127
        %v1454 = vshll.u32 %v1453, 23
        %v1455 = vor.u32 4788187, %v1454
        %v1456 = vand.u32 2147483647, %v1455
        %v1458 = vcvt.s32.f32 %v1451
        %v1459 = vmul.f32 %v1458, %v1456
        %v1460 = vxor.u32 %v1459, 2147483648
        %v1461 = vsel %vm1378, %v1460, %v1459
        %v1462 = vsub.s32 4, %v1438
        %v1463 = vsel %vm1378, %v1462, %v1438
        %v1464 = vsel %vm1377, %v544, %v1461
        %v1465 = vsel %vm1377, 0, %v1463
        %v1466 = vcosq.f32.pop %v1464
        %v1467 = vsinq.f32.pop %v1464
        %vm1468 = vweird.f32 %v544
        %v1469 = vand.u32 %v1465, 3
        %vm1470 = vcmp.lt.s32.totalorder %v1469, 2
        %vm1471 = vcmp.eq.s32.totalorder %v1469, 0
        %v1472 = vxor.u32 %v1467, 2147483648
        %v1473 = vsel %vm1471, %v1466, %v1472
        %vm1474 = vcmp.eq.s32.totalorder %v1469, 2
        %v1475 = vxor.u32 %v1466, 2147483648
        %v1476 = vsel %vm1474, %v1475, %v1467
        %v1477 = vsel %vm1470, %v1473, %v1476
        %v1478 = vsel %vm1468, nan, %v1477
        %v1479 = vand.u32 2147483647, %v545
        %vm1480 = vcmp.le.f32.partialorder %v1479, 0.7853982
        %vm1481 = vcmp.lt.s32.totalorder %v545, 0
        %v1482 = vand.u32 %v545, 2139095040
        %v1483 = vshrl.u32 %v1482, 23
        %v1484 = vsub.s32 %v1483, 127
        %v1485 = vand.u32 2147483647, %v545
        %v1486 = vand.u32 %v1485, 8388607
        %v1487 = vor.u32 %v1486, 8388608
        %v1488 = vsub.s32 0, %v1487
        %v1489 = vadd.s32 %v1484, 1
        %vm1490 = vcmp.gt.s32.totalorder %v1489, 0
        %v1491 = vsel %vm1490, %v1489, 0
        %v1492 = vshrl.u32 %v1491, 5
        %v1493 = vand.u32 %v1491, 31
        %v1494 = vsub.s32 32, %v1493
        %v1495 = vshrl.u32 683565275, %v1494
        %v1496 = vshll.u32 683565275, %v1493
        %v1497 = vshrl.u32 2475754826, %v1494
        %v1498 = vor.u32 %v1496, %v1497
        %v1499 = vshll.u32 2475754826, %v1493
        %v1500 = vshrl.u32 2131351028, %v1494
        %v1501 = vor.u32 %v1499, %v1500
        %v1502 = vshll.u32 2131351028, %v1493
        %v1503 = vshrl.u32 2102212464, %v1494
        %v1504 = vor.u32 %v1502, %v1503
        %v1505 = vshll.u32 2102212464, %v1493
        %v1506 = vshrl.u32 920167782, %v1494
        %v1507 = vor.u32 %v1505, %v1506
        %v1508 = vshll.u32 920167782, %v1493
        %v1509 = vshrl.u32 1326507024, %v1494
        %v1510 = vor.u32 %v1508, %v1509
        %vm1511 = vcmp.lt.s32.totalorder %v1492, 1
        %vm1512 = vcmp.lt.s32.totalorder %v1492, 2
        %vm1513 = vcmp.lt.s32.totalorder %v1492, 3
        %vm1514 = vcmp.lt.s32.totalorder %v1492, 4
        %v1515 = vsel %vm1511, %v1495, %v1498
        %v1516 = vsel %vm1514, %v1504, 2102212464
        %v1517 = vsel %vm1513, %v1501, %v1516
        %v1518 = vsel %vm1512, %v1515, %v1517
        %v1519 = vsel %vm1511, %v1498, %v1501
        %v1520 = vsel %vm1514, %v1507, 920167782
        %v1521 = vsel %vm1513, %v1504, %v1520
        %v1522 = vsel %vm1512, %v1519, %v1521
        %v1523 = vsel %vm1511, %v1501, %v1504
        %v1524 = vsel %vm1514, %v1510, 1326507024
        %v1525 = vsel %vm1513, %v1507, %v1524
        %v1526 = vsel %vm1512, %v1523, %v1525
        %v1527 = vshll.u32 %v1487, 8
        %v1528 = vmul.u32.u64.compose %v1527, %v1526
        %v1529 = vextract.low.u32 %v1528
        %v1530 = vextract.high.u32 %v1528
        %v1531 = vmul.u32.u64.compose %v1527, %v1522
        %v1532 = vextract.low.u32 %v1531
        %v1533 = vextract.high.u32 %v1531
        %v1534 = vmul.u32 %v1527, %v1518
        %v1535 = vadd.s32 %v1530, %v1532
        %vm1536 = vc.u32 %v1530, %v1532
        %v1537 = vadd.s32 %v1533, 1
        %v1538 = vsel %vm1536, %v1537, %v1533
        %v1539 = vadd.s32 %v1534, %v1538
        %v1540 = vadd.s32 %v1539, 536870912
        %v1541 = vshrl.u32 %v1540, 30
        %v1542 = vshll.u32 %v1541, 30
        %v1543 = vsub.s32 %v1539, %v1542
        %vm1544 = vcmp.lt.s32.totalorder %v1543, 0
        %v1545 = vsub.s32 0, %v1543
        %v1546 = vsel %vm1544, %v1545, %v1543
        %v1547 = vclz %v1546
        %v1548 = vsub.s32 %v1547, 2
        %vm1549 = vcmp.gt.s32.totalorder 0, %v1548
        %v1550 = vsel %vm1549, 0, %v1548
        %v1551 = vsub.s32 32, %v1550
        %v1552 = vshll.u32 %v1543, %v1550
        %v1553 = vshrl.u32 %v1535, %v1551
        %v1554 = vor.u32 %v1552, %v1553
        %v1555 = vsub.s32 4294967266, %v1550
        %v1556 = vadd.s32 %v1555, 127
        %v1557 = vshll.u32 %v1556, 23
        %v1558 = vor.u32 4788187, %v1557
        %v1559 = vand.u32 2147483647, %v1558
        %v1561 = vcvt.s32.f32 %v1554
        %v1562 = vmul.f32 %v1561, %v1559
        %v1563 = vxor.u32 %v1562, 2147483648
        %v1564 = vsel %vm1481, %v1563, %v1562
        %v1565 = vsub.s32 4, %v1541
        %v1566 = vsel %vm1481, %v1565, %v1541
        %v1567 = vsel %vm1480, %v545, %v1564
        %v1568 = vsel %vm1480, 0, %v1566
        %v1569 = vcosq.f32.pop %v1567
        %v1570 = vsinq.f32.pop %v1567
        %vm1571 = vweird.f32 %v545
        %v1572 = vand.u32 %v1568, 3
        %vm1573 = vcmp.lt.s32.totalorder %v1572, 2
        %vm1574 = vcmp.eq.s32.totalorder %v1572, 0
        %v1575 = vxor.u32 %v1570, 2147483648
        %v1576 = vsel %vm1574, %v1569, %v1575
        %vm1577 = vcmp.eq.s32.totalorder %v1572, 2
        %v1578 = vxor.u32 %v1569, 2147483648
        %v1579 = vsel %vm1577, %v1578, %v1570
        %v1580 = vsel %vm1573, %v1576, %v1579
        %v1581 = vsel %vm1571, nan, %v1580
        %v1582 = vand.u32 2147483647, %v546
        %vm1583 = vcmp.le.f32.partialorder %v1582, 0.7853982
        %vm1584 = vcmp.lt.s32.totalorder %v546, 0
        %v1585 = vand.u32 %v546, 2139095040
        %v1586 = vshrl.u32 %v1585, 23
        %v1587 = vsub.s32 %v1586, 127
        %v1588 = vand.u32 2147483647, %v546
        %v1589 = vand.u32 %v1588, 8388607
        %v1590 = vor.u32 %v1589, 8388608
        %v1591 = vsub.s32 0, %v1590
        %v1592 = vadd.s32 %v1587, 1
        %vm1593 = vcmp.gt.s32.totalorder %v1592, 0
        %v1594 = vsel %vm1593, %v1592, 0
        %v1595 = vshrl.u32 %v1594, 5
        %v1596 = vand.u32 %v1594, 31
        %v1597 = vsub.s32 32, %v1596
        %v1598 = vshrl.u32 683565275, %v1597
        %v1599 = vshll.u32 683565275, %v1596
        %v1600 = vshrl.u32 2475754826, %v1597
        %v1601 = vor.u32 %v1599, %v1600
        %v1602 = vshll.u32 2475754826, %v1596
        %v1603 = vshrl.u32 2131351028, %v1597
        %v1604 = vor.u32 %v1602, %v1603
        %v1605 = vshll.u32 2131351028, %v1596
        %v1606 = vshrl.u32 2102212464, %v1597
        %v1607 = vor.u32 %v1605, %v1606
        %v1608 = vshll.u32 2102212464, %v1596
        %v1609 = vshrl.u32 920167782, %v1597
        %v1610 = vor.u32 %v1608, %v1609
        %v1611 = vshll.u32 920167782, %v1596
        %v1612 = vshrl.u32 1326507024, %v1597
        %v1613 = vor.u32 %v1611, %v1612
        %vm1614 = vcmp.lt.s32.totalorder %v1595, 1
        %vm1615 = vcmp.lt.s32.totalorder %v1595, 2
        %vm1616 = vcmp.lt.s32.totalorder %v1595, 3
        %vm1617 = vcmp.lt.s32.totalorder %v1595, 4
        %v1618 = vsel %vm1614, %v1598, %v1601
        %v1619 = vsel %vm1617, %v1607, 2102212464
        %v1620 = vsel %vm1616, %v1604, %v1619
        %v1621 = vsel %vm1615, %v1618, %v1620
        %v1622 = vsel %vm1614, %v1601, %v1604
        %v1623 = vsel %vm1617, %v1610, 920167782
        %v1624 = vsel %vm1616, %v1607, %v1623
        %v1625 = vsel %vm1615, %v1622, %v1624
        %v1626 = vsel %vm1614, %v1604, %v1607
        %v1627 = vsel %vm1617, %v1613, 1326507024
        %v1628 = vsel %vm1616, %v1610, %v1627
        %v1629 = vsel %vm1615, %v1626, %v1628
        %v1630 = vshll.u32 %v1590, 8
        %v1631 = vmul.u32.u64.compose %v1630, %v1629
        %v1632 = vextract.low.u32 %v1631
        %v1633 = vextract.high.u32 %v1631
        %v1634 = vmul.u32.u64.compose %v1630, %v1625
        %v1635 = vextract.low.u32 %v1634
        %v1636 = vextract.high.u32 %v1634
        %v1637 = vmul.u32 %v1630, %v1621
        %v1638 = vadd.s32 %v1633, %v1635
        %vm1639 = vc.u32 %v1633, %v1635
        %v1640 = vadd.s32 %v1636, 1
        %v1641 = vsel %vm1639, %v1640, %v1636
        %v1642 = vadd.s32 %v1637, %v1641
        %v1643 = vadd.s32 %v1642, 536870912
        %v1644 = vshrl.u32 %v1643, 30
        %v1645 = vshll.u32 %v1644, 30
        %v1646 = vsub.s32 %v1642, %v1645
        %vm1647 = vcmp.lt.s32.totalorder %v1646, 0
        %v1648 = vsub.s32 0, %v1646
        %v1649 = vsel %vm1647, %v1648, %v1646
        %v1650 = vclz %v1649
        %v1651 = vsub.s32 %v1650, 2
        %vm1652 = vcmp.gt.s32.totalorder 0, %v1651
        %v1653 = vsel %vm1652, 0, %v1651
        %v1654 = vsub.s32 32, %v1653
        %v1655 = vshll.u32 %v1646, %v1653
        %v1656 = vshrl.u32 %v1638, %v1654
        %v1657 = vor.u32 %v1655, %v1656
        %v1658 = vsub.s32 4294967266, %v1653
        %v1659 = vadd.s32 %v1658, 127
        %v1660 = vshll.u32 %v1659, 23
        %v1661 = vor.u32 4788187, %v1660
        %v1662 = vand.u32 2147483647, %v1661
        %v1664 = vcvt.s32.f32 %v1657
        %v1665 = vmul.f32 %v1664, %v1662
        %v1666 = vxor.u32 %v1665, 2147483648
        %v1667 = vsel %vm1584, %v1666, %v1665
        %v1668 = vsub.s32 4, %v1644
        %v1669 = vsel %vm1584, %v1668, %v1644
        %v1670 = vsel %vm1583, %v546, %v1667
        %v1671 = vsel %vm1583, 0, %v1669
        %v1672 = vcosq.f32.pop %v1670
        %v1673 = vsinq.f32.pop %v1670
        %vm1674 = vweird.f32 %v546
        %v1675 = vand.u32 %v1671, 3
        %vm1676 = vcmp.lt.s32.totalorder %v1675, 2
        %vm1677 = vcmp.eq.s32.totalorder %v1675, 0
        %v1678 = vxor.u32 %v1673, 2147483648
        %v1679 = vsel %vm1677, %v1672, %v1678
        %vm1680 = vcmp.eq.s32.totalorder %v1675, 2
        %v1681 = vxor.u32 %v1672, 2147483648
        %v1682 = vsel %vm1680, %v1681, %v1673
        %v1683 = vsel %vm1676, %v1679, %v1682
        %v1684 = vsel %vm1674, nan, %v1683
        %v1685 = vand.u32 2147483647, %v547
        %vm1686 = vcmp.le.f32.partialorder %v1685, 0.7853982
        %vm1687 = vcmp.lt.s32.totalorder %v547, 0
        %v1688 = vand.u32 %v547, 2139095040
        %v1689 = vshrl.u32 %v1688, 23
        %v1690 = vsub.s32 %v1689, 127
        %v1691 = vand.u32 2147483647, %v547
        %v1692 = vand.u32 %v1691, 8388607
        %v1693 = vor.u32 %v1692, 8388608
        %v1694 = vsub.s32 0, %v1693
        %v1695 = vadd.s32 %v1690, 1
        %vm1696 = vcmp.gt.s32.totalorder %v1695, 0
        %v1697 = vsel %vm1696, %v1695, 0
        %v1698 = vshrl.u32 %v1697, 5
        %v1699 = vand.u32 %v1697, 31
        %v1700 = vsub.s32 32, %v1699
        %v1701 = vshrl.u32 683565275, %v1700
        %v1702 = vshll.u32 683565275, %v1699
        %v1703 = vshrl.u32 2475754826, %v1700
        %v1704 = vor.u32 %v1702, %v1703
        %v1705 = vshll.u32 2475754826, %v1699
        %v1706 = vshrl.u32 2131351028, %v1700
        %v1707 = vor.u32 %v1705, %v1706
        %v1708 = vshll.u32 2131351028, %v1699
        %v1709 = vshrl.u32 2102212464, %v1700
        %v1710 = vor.u32 %v1708, %v1709
        %v1711 = vshll.u32 2102212464, %v1699
        %v1712 = vshrl.u32 920167782, %v1700
        %v1713 = vor.u32 %v1711, %v1712
        %v1714 = vshll.u32 920167782, %v1699
        %v1715 = vshrl.u32 1326507024, %v1700
        %v1716 = vor.u32 %v1714, %v1715
        %vm1717 = vcmp.lt.s32.totalorder %v1698, 1
        %vm1718 = vcmp.lt.s32.totalorder %v1698, 2
        %vm1719 = vcmp.lt.s32.totalorder %v1698, 3
        %vm1720 = vcmp.lt.s32.totalorder %v1698, 4
        %v1721 = vsel %vm1717, %v1701, %v1704
        %v1722 = vsel %vm1720, %v1710, 2102212464
        %v1723 = vsel %vm1719, %v1707, %v1722
        %v1724 = vsel %vm1718, %v1721, %v1723
        %v1725 = vsel %vm1717, %v1704, %v1707
        %v1726 = vsel %vm1720, %v1713, 920167782
        %v1727 = vsel %vm1719, %v1710, %v1726
        %v1728 = vsel %vm1718, %v1725, %v1727
        %v1729 = vsel %vm1717, %v1707, %v1710
        %v1730 = vsel %vm1720, %v1716, 1326507024
        %v1731 = vsel %vm1719, %v1713, %v1730
        %v1732 = vsel %vm1718, %v1729, %v1731
        %v1733 = vshll.u32 %v1693, 8
        %v1734 = vmul.u32.u64.compose %v1733, %v1732
        %v1735 = vextract.low.u32 %v1734
        %v1736 = vextract.high.u32 %v1734
        %v1737 = vmul.u32.u64.compose %v1733, %v1728
        %v1738 = vextract.low.u32 %v1737
        %v1739 = vextract.high.u32 %v1737
        %v1740 = vmul.u32 %v1733, %v1724
        %v1741 = vadd.s32 %v1736, %v1738
        %vm1742 = vc.u32 %v1736, %v1738
        %v1743 = vadd.s32 %v1739, 1
        %v1744 = vsel %vm1742, %v1743, %v1739
        %v1745 = vadd.s32 %v1740, %v1744
        %v1746 = vadd.s32 %v1745, 536870912
        %v1747 = vshrl.u32 %v1746, 30
        %v1748 = vshll.u32 %v1747, 30
        %v1749 = vsub.s32 %v1745, %v1748
        %vm1750 = vcmp.lt.s32.totalorder %v1749, 0
        %v1751 = vsub.s32 0, %v1749
        %v1752 = vsel %vm1750, %v1751, %v1749
        %v1753 = vclz %v1752
        %v1754 = vsub.s32 %v1753, 2
        %vm1755 = vcmp.gt.s32.totalorder 0, %v1754
        %v1756 = vsel %vm1755, 0, %v1754
        %v1757 = vsub.s32 32, %v1756
        %v1758 = vshll.u32 %v1749, %v1756
        %v1759 = vshrl.u32 %v1741, %v1757
        %v1760 = vor.u32 %v1758, %v1759
        %v1761 = vsub.s32 4294967266, %v1756
        %v1762 = vadd.s32 %v1761, 127
        %v1763 = vshll.u32 %v1762, 23
        %v1764 = vor.u32 4788187, %v1763
        %v1765 = vand.u32 2147483647, %v1764
        %v1767 = vcvt.s32.f32 %v1760
        %v1768 = vmul.f32 %v1767, %v1765
        %v1769 = vxor.u32 %v1768, 2147483648
        %v1770 = vsel %vm1687, %v1769, %v1768
        %v1771 = vsub.s32 4, %v1747
        %v1772 = vsel %vm1687, %v1771, %v1747
        %v1773 = vsel %vm1686, %v547, %v1770
        %v1774 = vsel %vm1686, 0, %v1772
        %v1775 = vcosq.f32.pop %v1773
        %v1776 = vsinq.f32.pop %v1773
        %vm1777 = vweird.f32 %v547
        %v1778 = vand.u32 %v1774, 3
        %vm1779 = vcmp.lt.s32.totalorder %v1778, 2
        %vm1780 = vcmp.eq.s32.totalorder %v1778, 0
        %v1781 = vxor.u32 %v1776, 2147483648
        %v1782 = vsel %vm1780, %v1775, %v1781
        %vm1783 = vcmp.eq.s32.totalorder %v1778, 2
        %v1784 = vxor.u32 %v1775, 2147483648
        %v1785 = vsel %vm1783, %v1784, %v1776
        %v1786 = vsel %vm1779, %v1782, %v1785
        %v1787 = vsel %vm1777, nan, %v1786
        %v1788 = vand.u32 2147483647, %v548
        %vm1789 = vcmp.le.f32.partialorder %v1788, 0.7853982
        %vm1790 = vcmp.lt.s32.totalorder %v548, 0
        %v1791 = vand.u32 %v548, 2139095040
        %v1792 = vshrl.u32 %v1791, 23
        %v1793 = vsub.s32 %v1792, 127
        %v1794 = vand.u32 2147483647, %v548
        %v1795 = vand.u32 %v1794, 8388607
        %v1796 = vor.u32 %v1795, 8388608
        %v1797 = vsub.s32 0, %v1796
        %v1798 = vadd.s32 %v1793, 1
        %vm1799 = vcmp.gt.s32.totalorder %v1798, 0
        %v1800 = vsel %vm1799, %v1798, 0
        %v1801 = vshrl.u32 %v1800, 5
        %v1802 = vand.u32 %v1800, 31
        %v1803 = vsub.s32 32, %v1802
        %v1804 = vshrl.u32 683565275, %v1803
        %v1805 = vshll.u32 683565275, %v1802
        %v1806 = vshrl.u32 2475754826, %v1803
        %v1807 = vor.u32 %v1805, %v1806
        %v1808 = vshll.u32 2475754826, %v1802
        %v1809 = vshrl.u32 2131351028, %v1803
        %v1810 = vor.u32 %v1808, %v1809
        %v1811 = vshll.u32 2131351028, %v1802
        %v1812 = vshrl.u32 2102212464, %v1803
        %v1813 = vor.u32 %v1811, %v1812
        %v1814 = vshll.u32 2102212464, %v1802
        %v1815 = vshrl.u32 920167782, %v1803
        %v1816 = vor.u32 %v1814, %v1815
        %v1817 = vshll.u32 920167782, %v1802
        %v1818 = vshrl.u32 1326507024, %v1803
        %v1819 = vor.u32 %v1817, %v1818
        %vm1820 = vcmp.lt.s32.totalorder %v1801, 1
        %vm1821 = vcmp.lt.s32.totalorder %v1801, 2
        %vm1822 = vcmp.lt.s32.totalorder %v1801, 3
        %vm1823 = vcmp.lt.s32.totalorder %v1801, 4
        %v1824 = vsel %vm1820, %v1804, %v1807
        %v1825 = vsel %vm1823, %v1813, 2102212464
        %v1826 = vsel %vm1822, %v1810, %v1825
        %v1827 = vsel %vm1821, %v1824, %v1826
        %v1828 = vsel %vm1820, %v1807, %v1810
        %v1829 = vsel %vm1823, %v1816, 920167782
        %v1830 = vsel %vm1822, %v1813, %v1829
        %v1831 = vsel %vm1821, %v1828, %v1830
        %v1832 = vsel %vm1820, %v1810, %v1813
        %v1833 = vsel %vm1823, %v1819, 1326507024
        %v1834 = vsel %vm1822, %v1816, %v1833
        %v1835 = vsel %vm1821, %v1832, %v1834
        %v1836 = vshll.u32 %v1796, 8
        %v1837 = vmul.u32.u64.compose %v1836, %v1835
        %v1838 = vextract.low.u32 %v1837
        %v1839 = vextract.high.u32 %v1837
        %v1840 = vmul.u32.u64.compose %v1836, %v1831
        %v1841 = vextract.low.u32 %v1840
        %v1842 = vextract.high.u32 %v1840
        %v1843 = vmul.u32 %v1836, %v1827
        %v1844 = vadd.s32 %v1839, %v1841
        %vm1845 = vc.u32 %v1839, %v1841
        %v1846 = vadd.s32 %v1842, 1
        %v1847 = vsel %vm1845, %v1846, %v1842
        %v1848 = vadd.s32 %v1843, %v1847
        %v1849 = vadd.s32 %v1848, 536870912
        %v1850 = vshrl.u32 %v1849, 30
        %v1851 = vshll.u32 %v1850, 30
        %v1852 = vsub.s32 %v1848, %v1851
        %vm1853 = vcmp.lt.s32.totalorder %v1852, 0
        %v1854 = vsub.s32 0, %v1852
        %v1855 = vsel %vm1853, %v1854, %v1852
        %v1856 = vclz %v1855
        %v1857 = vsub.s32 %v1856, 2
        %vm1858 = vcmp.gt.s32.totalorder 0, %v1857
        %v1859 = vsel %vm1858, 0, %v1857
        %v1860 = vsub.s32 32, %v1859
        %v1861 = vshll.u32 %v1852, %v1859
        %v1862 = vshrl.u32 %v1844, %v1860
        %v1863 = vor.u32 %v1861, %v1862
        %v1864 = vsub.s32 4294967266, %v1859
        %v1865 = vadd.s32 %v1864, 127
        %v1866 = vshll.u32 %v1865, 23
        %v1867 = vor.u32 4788187, %v1866
        %v1868 = vand.u32 2147483647, %v1867
        %v1870 = vcvt.s32.f32 %v1863
        %v1871 = vmul.f32 %v1870, %v1868
        %v1872 = vxor.u32 %v1871, 2147483648
        %v1873 = vsel %vm1790, %v1872, %v1871
        %v1874 = vsub.s32 4, %v1850
        %v1875 = vsel %vm1790, %v1874, %v1850
        %v1876 = vsel %vm1789, %v548, %v1873
        %v1877 = vsel %vm1789, 0, %v1875
        %v1878 = vcosq.f32.pop %v1876
        %v1879 = vsinq.f32.pop %v1876
        %vm1880 = vweird.f32 %v548
        %v1881 = vand.u32 %v1877, 3
        %vm1882 = vcmp.lt.s32.totalorder %v1881, 2
        %vm1883 = vcmp.eq.s32.totalorder %v1881, 0
        %v1884 = vxor.u32 %v1879, 2147483648
        %v1885 = vsel %vm1883, %v1878, %v1884
        %vm1886 = vcmp.eq.s32.totalorder %v1881, 2
        %v1887 = vxor.u32 %v1878, 2147483648
        %v1888 = vsel %vm1886, %v1887, %v1879
        %v1889 = vsel %vm1882, %v1885, %v1888
        %v1890 = vsel %vm1880, nan, %v1889
        %v1891 = vand.u32 2147483647, %v549
        %vm1892 = vcmp.le.f32.partialorder %v1891, 0.7853982
        %vm1893 = vcmp.lt.s32.totalorder %v549, 0
        %v1894 = vand.u32 %v549, 2139095040
        %v1895 = vshrl.u32 %v1894, 23
        %v1896 = vsub.s32 %v1895, 127
        %v1897 = vand.u32 2147483647, %v549
        %v1898 = vand.u32 %v1897, 8388607
        %v1899 = vor.u32 %v1898, 8388608
        %v1900 = vsub.s32 0, %v1899
        %v1901 = vadd.s32 %v1896, 1
        %vm1902 = vcmp.gt.s32.totalorder %v1901, 0
        %v1903 = vsel %vm1902, %v1901, 0
        %v1904 = vshrl.u32 %v1903, 5
        %v1905 = vand.u32 %v1903, 31
        %v1906 = vsub.s32 32, %v1905
        %v1907 = vshrl.u32 683565275, %v1906
        %v1908 = vshll.u32 683565275, %v1905
        %v1909 = vshrl.u32 2475754826, %v1906
        %v1910 = vor.u32 %v1908, %v1909
        %v1911 = vshll.u32 2475754826, %v1905
        %v1912 = vshrl.u32 2131351028, %v1906
        %v1913 = vor.u32 %v1911, %v1912
        %v1914 = vshll.u32 2131351028, %v1905
        %v1915 = vshrl.u32 2102212464, %v1906
        %v1916 = vor.u32 %v1914, %v1915
        %v1917 = vshll.u32 2102212464, %v1905
        %v1918 = vshrl.u32 920167782, %v1906
        %v1919 = vor.u32 %v1917, %v1918
        %v1920 = vshll.u32 920167782, %v1905
        %v1921 = vshrl.u32 1326507024, %v1906
        %v1922 = vor.u32 %v1920, %v1921
        %vm1923 = vcmp.lt.s32.totalorder %v1904, 1
        %vm1924 = vcmp.lt.s32.totalorder %v1904, 2
        %vm1925 = vcmp.lt.s32.totalorder %v1904, 3
        %vm1926 = vcmp.lt.s32.totalorder %v1904, 4
        %v1927 = vsel %vm1923, %v1907, %v1910
        %v1928 = vsel %vm1926, %v1916, 2102212464
        %v1929 = vsel %vm1925, %v1913, %v1928
        %v1930 = vsel %vm1924, %v1927, %v1929
        %v1931 = vsel %vm1923, %v1910, %v1913
        %v1932 = vsel %vm1926, %v1919, 920167782
        %v1933 = vsel %vm1925, %v1916, %v1932
        %v1934 = vsel %vm1924, %v1931, %v1933
        %v1935 = vsel %vm1923, %v1913, %v1916
        %v1936 = vsel %vm1926, %v1922, 1326507024
        %v1937 = vsel %vm1925, %v1919, %v1936
        %v1938 = vsel %vm1924, %v1935, %v1937
        %v1939 = vshll.u32 %v1899, 8
        %v1940 = vmul.u32.u64.compose %v1939, %v1938
        %v1941 = vextract.low.u32 %v1940
        %v1942 = vextract.high.u32 %v1940
        %v1943 = vmul.u32.u64.compose %v1939, %v1934
        %v1944 = vextract.low.u32 %v1943
        %v1945 = vextract.high.u32 %v1943
        %v1946 = vmul.u32 %v1939, %v1930
        %v1947 = vadd.s32 %v1942, %v1944
        %vm1948 = vc.u32 %v1942, %v1944
        %v1949 = vadd.s32 %v1945, 1
        %v1950 = vsel %vm1948, %v1949, %v1945
        %v1951 = vadd.s32 %v1946, %v1950
        %v1952 = vadd.s32 %v1951, 536870912
        %v1953 = vshrl.u32 %v1952, 30
        %v1954 = vshll.u32 %v1953, 30
        %v1955 = vsub.s32 %v1951, %v1954
        %vm1956 = vcmp.lt.s32.totalorder %v1955, 0
        %v1957 = vsub.s32 0, %v1955
        %v1958 = vsel %vm1956, %v1957, %v1955
        %v1959 = vclz %v1958
        %v1960 = vsub.s32 %v1959, 2
        %vm1961 = vcmp.gt.s32.totalorder 0, %v1960
        %v1962 = vsel %vm1961, 0, %v1960
        %v1963 = vsub.s32 32, %v1962
        %v1964 = vshll.u32 %v1955, %v1962
        %v1965 = vshrl.u32 %v1947, %v1963
        %v1966 = vor.u32 %v1964, %v1965
        %v1967 = vsub.s32 4294967266, %v1962
        %v1968 = vadd.s32 %v1967, 127
        %v1969 = vshll.u32 %v1968, 23
        %v1970 = vor.u32 4788187, %v1969
        %v1971 = vand.u32 2147483647, %v1970
        %v1973 = vcvt.s32.f32 %v1966
        %v1974 = vmul.f32 %v1973, %v1971
        %v1975 = vxor.u32 %v1974, 2147483648
        %v1976 = vsel %vm1893, %v1975, %v1974
        %v1977 = vsub.s32 4, %v1953
        %v1978 = vsel %vm1893, %v1977, %v1953
        %v1979 = vsel %vm1892, %v549, %v1976
        %v1980 = vsel %vm1892, 0, %v1978
        %v1981 = vcosq.f32.pop %v1979
        %v1982 = vsinq.f32.pop %v1979
        %vm1983 = vweird.f32 %v549
        %v1984 = vand.u32 %v1980, 3
        %vm1985 = vcmp.lt.s32.totalorder %v1984, 2
        %vm1986 = vcmp.eq.s32.totalorder %v1984, 0
        %v1987 = vxor.u32 %v1982, 2147483648
        %v1988 = vsel %vm1986, %v1981, %v1987
        %vm1989 = vcmp.eq.s32.totalorder %v1984, 2
        %v1990 = vxor.u32 %v1981, 2147483648
        %v1991 = vsel %vm1989, %v1990, %v1982
        %v1992 = vsel %vm1985, %v1988, %v1991
        %v1993 = vsel %vm1983, nan, %v1992
        %v1994 = vand.u32 2147483647, %v550
        %vm1995 = vcmp.le.f32.partialorder %v1994, 0.7853982
        %vm1996 = vcmp.lt.s32.totalorder %v550, 0
        %v1997 = vand.u32 %v550, 2139095040
        %v1998 = vshrl.u32 %v1997, 23
        %v1999 = vsub.s32 %v1998, 127
        %v2000 = vand.u32 2147483647, %v550
        %v2001 = vand.u32 %v2000, 8388607
        %v2002 = vor.u32 %v2001, 8388608
        %v2003 = vsub.s32 0, %v2002
        %v2004 = vadd.s32 %v1999, 1
        %vm2005 = vcmp.gt.s32.totalorder %v2004, 0
        %v2006 = vsel %vm2005, %v2004, 0
        %v2007 = vshrl.u32 %v2006, 5
        %v2008 = vand.u32 %v2006, 31
        %v2009 = vsub.s32 32, %v2008
        %v2010 = vshrl.u32 683565275, %v2009
        %v2011 = vshll.u32 683565275, %v2008
        %v2012 = vshrl.u32 2475754826, %v2009
        %v2013 = vor.u32 %v2011, %v2012
        %v2014 = vshll.u32 2475754826, %v2008
        %v2015 = vshrl.u32 2131351028, %v2009
        %v2016 = vor.u32 %v2014, %v2015
        %v2017 = vshll.u32 2131351028, %v2008
        %v2018 = vshrl.u32 2102212464, %v2009
        %v2019 = vor.u32 %v2017, %v2018
        %v2020 = vshll.u32 2102212464, %v2008
        %v2021 = vshrl.u32 920167782, %v2009
        %v2022 = vor.u32 %v2020, %v2021
        %v2023 = vshll.u32 920167782, %v2008
        %v2024 = vshrl.u32 1326507024, %v2009
        %v2025 = vor.u32 %v2023, %v2024
        %vm2026 = vcmp.lt.s32.totalorder %v2007, 1
        %vm2027 = vcmp.lt.s32.totalorder %v2007, 2
        %vm2028 = vcmp.lt.s32.totalorder %v2007, 3
        %vm2029 = vcmp.lt.s32.totalorder %v2007, 4
        %v2030 = vsel %vm2026, %v2010, %v2013
        %v2031 = vsel %vm2029, %v2019, 2102212464
        %v2032 = vsel %vm2028, %v2016, %v2031
        %v2033 = vsel %vm2027, %v2030, %v2032
        %v2034 = vsel %vm2026, %v2013, %v2016
        %v2035 = vsel %vm2029, %v2022, 920167782
        %v2036 = vsel %vm2028, %v2019, %v2035
        %v2037 = vsel %vm2027, %v2034, %v2036
        %v2038 = vsel %vm2026, %v2016, %v2019
        %v2039 = vsel %vm2029, %v2025, 1326507024
        %v2040 = vsel %vm2028, %v2022, %v2039
        %v2041 = vsel %vm2027, %v2038, %v2040
        %v2042 = vshll.u32 %v2002, 8
        %v2043 = vmul.u32.u64.compose %v2042, %v2041
        %v2044 = vextract.low.u32 %v2043
        %v2045 = vextract.high.u32 %v2043
        %v2046 = vmul.u32.u64.compose %v2042, %v2037
        %v2047 = vextract.low.u32 %v2046
        %v2048 = vextract.high.u32 %v2046
        %v2049 = vmul.u32 %v2042, %v2033
        %v2050 = vadd.s32 %v2045, %v2047
        %vm2051 = vc.u32 %v2045, %v2047
        %v2052 = vadd.s32 %v2048, 1
        %v2053 = vsel %vm2051, %v2052, %v2048
        %v2054 = vadd.s32 %v2049, %v2053
        %v2055 = vadd.s32 %v2054, 536870912
        %v2056 = vshrl.u32 %v2055, 30
        %v2057 = vshll.u32 %v2056, 30
        %v2058 = vsub.s32 %v2054, %v2057
        %vm2059 = vcmp.lt.s32.totalorder %v2058, 0
        %v2060 = vsub.s32 0, %v2058
        %v2061 = vsel %vm2059, %v2060, %v2058
        %v2062 = vclz %v2061
        %v2063 = vsub.s32 %v2062, 2
        %vm2064 = vcmp.gt.s32.totalorder 0, %v2063
        %v2065 = vsel %vm2064, 0, %v2063
        %v2066 = vsub.s32 32, %v2065
        %v2067 = vshll.u32 %v2058, %v2065
        %v2068 = vshrl.u32 %v2050, %v2066
        %v2069 = vor.u32 %v2067, %v2068
        %v2070 = vsub.s32 4294967266, %v2065
        %v2071 = vadd.s32 %v2070, 127
        %v2072 = vshll.u32 %v2071, 23
        %v2073 = vor.u32 4788187, %v2072
        %v2074 = vand.u32 2147483647, %v2073
        %v2076 = vcvt.s32.f32 %v2069
        %v2077 = vmul.f32 %v2076, %v2074
        %v2078 = vxor.u32 %v2077, 2147483648
        %v2079 = vsel %vm1996, %v2078, %v2077
        %v2080 = vsub.s32 4, %v2056
        %v2081 = vsel %vm1996, %v2080, %v2056
        %v2082 = vsel %vm1995, %v550, %v2079
        %v2083 = vsel %vm1995, 0, %v2081
        %v2084 = vcosq.f32.pop %v2082
        %v2085 = vsinq.f32.pop %v2082
        %vm2086 = vweird.f32 %v550
        %v2087 = vand.u32 %v2083, 3
        %vm2088 = vcmp.lt.s32.totalorder %v2087, 2
        %vm2089 = vcmp.eq.s32.totalorder %v2087, 0
        %v2090 = vxor.u32 %v2085, 2147483648
        %v2091 = vsel %vm2089, %v2084, %v2090
        %vm2092 = vcmp.eq.s32.totalorder %v2087, 2
        %v2093 = vxor.u32 %v2084, 2147483648
        %v2094 = vsel %vm2092, %v2093, %v2085
        %v2095 = vsel %vm2088, %v2091, %v2094
        %v2096 = vsel %vm2086, nan, %v2095
        %v2097 = vand.u32 2147483647, %v551
        %vm2098 = vcmp.le.f32.partialorder %v2097, 0.7853982
        %vm2099 = vcmp.lt.s32.totalorder %v551, 0
        %v2100 = vand.u32 %v551, 2139095040
        %v2101 = vshrl.u32 %v2100, 23
        %v2102 = vsub.s32 %v2101, 127
        %v2103 = vand.u32 2147483647, %v551
        %v2104 = vand.u32 %v2103, 8388607
        %v2105 = vor.u32 %v2104, 8388608
        %v2106 = vsub.s32 0, %v2105
        %v2107 = vadd.s32 %v2102, 1
        %vm2108 = vcmp.gt.s32.totalorder %v2107, 0
        %v2109 = vsel %vm2108, %v2107, 0
        %v2110 = vshrl.u32 %v2109, 5
        %v2111 = vand.u32 %v2109, 31
        %v2112 = vsub.s32 32, %v2111
        %v2113 = vshrl.u32 683565275, %v2112
        %v2114 = vshll.u32 683565275, %v2111
        %v2115 = vshrl.u32 2475754826, %v2112
        %v2116 = vor.u32 %v2114, %v2115
        %v2117 = vshll.u32 2475754826, %v2111
        %v2118 = vshrl.u32 2131351028, %v2112
        %v2119 = vor.u32 %v2117, %v2118
        %v2120 = vshll.u32 2131351028, %v2111
        %v2121 = vshrl.u32 2102212464, %v2112
        %v2122 = vor.u32 %v2120, %v2121
        %v2123 = vshll.u32 2102212464, %v2111
        %v2124 = vshrl.u32 920167782, %v2112
        %v2125 = vor.u32 %v2123, %v2124
        %v2126 = vshll.u32 920167782, %v2111
        %v2127 = vshrl.u32 1326507024, %v2112
        %v2128 = vor.u32 %v2126, %v2127
        %vm2129 = vcmp.lt.s32.totalorder %v2110, 1
        %vm2130 = vcmp.lt.s32.totalorder %v2110, 2
        %vm2131 = vcmp.lt.s32.totalorder %v2110, 3
        %vm2132 = vcmp.lt.s32.totalorder %v2110, 4
        %v2133 = vsel %vm2129, %v2113, %v2116
        %v2134 = vsel %vm2132, %v2122, 2102212464
        %v2135 = vsel %vm2131, %v2119, %v2134
        %v2136 = vsel %vm2130, %v2133, %v2135
        %v2137 = vsel %vm2129, %v2116, %v2119
        %v2138 = vsel %vm2132, %v2125, 920167782
        %v2139 = vsel %vm2131, %v2122, %v2138
        %v2140 = vsel %vm2130, %v2137, %v2139
        %v2141 = vsel %vm2129, %v2119, %v2122
        %v2142 = vsel %vm2132, %v2128, 1326507024
        %v2143 = vsel %vm2131, %v2125, %v2142
        %v2144 = vsel %vm2130, %v2141, %v2143
        %v2145 = vshll.u32 %v2105, 8
        %v2146 = vmul.u32.u64.compose %v2145, %v2144
        %v2147 = vextract.low.u32 %v2146
        %v2148 = vextract.high.u32 %v2146
        %v2149 = vmul.u32.u64.compose %v2145, %v2140
        %v2150 = vextract.low.u32 %v2149
        %v2151 = vextract.high.u32 %v2149
        %v2152 = vmul.u32 %v2145, %v2136
        %v2153 = vadd.s32 %v2148, %v2150
        %vm2154 = vc.u32 %v2148, %v2150
        %v2155 = vadd.s32 %v2151, 1
        %v2156 = vsel %vm2154, %v2155, %v2151
        %v2157 = vadd.s32 %v2152, %v2156
        %v2158 = vadd.s32 %v2157, 536870912
        %v2159 = vshrl.u32 %v2158, 30
        %v2160 = vshll.u32 %v2159, 30
        %v2161 = vsub.s32 %v2157, %v2160
        %vm2162 = vcmp.lt.s32.totalorder %v2161, 0
        %v2163 = vsub.s32 0, %v2161
        %v2164 = vsel %vm2162, %v2163, %v2161
        %v2165 = vclz %v2164
        %v2166 = vsub.s32 %v2165, 2
        %vm2167 = vcmp.gt.s32.totalorder 0, %v2166
        %v2168 = vsel %vm2167, 0, %v2166
        %v2169 = vsub.s32 32, %v2168
        %v2170 = vshll.u32 %v2161, %v2168
        %v2171 = vshrl.u32 %v2153, %v2169
        %v2172 = vor.u32 %v2170, %v2171
        %v2173 = vsub.s32 4294967266, %v2168
        %v2174 = vadd.s32 %v2173, 127
        %v2175 = vshll.u32 %v2174, 23
        %v2176 = vor.u32 4788187, %v2175
        %v2177 = vand.u32 2147483647, %v2176
        %v2179 = vcvt.s32.f32 %v2172
        %v2180 = vmul.f32 %v2179, %v2177
        %v2181 = vxor.u32 %v2180, 2147483648
        %v2182 = vsel %vm2099, %v2181, %v2180
        %v2183 = vsub.s32 4, %v2159
        %v2184 = vsel %vm2099, %v2183, %v2159
        %v2185 = vsel %vm2098, %v551, %v2182
        %v2186 = vsel %vm2098, 0, %v2184
        %v2187 = vcosq.f32.pop %v2185
        %v2188 = vsinq.f32.pop %v2185
        %vm2189 = vweird.f32 %v551
        %v2190 = vand.u32 %v2186, 3
        %vm2191 = vcmp.lt.s32.totalorder %v2190, 2
        %vm2192 = vcmp.eq.s32.totalorder %v2190, 0
        %v2193 = vxor.u32 %v2188, 2147483648
        %v2194 = vsel %vm2192, %v2187, %v2193
        %vm2195 = vcmp.eq.s32.totalorder %v2190, 2
        %v2196 = vxor.u32 %v2187, 2147483648
        %v2197 = vsel %vm2195, %v2196, %v2188
        %v2198 = vsel %vm2191, %v2194, %v2197
        %v2199 = vsel %vm2189, nan, %v2198
        %vm2200 = vcmask 130048
        %2201 = vst.msk [vmem:[%s208] sm:$0xff] %vm2200, %v654
        %2202 = vst.msk [vmem:[%s208 + $0x8] sm:$0xff] %vm2200, %v757
        %2203 = vst.msk [vmem:[%s208 + $0x10] sm:$0xff] %vm2200, %v860
        %2204 = vst.msk [vmem:[%s208 + $0x18] sm:$0xff] %vm2200, %v963
        %2205 = vst.msk [vmem:[%s208 + $0x20] sm:$0xff] %vm2200, %v1066
        %2206 = vst.msk [vmem:[%s208 + $0x28] sm:$0xff] %vm2200, %v1169
        %2207 = vst.msk [vmem:[%s208 + $0x30] sm:$0xff] %vm2200, %v1272
        %2208 = vst.msk [vmem:[%s208 + $0x38] sm:$0xff] %vm2200, %v1375
        %2209 = vst.msk [vmem:[%s208 + $0x40] sm:$0xff] %vm2200, %v1478
        %2210 = vst.msk [vmem:[%s208 + $0x48] sm:$0xff] %vm2200, %v1581
        %2211 = vst.msk [vmem:[%s208 + $0x50] sm:$0xff] %vm2200, %v1684
        %2212 = vst.msk [vmem:[%s208 + $0x58] sm:$0xff] %vm2200, %v1787
        %2213 = vst.msk [vmem:[%s208 + $0x60] sm:$0xff] %vm2200, %v1890
        %2214 = vst.msk [vmem:[%s208 + $0x68] sm:$0xff] %vm2200, %v1993
        %2215 = vst.msk [vmem:[%s208 + $0x70] sm:$0xff] %vm2200, %v2096
        %2216 = vst.msk [vmem:[%s208 + $0x78] sm:$0xff] %vm2200, %v2199
        %v2217 = vand.u32 2147483647, %v536
        %vm2218 = vcmp.le.f32.partialorder %v2217, 0.7853982
        %vm2219 = vcmp.lt.s32.totalorder %v536, 0
        %v2220 = vand.u32 %v536, 2139095040
        %v2221 = vshrl.u32 %v2220, 23
        %v2222 = vsub.s32 %v2221, 127
        %v2223 = vand.u32 2147483647, %v536
        %v2224 = vand.u32 %v2223, 8388607
        %v2225 = vor.u32 %v2224, 8388608
        %v2226 = vsub.s32 0, %v2225
        %v2227 = vadd.s32 %v2222, 1
        %vm2228 = vcmp.gt.s32.totalorder %v2227, 0
        %v2229 = vsel %vm2228, %v2227, 0
        %v2230 = vshrl.u32 %v2229, 5
        %v2231 = vand.u32 %v2229, 31
        %v2232 = vsub.s32 32, %v2231
        %v2233 = vshrl.u32 683565275, %v2232
        %v2234 = vshll.u32 683565275, %v2231
        %v2235 = vshrl.u32 2475754826, %v2232
        %v2236 = vor.u32 %v2234, %v2235
        %v2237 = vshll.u32 2475754826, %v2231
        %v2238 = vshrl.u32 2131351028, %v2232
        %v2239 = vor.u32 %v2237, %v2238
        %v2240 = vshll.u32 2131351028, %v2231
        %v2241 = vshrl.u32 2102212464, %v2232
        %v2242 = vor.u32 %v2240, %v2241
        %v2243 = vshll.u32 2102212464, %v2231
        %v2244 = vshrl.u32 920167782, %v2232
        %v2245 = vor.u32 %v2243, %v2244
        %v2246 = vshll.u32 920167782, %v2231
        %v2247 = vshrl.u32 1326507024, %v2232
        %v2248 = vor.u32 %v2246, %v2247
        %vm2249 = vcmp.lt.s32.totalorder %v2230, 1
        %vm2250 = vcmp.lt.s32.totalorder %v2230, 2
        %vm2251 = vcmp.lt.s32.totalorder %v2230, 3
        %vm2252 = vcmp.lt.s32.totalorder %v2230, 4
        %v2253 = vsel %vm2249, %v2233, %v2236
        %v2254 = vsel %vm2252, %v2242, 2102212464
        %v2255 = vsel %vm2251, %v2239, %v2254
        %v2256 = vsel %vm2250, %v2253, %v2255
        %v2257 = vsel %vm2249, %v2236, %v2239
        %v2258 = vsel %vm2252, %v2245, 920167782
        %v2259 = vsel %vm2251, %v2242, %v2258
        %v2260 = vsel %vm2250, %v2257, %v2259
        %v2261 = vsel %vm2249, %v2239, %v2242
        %v2262 = vsel %vm2252, %v2248, 1326507024
        %v2263 = vsel %vm2251, %v2245, %v2262
        %v2264 = vsel %vm2250, %v2261, %v2263
        %v2265 = vshll.u32 %v2225, 8
        %v2266 = vmul.u32.u64.compose %v2265, %v2264
        %v2267 = vextract.low.u32 %v2266
        %v2268 = vextract.high.u32 %v2266
        %v2269 = vmul.u32.u64.compose %v2265, %v2260
        %v2270 = vextract.low.u32 %v2269
        %v2271 = vextract.high.u32 %v2269
        %v2272 = vmul.u32 %v2265, %v2256
        %v2273 = vadd.s32 %v2268, %v2270
        %vm2274 = vc.u32 %v2268, %v2270
        %v2275 = vadd.s32 %v2271, 1
        %v2276 = vsel %vm2274, %v2275, %v2271
        %v2277 = vadd.s32 %v2272, %v2276
        %v2278 = vadd.s32 %v2277, 536870912
        %v2279 = vshrl.u32 %v2278, 30
        %v2280 = vshll.u32 %v2279, 30
        %v2281 = vsub.s32 %v2277, %v2280
        %vm2282 = vcmp.lt.s32.totalorder %v2281, 0
        %v2283 = vsub.s32 0, %v2281
        %v2284 = vsel %vm2282, %v2283, %v2281
        %v2285 = vclz %v2284
        %v2286 = vsub.s32 %v2285, 2
        %vm2287 = vcmp.gt.s32.totalorder 0, %v2286
        %v2288 = vsel %vm2287, 0, %v2286
        %v2289 = vsub.s32 32, %v2288
        %v2290 = vshll.u32 %v2281, %v2288
        %v2291 = vshrl.u32 %v2273, %v2289
        %v2292 = vor.u32 %v2290, %v2291
        %v2293 = vsub.s32 4294967266, %v2288
        %v2294 = vadd.s32 %v2293, 127
        %v2295 = vshll.u32 %v2294, 23
        %v2296 = vor.u32 4788187, %v2295
        %v2297 = vand.u32 2147483647, %v2296
        %v2299 = vcvt.s32.f32 %v2292
        %v2300 = vmul.f32 %v2299, %v2297
        %v2301 = vxor.u32 %v2300, 2147483648
        %v2302 = vsel %vm2219, %v2301, %v2300
        %v2303 = vsub.s32 4, %v2279
        %v2304 = vsel %vm2219, %v2303, %v2279
        %v2305 = vsel %vm2218, %v536, %v2302
        %v2306 = vsel %vm2218, 0, %v2304
        %v2307 = vcosq.f32.pop %v2305
        %v2308 = vsinq.f32.pop %v2305
        %vm2309 = vweird.f32 %v536
        %v2310 = vadd.s32 %v2306, 3
        %v2311 = vand.u32 %v2310, 3
        %vm2312 = vcmp.lt.s32.totalorder %v2311, 2
        %vm2313 = vcmp.eq.s32.totalorder %v2311, 0
        %v2314 = vxor.u32 %v2308, 2147483648
        %v2315 = vsel %vm2313, %v2307, %v2314
        %vm2316 = vcmp.eq.s32.totalorder %v2311, 2
        %v2317 = vxor.u32 %v2307, 2147483648
        %v2318 = vsel %vm2316, %v2317, %v2308
        %v2319 = vsel %vm2312, %v2315, %v2318
        %v2320 = vsel %vm2309, nan, %v2319
        %v2321 = vand.u32 2147483647, %v537
        %vm2322 = vcmp.le.f32.partialorder %v2321, 0.7853982
        %vm2323 = vcmp.lt.s32.totalorder %v537, 0
        %v2324 = vand.u32 %v537, 2139095040
        %v2325 = vshrl.u32 %v2324, 23
        %v2326 = vsub.s32 %v2325, 127
        %v2327 = vand.u32 2147483647, %v537
        %v2328 = vand.u32 %v2327, 8388607
        %v2329 = vor.u32 %v2328, 8388608
        %v2330 = vsub.s32 0, %v2329
        %v2331 = vadd.s32 %v2326, 1
        %vm2332 = vcmp.gt.s32.totalorder %v2331, 0
        %v2333 = vsel %vm2332, %v2331, 0
        %v2334 = vshrl.u32 %v2333, 5
        %v2335 = vand.u32 %v2333, 31
        %v2336 = vsub.s32 32, %v2335
        %v2337 = vshrl.u32 683565275, %v2336
        %v2338 = vshll.u32 683565275, %v2335
        %v2339 = vshrl.u32 2475754826, %v2336
        %v2340 = vor.u32 %v2338, %v2339
        %v2341 = vshll.u32 2475754826, %v2335
        %v2342 = vshrl.u32 2131351028, %v2336
        %v2343 = vor.u32 %v2341, %v2342
        %v2344 = vshll.u32 2131351028, %v2335
        %v2345 = vshrl.u32 2102212464, %v2336
        %v2346 = vor.u32 %v2344, %v2345
        %v2347 = vshll.u32 2102212464, %v2335
        %v2348 = vshrl.u32 920167782, %v2336
        %v2349 = vor.u32 %v2347, %v2348
        %v2350 = vshll.u32 920167782, %v2335
        %v2351 = vshrl.u32 1326507024, %v2336
        %v2352 = vor.u32 %v2350, %v2351
        %vm2353 = vcmp.lt.s32.totalorder %v2334, 1
        %vm2354 = vcmp.lt.s32.totalorder %v2334, 2
        %vm2355 = vcmp.lt.s32.totalorder %v2334, 3
        %vm2356 = vcmp.lt.s32.totalorder %v2334, 4
        %v2357 = vsel %vm2353, %v2337, %v2340
        %v2358 = vsel %vm2356, %v2346, 2102212464
        %v2359 = vsel %vm2355, %v2343, %v2358
        %v2360 = vsel %vm2354, %v2357, %v2359
        %v2361 = vsel %vm2353, %v2340, %v2343
        %v2362 = vsel %vm2356, %v2349, 920167782
        %v2363 = vsel %vm2355, %v2346, %v2362
        %v2364 = vsel %vm2354, %v2361, %v2363
        %v2365 = vsel %vm2353, %v2343, %v2346
        %v2366 = vsel %vm2356, %v2352, 1326507024
        %v2367 = vsel %vm2355, %v2349, %v2366
        %v2368 = vsel %vm2354, %v2365, %v2367
        %v2369 = vshll.u32 %v2329, 8
        %v2370 = vmul.u32.u64.compose %v2369, %v2368
        %v2371 = vextract.low.u32 %v2370
        %v2372 = vextract.high.u32 %v2370
        %v2373 = vmul.u32.u64.compose %v2369, %v2364
        %v2374 = vextract.low.u32 %v2373
        %v2375 = vextract.high.u32 %v2373
        %v2376 = vmul.u32 %v2369, %v2360
        %v2377 = vadd.s32 %v2372, %v2374
        %vm2378 = vc.u32 %v2372, %v2374
        %v2379 = vadd.s32 %v2375, 1
        %v2380 = vsel %vm2378, %v2379, %v2375
        %v2381 = vadd.s32 %v2376, %v2380
        %v2382 = vadd.s32 %v2381, 536870912
        %v2383 = vshrl.u32 %v2382, 30
        %v2384 = vshll.u32 %v2383, 30
        %v2385 = vsub.s32 %v2381, %v2384
        %vm2386 = vcmp.lt.s32.totalorder %v2385, 0
        %v2387 = vsub.s32 0, %v2385
        %v2388 = vsel %vm2386, %v2387, %v2385
        %v2389 = vclz %v2388
        %v2390 = vsub.s32 %v2389, 2
        %vm2391 = vcmp.gt.s32.totalorder 0, %v2390
        %v2392 = vsel %vm2391, 0, %v2390
        %v2393 = vsub.s32 32, %v2392
        %v2394 = vshll.u32 %v2385, %v2392
        %v2395 = vshrl.u32 %v2377, %v2393
        %v2396 = vor.u32 %v2394, %v2395
        %v2397 = vsub.s32 4294967266, %v2392
        %v2398 = vadd.s32 %v2397, 127
        %v2399 = vshll.u32 %v2398, 23
        %v2400 = vor.u32 4788187, %v2399
        %v2401 = vand.u32 2147483647, %v2400
        %v2403 = vcvt.s32.f32 %v2396
        %v2404 = vmul.f32 %v2403, %v2401
        %v2405 = vxor.u32 %v2404, 2147483648
        %v2406 = vsel %vm2323, %v2405, %v2404
        %v2407 = vsub.s32 4, %v2383
        %v2408 = vsel %vm2323, %v2407, %v2383
        %v2409 = vsel %vm2322, %v537, %v2406
        %v2410 = vsel %vm2322, 0, %v2408
        %v2411 = vcosq.f32.pop %v2409
        %v2412 = vsinq.f32.pop %v2409
        %vm2413 = vweird.f32 %v537
        %v2414 = vadd.s32 %v2410, 3
        %v2415 = vand.u32 %v2414, 3
        %vm2416 = vcmp.lt.s32.totalorder %v2415, 2
        %vm2417 = vcmp.eq.s32.totalorder %v2415, 0
        %v2418 = vxor.u32 %v2412, 2147483648
        %v2419 = vsel %vm2417, %v2411, %v2418
        %vm2420 = vcmp.eq.s32.totalorder %v2415, 2
        %v2421 = vxor.u32 %v2411, 2147483648
        %v2422 = vsel %vm2420, %v2421, %v2412
        %v2423 = vsel %vm2416, %v2419, %v2422
        %v2424 = vsel %vm2413, nan, %v2423
        %v2425 = vand.u32 2147483647, %v538
        %vm2426 = vcmp.le.f32.partialorder %v2425, 0.7853982
        %vm2427 = vcmp.lt.s32.totalorder %v538, 0
        %v2428 = vand.u32 %v538, 2139095040
        %v2429 = vshrl.u32 %v2428, 23
        %v2430 = vsub.s32 %v2429, 127
        %v2431 = vand.u32 2147483647, %v538
        %v2432 = vand.u32 %v2431, 8388607
        %v2433 = vor.u32 %v2432, 8388608
        %v2434 = vsub.s32 0, %v2433
        %v2435 = vadd.s32 %v2430, 1
        %vm2436 = vcmp.gt.s32.totalorder %v2435, 0
        %v2437 = vsel %vm2436, %v2435, 0
        %v2438 = vshrl.u32 %v2437, 5
        %v2439 = vand.u32 %v2437, 31
        %v2440 = vsub.s32 32, %v2439
        %v2441 = vshrl.u32 683565275, %v2440
        %v2442 = vshll.u32 683565275, %v2439
        %v2443 = vshrl.u32 2475754826, %v2440
        %v2444 = vor.u32 %v2442, %v2443
        %v2445 = vshll.u32 2475754826, %v2439
        %v2446 = vshrl.u32 2131351028, %v2440
        %v2447 = vor.u32 %v2445, %v2446
        %v2448 = vshll.u32 2131351028, %v2439
        %v2449 = vshrl.u32 2102212464, %v2440
        %v2450 = vor.u32 %v2448, %v2449
        %v2451 = vshll.u32 2102212464, %v2439
        %v2452 = vshrl.u32 920167782, %v2440
        %v2453 = vor.u32 %v2451, %v2452
        %v2454 = vshll.u32 920167782, %v2439
        %v2455 = vshrl.u32 1326507024, %v2440
        %v2456 = vor.u32 %v2454, %v2455
        %vm2457 = vcmp.lt.s32.totalorder %v2438, 1
        %vm2458 = vcmp.lt.s32.totalorder %v2438, 2
        %vm2459 = vcmp.lt.s32.totalorder %v2438, 3
        %vm2460 = vcmp.lt.s32.totalorder %v2438, 4
        %v2461 = vsel %vm2457, %v2441, %v2444
        %v2462 = vsel %vm2460, %v2450, 2102212464
        %v2463 = vsel %vm2459, %v2447, %v2462
        %v2464 = vsel %vm2458, %v2461, %v2463
        %v2465 = vsel %vm2457, %v2444, %v2447
        %v2466 = vsel %vm2460, %v2453, 920167782
        %v2467 = vsel %vm2459, %v2450, %v2466
        %v2468 = vsel %vm2458, %v2465, %v2467
        %v2469 = vsel %vm2457, %v2447, %v2450
        %v2470 = vsel %vm2460, %v2456, 1326507024
        %v2471 = vsel %vm2459, %v2453, %v2470
        %v2472 = vsel %vm2458, %v2469, %v2471
        %v2473 = vshll.u32 %v2433, 8
        %v2474 = vmul.u32.u64.compose %v2473, %v2472
        %v2475 = vextract.low.u32 %v2474
        %v2476 = vextract.high.u32 %v2474
        %v2477 = vmul.u32.u64.compose %v2473, %v2468
        %v2478 = vextract.low.u32 %v2477
        %v2479 = vextract.high.u32 %v2477
        %v2480 = vmul.u32 %v2473, %v2464
        %v2481 = vadd.s32 %v2476, %v2478
        %vm2482 = vc.u32 %v2476, %v2478
        %v2483 = vadd.s32 %v2479, 1
        %v2484 = vsel %vm2482, %v2483, %v2479
        %v2485 = vadd.s32 %v2480, %v2484
        %v2486 = vadd.s32 %v2485, 536870912
        %v2487 = vshrl.u32 %v2486, 30
        %v2488 = vshll.u32 %v2487, 30
        %v2489 = vsub.s32 %v2485, %v2488
        %vm2490 = vcmp.lt.s32.totalorder %v2489, 0
        %v2491 = vsub.s32 0, %v2489
        %v2492 = vsel %vm2490, %v2491, %v2489
        %v2493 = vclz %v2492
        %v2494 = vsub.s32 %v2493, 2
        %vm2495 = vcmp.gt.s32.totalorder 0, %v2494
        %v2496 = vsel %vm2495, 0, %v2494
        %v2497 = vsub.s32 32, %v2496
        %v2498 = vshll.u32 %v2489, %v2496
        %v2499 = vshrl.u32 %v2481, %v2497
        %v2500 = vor.u32 %v2498, %v2499
        %v2501 = vsub.s32 4294967266, %v2496
        %v2502 = vadd.s32 %v2501, 127
        %v2503 = vshll.u32 %v2502, 23
        %v2504 = vor.u32 4788187, %v2503
        %v2505 = vand.u32 2147483647, %v2504
        %v2507 = vcvt.s32.f32 %v2500
        %v2508 = vmul.f32 %v2507, %v2505
        %v2509 = vxor.u32 %v2508, 2147483648
        %v2510 = vsel %vm2427, %v2509, %v2508
        %v2511 = vsub.s32 4, %v2487
        %v2512 = vsel %vm2427, %v2511, %v2487
        %v2513 = vsel %vm2426, %v538, %v2510
        %v2514 = vsel %vm2426, 0, %v2512
        %v2515 = vcosq.f32.pop %v2513
        %v2516 = vsinq.f32.pop %v2513
        %vm2517 = vweird.f32 %v538
        %v2518 = vadd.s32 %v2514, 3
        %v2519 = vand.u32 %v2518, 3
        %vm2520 = vcmp.lt.s32.totalorder %v2519, 2
        %vm2521 = vcmp.eq.s32.totalorder %v2519, 0
        %v2522 = vxor.u32 %v2516, 2147483648
        %v2523 = vsel %vm2521, %v2515, %v2522
        %vm2524 = vcmp.eq.s32.totalorder %v2519, 2
        %v2525 = vxor.u32 %v2515, 2147483648
        %v2526 = vsel %vm2524, %v2525, %v2516
        %v2527 = vsel %vm2520, %v2523, %v2526
        %v2528 = vsel %vm2517, nan, %v2527
        %v2529 = vand.u32 2147483647, %v539
        %vm2530 = vcmp.le.f32.partialorder %v2529, 0.7853982
        %vm2531 = vcmp.lt.s32.totalorder %v539, 0
        %v2532 = vand.u32 %v539, 2139095040
        %v2533 = vshrl.u32 %v2532, 23
        %v2534 = vsub.s32 %v2533, 127
        %v2535 = vand.u32 2147483647, %v539
        %v2536 = vand.u32 %v2535, 8388607
        %v2537 = vor.u32 %v2536, 8388608
        %v2538 = vsub.s32 0, %v2537
        %v2539 = vadd.s32 %v2534, 1
        %vm2540 = vcmp.gt.s32.totalorder %v2539, 0
        %v2541 = vsel %vm2540, %v2539, 0
        %v2542 = vshrl.u32 %v2541, 5
        %v2543 = vand.u32 %v2541, 31
        %v2544 = vsub.s32 32, %v2543
        %v2545 = vshrl.u32 683565275, %v2544
        %v2546 = vshll.u32 683565275, %v2543
        %v2547 = vshrl.u32 2475754826, %v2544
        %v2548 = vor.u32 %v2546, %v2547
        %v2549 = vshll.u32 2475754826, %v2543
        %v2550 = vshrl.u32 2131351028, %v2544
        %v2551 = vor.u32 %v2549, %v2550
        %v2552 = vshll.u32 2131351028, %v2543
        %v2553 = vshrl.u32 2102212464, %v2544
        %v2554 = vor.u32 %v2552, %v2553
        %v2555 = vshll.u32 2102212464, %v2543
        %v2556 = vshrl.u32 920167782, %v2544
        %v2557 = vor.u32 %v2555, %v2556
        %v2558 = vshll.u32 920167782, %v2543
        %v2559 = vshrl.u32 1326507024, %v2544
        %v2560 = vor.u32 %v2558, %v2559
        %vm2561 = vcmp.lt.s32.totalorder %v2542, 1
        %vm2562 = vcmp.lt.s32.totalorder %v2542, 2
        %vm2563 = vcmp.lt.s32.totalorder %v2542, 3
        %vm2564 = vcmp.lt.s32.totalorder %v2542, 4
        %v2565 = vsel %vm2561, %v2545, %v2548
        %v2566 = vsel %vm2564, %v2554, 2102212464
        %v2567 = vsel %vm2563, %v2551, %v2566
        %v2568 = vsel %vm2562, %v2565, %v2567
        %v2569 = vsel %vm2561, %v2548, %v2551
        %v2570 = vsel %vm2564, %v2557, 920167782
        %v2571 = vsel %vm2563, %v2554, %v2570
        %v2572 = vsel %vm2562, %v2569, %v2571
        %v2573 = vsel %vm2561, %v2551, %v2554
        %v2574 = vsel %vm2564, %v2560, 1326507024
        %v2575 = vsel %vm2563, %v2557, %v2574
        %v2576 = vsel %vm2562, %v2573, %v2575
        %v2577 = vshll.u32 %v2537, 8
        %v2578 = vmul.u32.u64.compose %v2577, %v2576
        %v2579 = vextract.low.u32 %v2578
        %v2580 = vextract.high.u32 %v2578
        %v2581 = vmul.u32.u64.compose %v2577, %v2572
        %v2582 = vextract.low.u32 %v2581
        %v2583 = vextract.high.u32 %v2581
        %v2584 = vmul.u32 %v2577, %v2568
        %v2585 = vadd.s32 %v2580, %v2582
        %vm2586 = vc.u32 %v2580, %v2582
        %v2587 = vadd.s32 %v2583, 1
        %v2588 = vsel %vm2586, %v2587, %v2583
        %v2589 = vadd.s32 %v2584, %v2588
        %v2590 = vadd.s32 %v2589, 536870912
        %v2591 = vshrl.u32 %v2590, 30
        %v2592 = vshll.u32 %v2591, 30
        %v2593 = vsub.s32 %v2589, %v2592
        %vm2594 = vcmp.lt.s32.totalorder %v2593, 0
        %v2595 = vsub.s32 0, %v2593
        %v2596 = vsel %vm2594, %v2595, %v2593
        %v2597 = vclz %v2596
        %v2598 = vsub.s32 %v2597, 2
        %vm2599 = vcmp.gt.s32.totalorder 0, %v2598
        %v2600 = vsel %vm2599, 0, %v2598
        %v2601 = vsub.s32 32, %v2600
        %v2602 = vshll.u32 %v2593, %v2600
        %v2603 = vshrl.u32 %v2585, %v2601
        %v2604 = vor.u32 %v2602, %v2603
        %v2605 = vsub.s32 4294967266, %v2600
        %v2606 = vadd.s32 %v2605, 127
        %v2607 = vshll.u32 %v2606, 23
        %v2608 = vor.u32 4788187, %v2607
        %v2609 = vand.u32 2147483647, %v2608
        %v2611 = vcvt.s32.f32 %v2604
        %v2612 = vmul.f32 %v2611, %v2609
        %v2613 = vxor.u32 %v2612, 2147483648
        %v2614 = vsel %vm2531, %v2613, %v2612
        %v2615 = vsub.s32 4, %v2591
        %v2616 = vsel %vm2531, %v2615, %v2591
        %v2617 = vsel %vm2530, %v539, %v2614
        %v2618 = vsel %vm2530, 0, %v2616
        %v2619 = vcosq.f32.pop %v2617
        %v2620 = vsinq.f32.pop %v2617
        %vm2621 = vweird.f32 %v539
        %v2622 = vadd.s32 %v2618, 3
        %v2623 = vand.u32 %v2622, 3
        %vm2624 = vcmp.lt.s32.totalorder %v2623, 2
        %vm2625 = vcmp.eq.s32.totalorder %v2623, 0
        %v2626 = vxor.u32 %v2620, 2147483648
        %v2627 = vsel %vm2625, %v2619, %v2626
        %vm2628 = vcmp.eq.s32.totalorder %v2623, 2
        %v2629 = vxor.u32 %v2619, 2147483648
        %v2630 = vsel %vm2628, %v2629, %v2620
        %v2631 = vsel %vm2624, %v2627, %v2630
        %v2632 = vsel %vm2621, nan, %v2631
        %v2633 = vand.u32 2147483647, %v540
        %vm2634 = vcmp.le.f32.partialorder %v2633, 0.7853982
        %vm2635 = vcmp.lt.s32.totalorder %v540, 0
        %v2636 = vand.u32 %v540, 2139095040
        %v2637 = vshrl.u32 %v2636, 23
        %v2638 = vsub.s32 %v2637, 127
        %v2639 = vand.u32 2147483647, %v540
        %v2640 = vand.u32 %v2639, 8388607
        %v2641 = vor.u32 %v2640, 8388608
        %v2642 = vsub.s32 0, %v2641
        %v2643 = vadd.s32 %v2638, 1
        %vm2644 = vcmp.gt.s32.totalorder %v2643, 0
        %v2645 = vsel %vm2644, %v2643, 0
        %v2646 = vshrl.u32 %v2645, 5
        %v2647 = vand.u32 %v2645, 31
        %v2648 = vsub.s32 32, %v2647
        %v2649 = vshrl.u32 683565275, %v2648
        %v2650 = vshll.u32 683565275, %v2647
        %v2651 = vshrl.u32 2475754826, %v2648
        %v2652 = vor.u32 %v2650, %v2651
        %v2653 = vshll.u32 2475754826, %v2647
        %v2654 = vshrl.u32 2131351028, %v2648
        %v2655 = vor.u32 %v2653, %v2654
        %v2656 = vshll.u32 2131351028, %v2647
        %v2657 = vshrl.u32 2102212464, %v2648
        %v2658 = vor.u32 %v2656, %v2657
        %v2659 = vshll.u32 2102212464, %v2647
        %v2660 = vshrl.u32 920167782, %v2648
        %v2661 = vor.u32 %v2659, %v2660
        %v2662 = vshll.u32 920167782, %v2647
        %v2663 = vshrl.u32 1326507024, %v2648
        %v2664 = vor.u32 %v2662, %v2663
        %vm2665 = vcmp.lt.s32.totalorder %v2646, 1
        %vm2666 = vcmp.lt.s32.totalorder %v2646, 2
        %vm2667 = vcmp.lt.s32.totalorder %v2646, 3
        %vm2668 = vcmp.lt.s32.totalorder %v2646, 4
        %v2669 = vsel %vm2665, %v2649, %v2652
        %v2670 = vsel %vm2668, %v2658, 2102212464
        %v2671 = vsel %vm2667, %v2655, %v2670
        %v2672 = vsel %vm2666, %v2669, %v2671
        %v2673 = vsel %vm2665, %v2652, %v2655
        %v2674 = vsel %vm2668, %v2661, 920167782
        %v2675 = vsel %vm2667, %v2658, %v2674
        %v2676 = vsel %vm2666, %v2673, %v2675
        %v2677 = vsel %vm2665, %v2655, %v2658
        %v2678 = vsel %vm2668, %v2664, 1326507024
        %v2679 = vsel %vm2667, %v2661, %v2678
        %v2680 = vsel %vm2666, %v2677, %v2679
        %v2681 = vshll.u32 %v2641, 8
        %v2682 = vmul.u32.u64.compose %v2681, %v2680
        %v2683 = vextract.low.u32 %v2682
        %v2684 = vextract.high.u32 %v2682
        %v2685 = vmul.u32.u64.compose %v2681, %v2676
        %v2686 = vextract.low.u32 %v2685
        %v2687 = vextract.high.u32 %v2685
        %v2688 = vmul.u32 %v2681, %v2672
        %v2689 = vadd.s32 %v2684, %v2686
        %vm2690 = vc.u32 %v2684, %v2686
        %v2691 = vadd.s32 %v2687, 1
        %v2692 = vsel %vm2690, %v2691, %v2687
        %v2693 = vadd.s32 %v2688, %v2692
        %v2694 = vadd.s32 %v2693, 536870912
        %v2695 = vshrl.u32 %v2694, 30
        %v2696 = vshll.u32 %v2695, 30
        %v2697 = vsub.s32 %v2693, %v2696
        %vm2698 = vcmp.lt.s32.totalorder %v2697, 0
        %v2699 = vsub.s32 0, %v2697
        %v2700 = vsel %vm2698, %v2699, %v2697
        %v2701 = vclz %v2700
        %v2702 = vsub.s32 %v2701, 2
        %vm2703 = vcmp.gt.s32.totalorder 0, %v2702
        %v2704 = vsel %vm2703, 0, %v2702
        %v2705 = vsub.s32 32, %v2704
        %v2706 = vshll.u32 %v2697, %v2704
        %v2707 = vshrl.u32 %v2689, %v2705
        %v2708 = vor.u32 %v2706, %v2707
        %v2709 = vsub.s32 4294967266, %v2704
        %v2710 = vadd.s32 %v2709, 127
        %v2711 = vshll.u32 %v2710, 23
        %v2712 = vor.u32 4788187, %v2711
        %v2713 = vand.u32 2147483647, %v2712
        %v2715 = vcvt.s32.f32 %v2708
        %v2716 = vmul.f32 %v2715, %v2713
        %v2717 = vxor.u32 %v2716, 2147483648
        %v2718 = vsel %vm2635, %v2717, %v2716
        %v2719 = vsub.s32 4, %v2695
        %v2720 = vsel %vm2635, %v2719, %v2695
        %v2721 = vsel %vm2634, %v540, %v2718
        %v2722 = vsel %vm2634, 0, %v2720
        %v2723 = vcosq.f32.pop %v2721
        %v2724 = vsinq.f32.pop %v2721
        %vm2725 = vweird.f32 %v540
        %v2726 = vadd.s32 %v2722, 3
        %v2727 = vand.u32 %v2726, 3
        %vm2728 = vcmp.lt.s32.totalorder %v2727, 2
        %vm2729 = vcmp.eq.s32.totalorder %v2727, 0
        %v2730 = vxor.u32 %v2724, 2147483648
        %v2731 = vsel %vm2729, %v2723, %v2730
        %vm2732 = vcmp.eq.s32.totalorder %v2727, 2
        %v2733 = vxor.u32 %v2723, 2147483648
        %v2734 = vsel %vm2732, %v2733, %v2724
        %v2735 = vsel %vm2728, %v2731, %v2734
        %v2736 = vsel %vm2725, nan, %v2735
        %v2737 = vand.u32 2147483647, %v541
        %vm2738 = vcmp.le.f32.partialorder %v2737, 0.7853982
        %vm2739 = vcmp.lt.s32.totalorder %v541, 0
        %v2740 = vand.u32 %v541, 2139095040
        %v2741 = vshrl.u32 %v2740, 23
        %v2742 = vsub.s32 %v2741, 127
        %v2743 = vand.u32 2147483647, %v541
        %v2744 = vand.u32 %v2743, 8388607
        %v2745 = vor.u32 %v2744, 8388608
        %v2746 = vsub.s32 0, %v2745
        %v2747 = vadd.s32 %v2742, 1
        %vm2748 = vcmp.gt.s32.totalorder %v2747, 0
        %v2749 = vsel %vm2748, %v2747, 0
        %v2750 = vshrl.u32 %v2749, 5
        %v2751 = vand.u32 %v2749, 31
        %v2752 = vsub.s32 32, %v2751
        %v2753 = vshrl.u32 683565275, %v2752
        %v2754 = vshll.u32 683565275, %v2751
        %v2755 = vshrl.u32 2475754826, %v2752
        %v2756 = vor.u32 %v2754, %v2755
        %v2757 = vshll.u32 2475754826, %v2751
        %v2758 = vshrl.u32 2131351028, %v2752
        %v2759 = vor.u32 %v2757, %v2758
        %v2760 = vshll.u32 2131351028, %v2751
        %v2761 = vshrl.u32 2102212464, %v2752
        %v2762 = vor.u32 %v2760, %v2761
        %v2763 = vshll.u32 2102212464, %v2751
        %v2764 = vshrl.u32 920167782, %v2752
        %v2765 = vor.u32 %v2763, %v2764
        %v2766 = vshll.u32 920167782, %v2751
        %v2767 = vshrl.u32 1326507024, %v2752
        %v2768 = vor.u32 %v2766, %v2767
        %vm2769 = vcmp.lt.s32.totalorder %v2750, 1
        %vm2770 = vcmp.lt.s32.totalorder %v2750, 2
        %vm2771 = vcmp.lt.s32.totalorder %v2750, 3
        %vm2772 = vcmp.lt.s32.totalorder %v2750, 4
        %v2773 = vsel %vm2769, %v2753, %v2756
        %v2774 = vsel %vm2772, %v2762, 2102212464
        %v2775 = vsel %vm2771, %v2759, %v2774
        %v2776 = vsel %vm2770, %v2773, %v2775
        %v2777 = vsel %vm2769, %v2756, %v2759
        %v2778 = vsel %vm2772, %v2765, 920167782
        %v2779 = vsel %vm2771, %v2762, %v2778
        %v2780 = vsel %vm2770, %v2777, %v2779
        %v2781 = vsel %vm2769, %v2759, %v2762
        %v2782 = vsel %vm2772, %v2768, 1326507024
        %v2783 = vsel %vm2771, %v2765, %v2782
        %v2784 = vsel %vm2770, %v2781, %v2783
        %v2785 = vshll.u32 %v2745, 8
        %v2786 = vmul.u32.u64.compose %v2785, %v2784
        %v2787 = vextract.low.u32 %v2786
        %v2788 = vextract.high.u32 %v2786
        %v2789 = vmul.u32.u64.compose %v2785, %v2780
        %v2790 = vextract.low.u32 %v2789
        %v2791 = vextract.high.u32 %v2789
        %v2792 = vmul.u32 %v2785, %v2776
        %v2793 = vadd.s32 %v2788, %v2790
        %vm2794 = vc.u32 %v2788, %v2790
        %v2795 = vadd.s32 %v2791, 1
        %v2796 = vsel %vm2794, %v2795, %v2791
        %v2797 = vadd.s32 %v2792, %v2796
        %v2798 = vadd.s32 %v2797, 536870912
        %v2799 = vshrl.u32 %v2798, 30
        %v2800 = vshll.u32 %v2799, 30
        %v2801 = vsub.s32 %v2797, %v2800
        %vm2802 = vcmp.lt.s32.totalorder %v2801, 0
        %v2803 = vsub.s32 0, %v2801
        %v2804 = vsel %vm2802, %v2803, %v2801
        %v2805 = vclz %v2804
        %v2806 = vsub.s32 %v2805, 2
        %vm2807 = vcmp.gt.s32.totalorder 0, %v2806
        %v2808 = vsel %vm2807, 0, %v2806
        %v2809 = vsub.s32 32, %v2808
        %v2810 = vshll.u32 %v2801, %v2808
        %v2811 = vshrl.u32 %v2793, %v2809
        %v2812 = vor.u32 %v2810, %v2811
        %v2813 = vsub.s32 4294967266, %v2808
        %v2814 = vadd.s32 %v2813, 127
        %v2815 = vshll.u32 %v2814, 23
        %v2816 = vor.u32 4788187, %v2815
        %v2817 = vand.u32 2147483647, %v2816
        %v2819 = vcvt.s32.f32 %v2812
        %v2820 = vmul.f32 %v2819, %v2817
        %v2821 = vxor.u32 %v2820, 2147483648
        %v2822 = vsel %vm2739, %v2821, %v2820
        %v2823 = vsub.s32 4, %v2799
        %v2824 = vsel %vm2739, %v2823, %v2799
        %v2825 = vsel %vm2738, %v541, %v2822
        %v2826 = vsel %vm2738, 0, %v2824
        %v2827 = vcosq.f32.pop %v2825
        %v2828 = vsinq.f32.pop %v2825
        %vm2829 = vweird.f32 %v541
        %v2830 = vadd.s32 %v2826, 3
        %v2831 = vand.u32 %v2830, 3
        %vm2832 = vcmp.lt.s32.totalorder %v2831, 2
        %vm2833 = vcmp.eq.s32.totalorder %v2831, 0
        %v2834 = vxor.u32 %v2828, 2147483648
        %v2835 = vsel %vm2833, %v2827, %v2834
        %vm2836 = vcmp.eq.s32.totalorder %v2831, 2
        %v2837 = vxor.u32 %v2827, 2147483648
        %v2838 = vsel %vm2836, %v2837, %v2828
        %v2839 = vsel %vm2832, %v2835, %v2838
        %v2840 = vsel %vm2829, nan, %v2839
        %v2841 = vand.u32 2147483647, %v542
        %vm2842 = vcmp.le.f32.partialorder %v2841, 0.7853982
        %vm2843 = vcmp.lt.s32.totalorder %v542, 0
        %v2844 = vand.u32 %v542, 2139095040
        %v2845 = vshrl.u32 %v2844, 23
        %v2846 = vsub.s32 %v2845, 127
        %v2847 = vand.u32 2147483647, %v542
        %v2848 = vand.u32 %v2847, 8388607
        %v2849 = vor.u32 %v2848, 8388608
        %v2850 = vsub.s32 0, %v2849
        %v2851 = vadd.s32 %v2846, 1
        %vm2852 = vcmp.gt.s32.totalorder %v2851, 0
        %v2853 = vsel %vm2852, %v2851, 0
        %v2854 = vshrl.u32 %v2853, 5
        %v2855 = vand.u32 %v2853, 31
        %v2856 = vsub.s32 32, %v2855
        %v2857 = vshrl.u32 683565275, %v2856
        %v2858 = vshll.u32 683565275, %v2855
        %v2859 = vshrl.u32 2475754826, %v2856
        %v2860 = vor.u32 %v2858, %v2859
        %v2861 = vshll.u32 2475754826, %v2855
        %v2862 = vshrl.u32 2131351028, %v2856
        %v2863 = vor.u32 %v2861, %v2862
        %v2864 = vshll.u32 2131351028, %v2855
        %v2865 = vshrl.u32 2102212464, %v2856
        %v2866 = vor.u32 %v2864, %v2865
        %v2867 = vshll.u32 2102212464, %v2855
        %v2868 = vshrl.u32 920167782, %v2856
        %v2869 = vor.u32 %v2867, %v2868
        %v2870 = vshll.u32 920167782, %v2855
        %v2871 = vshrl.u32 1326507024, %v2856
        %v2872 = vor.u32 %v2870, %v2871
        %vm2873 = vcmp.lt.s32.totalorder %v2854, 1
        %vm2874 = vcmp.lt.s32.totalorder %v2854, 2
        %vm2875 = vcmp.lt.s32.totalorder %v2854, 3
        %vm2876 = vcmp.lt.s32.totalorder %v2854, 4
        %v2877 = vsel %vm2873, %v2857, %v2860
        %v2878 = vsel %vm2876, %v2866, 2102212464
        %v2879 = vsel %vm2875, %v2863, %v2878
        %v2880 = vsel %vm2874, %v2877, %v2879
        %v2881 = vsel %vm2873, %v2860, %v2863
        %v2882 = vsel %vm2876, %v2869, 920167782
        %v2883 = vsel %vm2875, %v2866, %v2882
        %v2884 = vsel %vm2874, %v2881, %v2883
        %v2885 = vsel %vm2873, %v2863, %v2866
        %v2886 = vsel %vm2876, %v2872, 1326507024
        %v2887 = vsel %vm2875, %v2869, %v2886
        %v2888 = vsel %vm2874, %v2885, %v2887
        %v2889 = vshll.u32 %v2849, 8
        %v2890 = vmul.u32.u64.compose %v2889, %v2888
        %v2891 = vextract.low.u32 %v2890
        %v2892 = vextract.high.u32 %v2890
        %v2893 = vmul.u32.u64.compose %v2889, %v2884
        %v2894 = vextract.low.u32 %v2893
        %v2895 = vextract.high.u32 %v2893
        %v2896 = vmul.u32 %v2889, %v2880
        %v2897 = vadd.s32 %v2892, %v2894
        %vm2898 = vc.u32 %v2892, %v2894
        %v2899 = vadd.s32 %v2895, 1
        %v2900 = vsel %vm2898, %v2899, %v2895
        %v2901 = vadd.s32 %v2896, %v2900
        %v2902 = vadd.s32 %v2901, 536870912
        %v2903 = vshrl.u32 %v2902, 30
        %v2904 = vshll.u32 %v2903, 30
        %v2905 = vsub.s32 %v2901, %v2904
        %vm2906 = vcmp.lt.s32.totalorder %v2905, 0
        %v2907 = vsub.s32 0, %v2905
        %v2908 = vsel %vm2906, %v2907, %v2905
        %v2909 = vclz %v2908
        %v2910 = vsub.s32 %v2909, 2
        %vm2911 = vcmp.gt.s32.totalorder 0, %v2910
        %v2912 = vsel %vm2911, 0, %v2910
        %v2913 = vsub.s32 32, %v2912
        %v2914 = vshll.u32 %v2905, %v2912
        %v2915 = vshrl.u32 %v2897, %v2913
        %v2916 = vor.u32 %v2914, %v2915
        %v2917 = vsub.s32 4294967266, %v2912
        %v2918 = vadd.s32 %v2917, 127
        %v2919 = vshll.u32 %v2918, 23
        %v2920 = vor.u32 4788187, %v2919
        %v2921 = vand.u32 2147483647, %v2920
        %v2923 = vcvt.s32.f32 %v2916
        %v2924 = vmul.f32 %v2923, %v2921
        %v2925 = vxor.u32 %v2924, 2147483648
        %v2926 = vsel %vm2843, %v2925, %v2924
        %v2927 = vsub.s32 4, %v2903
        %v2928 = vsel %vm2843, %v2927, %v2903
        %v2929 = vsel %vm2842, %v542, %v2926
        %v2930 = vsel %vm2842, 0, %v2928
        %v2931 = vcosq.f32.pop %v2929
        %v2932 = vsinq.f32.pop %v2929
        %vm2933 = vweird.f32 %v542
        %v2934 = vadd.s32 %v2930, 3
        %v2935 = vand.u32 %v2934, 3
        %vm2936 = vcmp.lt.s32.totalorder %v2935, 2
        %vm2937 = vcmp.eq.s32.totalorder %v2935, 0
        %v2938 = vxor.u32 %v2932, 2147483648
        %v2939 = vsel %vm2937, %v2931, %v2938
        %vm2940 = vcmp.eq.s32.totalorder %v2935, 2
        %v2941 = vxor.u32 %v2931, 2147483648
        %v2942 = vsel %vm2940, %v2941, %v2932
        %v2943 = vsel %vm2936, %v2939, %v2942
        %v2944 = vsel %vm2933, nan, %v2943
        %v2945 = vand.u32 2147483647, %v543
        %vm2946 = vcmp.le.f32.partialorder %v2945, 0.7853982
        %vm2947 = vcmp.lt.s32.totalorder %v543, 0
        %v2948 = vand.u32 %v543, 2139095040
        %v2949 = vshrl.u32 %v2948, 23
        %v2950 = vsub.s32 %v2949, 127
        %v2951 = vand.u32 2147483647, %v543
        %v2952 = vand.u32 %v2951, 8388607
        %v2953 = vor.u32 %v2952, 8388608
        %v2954 = vsub.s32 0, %v2953
        %v2955 = vadd.s32 %v2950, 1
        %vm2956 = vcmp.gt.s32.totalorder %v2955, 0
        %v2957 = vsel %vm2956, %v2955, 0
        %v2958 = vshrl.u32 %v2957, 5
        %v2959 = vand.u32 %v2957, 31
        %v2960 = vsub.s32 32, %v2959
        %v2961 = vshrl.u32 683565275, %v2960
        %v2962 = vshll.u32 683565275, %v2959
        %v2963 = vshrl.u32 2475754826, %v2960
        %v2964 = vor.u32 %v2962, %v2963
        %v2965 = vshll.u32 2475754826, %v2959
        %v2966 = vshrl.u32 2131351028, %v2960
        %v2967 = vor.u32 %v2965, %v2966
        %v2968 = vshll.u32 2131351028, %v2959
        %v2969 = vshrl.u32 2102212464, %v2960
        %v2970 = vor.u32 %v2968, %v2969
        %v2971 = vshll.u32 2102212464, %v2959
        %v2972 = vshrl.u32 920167782, %v2960
        %v2973 = vor.u32 %v2971, %v2972
        %v2974 = vshll.u32 920167782, %v2959
        %v2975 = vshrl.u32 1326507024, %v2960
        %v2976 = vor.u32 %v2974, %v2975
        %vm2977 = vcmp.lt.s32.totalorder %v2958, 1
        %vm2978 = vcmp.lt.s32.totalorder %v2958, 2
        %vm2979 = vcmp.lt.s32.totalorder %v2958, 3
        %vm2980 = vcmp.lt.s32.totalorder %v2958, 4
        %v2981 = vsel %vm2977, %v2961, %v2964
        %v2982 = vsel %vm2980, %v2970, 2102212464
        %v2983 = vsel %vm2979, %v2967, %v2982
        %v2984 = vsel %vm2978, %v2981, %v2983
        %v2985 = vsel %vm2977, %v2964, %v2967
        %v2986 = vsel %vm2980, %v2973, 920167782
        %v2987 = vsel %vm2979, %v2970, %v2986
        %v2988 = vsel %vm2978, %v2985, %v2987
        %v2989 = vsel %vm2977, %v2967, %v2970
        %v2990 = vsel %vm2980, %v2976, 1326507024
        %v2991 = vsel %vm2979, %v2973, %v2990
        %v2992 = vsel %vm2978, %v2989, %v2991
        %v2993 = vshll.u32 %v2953, 8
        %v2994 = vmul.u32.u64.compose %v2993, %v2992
        %v2995 = vextract.low.u32 %v2994
        %v2996 = vextract.high.u32 %v2994
        %v2997 = vmul.u32.u64.compose %v2993, %v2988
        %v2998 = vextract.low.u32 %v2997
        %v2999 = vextract.high.u32 %v2997
        %v3000 = vmul.u32 %v2993, %v2984
        %v3001 = vadd.s32 %v2996, %v2998
        %vm3002 = vc.u32 %v2996, %v2998
        %v3003 = vadd.s32 %v2999, 1
        %v3004 = vsel %vm3002, %v3003, %v2999
        %v3005 = vadd.s32 %v3000, %v3004
        %v3006 = vadd.s32 %v3005, 536870912
        %v3007 = vshrl.u32 %v3006, 30
        %v3008 = vshll.u32 %v3007, 30
        %v3009 = vsub.s32 %v3005, %v3008
        %vm3010 = vcmp.lt.s32.totalorder %v3009, 0
        %v3011 = vsub.s32 0, %v3009
        %v3012 = vsel %vm3010, %v3011, %v3009
        %v3013 = vclz %v3012
        %v3014 = vsub.s32 %v3013, 2
        %vm3015 = vcmp.gt.s32.totalorder 0, %v3014
        %v3016 = vsel %vm3015, 0, %v3014
        %v3017 = vsub.s32 32, %v3016
        %v3018 = vshll.u32 %v3009, %v3016
        %v3019 = vshrl.u32 %v3001, %v3017
        %v3020 = vor.u32 %v3018, %v3019
        %v3021 = vsub.s32 4294967266, %v3016
        %v3022 = vadd.s32 %v3021, 127
        %v3023 = vshll.u32 %v3022, 23
        %v3024 = vor.u32 4788187, %v3023
        %v3025 = vand.u32 2147483647, %v3024
        %v3027 = vcvt.s32.f32 %v3020
        %v3028 = vmul.f32 %v3027, %v3025
        %v3029 = vxor.u32 %v3028, 2147483648
        %v3030 = vsel %vm2947, %v3029, %v3028
        %v3031 = vsub.s32 4, %v3007
        %v3032 = vsel %vm2947, %v3031, %v3007
        %v3033 = vsel %vm2946, %v543, %v3030
        %v3034 = vsel %vm2946, 0, %v3032
        %v3035 = vcosq.f32.pop %v3033
        %v3036 = vsinq.f32.pop %v3033
        %vm3037 = vweird.f32 %v543
        %v3038 = vadd.s32 %v3034, 3
        %v3039 = vand.u32 %v3038, 3
        %vm3040 = vcmp.lt.s32.totalorder %v3039, 2
        %vm3041 = vcmp.eq.s32.totalorder %v3039, 0
        %v3042 = vxor.u32 %v3036, 2147483648
        %v3043 = vsel %vm3041, %v3035, %v3042
        %vm3044 = vcmp.eq.s32.totalorder %v3039, 2
        %v3045 = vxor.u32 %v3035, 2147483648
        %v3046 = vsel %vm3044, %v3045, %v3036
        %v3047 = vsel %vm3040, %v3043, %v3046
        %v3048 = vsel %vm3037, nan, %v3047
        %v3049 = vand.u32 2147483647, %v544
        %vm3050 = vcmp.le.f32.partialorder %v3049, 0.7853982
        %vm3051 = vcmp.lt.s32.totalorder %v544, 0
        %v3052 = vand.u32 %v544, 2139095040
        %v3053 = vshrl.u32 %v3052, 23
        %v3054 = vsub.s32 %v3053, 127
        %v3055 = vand.u32 2147483647, %v544
        %v3056 = vand.u32 %v3055, 8388607
        %v3057 = vor.u32 %v3056, 8388608
        %v3058 = vsub.s32 0, %v3057
        %v3059 = vadd.s32 %v3054, 1
        %vm3060 = vcmp.gt.s32.totalorder %v3059, 0
        %v3061 = vsel %vm3060, %v3059, 0
        %v3062 = vshrl.u32 %v3061, 5
        %v3063 = vand.u32 %v3061, 31
        %v3064 = vsub.s32 32, %v3063
        %v3065 = vshrl.u32 683565275, %v3064
        %v3066 = vshll.u32 683565275, %v3063
        %v3067 = vshrl.u32 2475754826, %v3064
        %v3068 = vor.u32 %v3066, %v3067
        %v3069 = vshll.u32 2475754826, %v3063
        %v3070 = vshrl.u32 2131351028, %v3064
        %v3071 = vor.u32 %v3069, %v3070
        %v3072 = vshll.u32 2131351028, %v3063
        %v3073 = vshrl.u32 2102212464, %v3064
        %v3074 = vor.u32 %v3072, %v3073
        %v3075 = vshll.u32 2102212464, %v3063
        %v3076 = vshrl.u32 920167782, %v3064
        %v3077 = vor.u32 %v3075, %v3076
        %v3078 = vshll.u32 920167782, %v3063
        %v3079 = vshrl.u32 1326507024, %v3064
        %v3080 = vor.u32 %v3078, %v3079
        %vm3081 = vcmp.lt.s32.totalorder %v3062, 1
        %vm3082 = vcmp.lt.s32.totalorder %v3062, 2
        %vm3083 = vcmp.lt.s32.totalorder %v3062, 3
        %vm3084 = vcmp.lt.s32.totalorder %v3062, 4
        %v3085 = vsel %vm3081, %v3065, %v3068
        %v3086 = vsel %vm3084, %v3074, 2102212464
        %v3087 = vsel %vm3083, %v3071, %v3086
        %v3088 = vsel %vm3082, %v3085, %v3087
        %v3089 = vsel %vm3081, %v3068, %v3071
        %v3090 = vsel %vm3084, %v3077, 920167782
        %v3091 = vsel %vm3083, %v3074, %v3090
        %v3092 = vsel %vm3082, %v3089, %v3091
        %v3093 = vsel %vm3081, %v3071, %v3074
        %v3094 = vsel %vm3084, %v3080, 1326507024
        %v3095 = vsel %vm3083, %v3077, %v3094
        %v3096 = vsel %vm3082, %v3093, %v3095
        %v3097 = vshll.u32 %v3057, 8
        %v3098 = vmul.u32.u64.compose %v3097, %v3096
        %v3099 = vextract.low.u32 %v3098
        %v3100 = vextract.high.u32 %v3098
        %v3101 = vmul.u32.u64.compose %v3097, %v3092
        %v3102 = vextract.low.u32 %v3101
        %v3103 = vextract.high.u32 %v3101
        %v3104 = vmul.u32 %v3097, %v3088
        %v3105 = vadd.s32 %v3100, %v3102
        %vm3106 = vc.u32 %v3100, %v3102
        %v3107 = vadd.s32 %v3103, 1
        %v3108 = vsel %vm3106, %v3107, %v3103
        %v3109 = vadd.s32 %v3104, %v3108
        %v3110 = vadd.s32 %v3109, 536870912
        %v3111 = vshrl.u32 %v3110, 30
        %v3112 = vshll.u32 %v3111, 30
        %v3113 = vsub.s32 %v3109, %v3112
        %vm3114 = vcmp.lt.s32.totalorder %v3113, 0
        %v3115 = vsub.s32 0, %v3113
        %v3116 = vsel %vm3114, %v3115, %v3113
        %v3117 = vclz %v3116
        %v3118 = vsub.s32 %v3117, 2
        %vm3119 = vcmp.gt.s32.totalorder 0, %v3118
        %v3120 = vsel %vm3119, 0, %v3118
        %v3121 = vsub.s32 32, %v3120
        %v3122 = vshll.u32 %v3113, %v3120
        %v3123 = vshrl.u32 %v3105, %v3121
        %v3124 = vor.u32 %v3122, %v3123
        %v3125 = vsub.s32 4294967266, %v3120
        %v3126 = vadd.s32 %v3125, 127
        %v3127 = vshll.u32 %v3126, 23
        %v3128 = vor.u32 4788187, %v3127
        %v3129 = vand.u32 2147483647, %v3128
        %v3131 = vcvt.s32.f32 %v3124
        %v3132 = vmul.f32 %v3131, %v3129
        %v3133 = vxor.u32 %v3132, 2147483648
        %v3134 = vsel %vm3051, %v3133, %v3132
        %v3135 = vsub.s32 4, %v3111
        %v3136 = vsel %vm3051, %v3135, %v3111
        %v3137 = vsel %vm3050, %v544, %v3134
        %v3138 = vsel %vm3050, 0, %v3136
        %v3139 = vcosq.f32.pop %v3137
        %v3140 = vsinq.f32.pop %v3137
        %vm3141 = vweird.f32 %v544
        %v3142 = vadd.s32 %v3138, 3
        %v3143 = vand.u32 %v3142, 3
        %vm3144 = vcmp.lt.s32.totalorder %v3143, 2
        %vm3145 = vcmp.eq.s32.totalorder %v3143, 0
        %v3146 = vxor.u32 %v3140, 2147483648
        %v3147 = vsel %vm3145, %v3139, %v3146
        %vm3148 = vcmp.eq.s32.totalorder %v3143, 2
        %v3149 = vxor.u32 %v3139, 2147483648
        %v3150 = vsel %vm3148, %v3149, %v3140
        %v3151 = vsel %vm3144, %v3147, %v3150
        %v3152 = vsel %vm3141, nan, %v3151
        %v3153 = vand.u32 2147483647, %v545
        %vm3154 = vcmp.le.f32.partialorder %v3153, 0.7853982
        %vm3155 = vcmp.lt.s32.totalorder %v545, 0
        %v3156 = vand.u32 %v545, 2139095040
        %v3157 = vshrl.u32 %v3156, 23
        %v3158 = vsub.s32 %v3157, 127
        %v3159 = vand.u32 2147483647, %v545
        %v3160 = vand.u32 %v3159, 8388607
        %v3161 = vor.u32 %v3160, 8388608
        %v3162 = vsub.s32 0, %v3161
        %v3163 = vadd.s32 %v3158, 1
        %vm3164 = vcmp.gt.s32.totalorder %v3163, 0
        %v3165 = vsel %vm3164, %v3163, 0
        %v3166 = vshrl.u32 %v3165, 5
        %v3167 = vand.u32 %v3165, 31
        %v3168 = vsub.s32 32, %v3167
        %v3169 = vshrl.u32 683565275, %v3168
        %v3170 = vshll.u32 683565275, %v3167
        %v3171 = vshrl.u32 2475754826, %v3168
        %v3172 = vor.u32 %v3170, %v3171
        %v3173 = vshll.u32 2475754826, %v3167
        %v3174 = vshrl.u32 2131351028, %v3168
        %v3175 = vor.u32 %v3173, %v3174
        %v3176 = vshll.u32 2131351028, %v3167
        %v3177 = vshrl.u32 2102212464, %v3168
        %v3178 = vor.u32 %v3176, %v3177
        %v3179 = vshll.u32 2102212464, %v3167
        %v3180 = vshrl.u32 920167782, %v3168
        %v3181 = vor.u32 %v3179, %v3180
        %v3182 = vshll.u32 920167782, %v3167
        %v3183 = vshrl.u32 1326507024, %v3168
        %v3184 = vor.u32 %v3182, %v3183
        %vm3185 = vcmp.lt.s32.totalorder %v3166, 1
        %vm3186 = vcmp.lt.s32.totalorder %v3166, 2
        %vm3187 = vcmp.lt.s32.totalorder %v3166, 3
        %vm3188 = vcmp.lt.s32.totalorder %v3166, 4
        %v3189 = vsel %vm3185, %v3169, %v3172
        %v3190 = vsel %vm3188, %v3178, 2102212464
        %v3191 = vsel %vm3187, %v3175, %v3190
        %v3192 = vsel %vm3186, %v3189, %v3191
        %v3193 = vsel %vm3185, %v3172, %v3175
        %v3194 = vsel %vm3188, %v3181, 920167782
        %v3195 = vsel %vm3187, %v3178, %v3194
        %v3196 = vsel %vm3186, %v3193, %v3195
        %v3197 = vsel %vm3185, %v3175, %v3178
        %v3198 = vsel %vm3188, %v3184, 1326507024
        %v3199 = vsel %vm3187, %v3181, %v3198
        %v3200 = vsel %vm3186, %v3197, %v3199
        %v3201 = vshll.u32 %v3161, 8
        %v3202 = vmul.u32.u64.compose %v3201, %v3200
        %v3203 = vextract.low.u32 %v3202
        %v3204 = vextract.high.u32 %v3202
        %v3205 = vmul.u32.u64.compose %v3201, %v3196
        %v3206 = vextract.low.u32 %v3205
        %v3207 = vextract.high.u32 %v3205
        %v3208 = vmul.u32 %v3201, %v3192
        %v3209 = vadd.s32 %v3204, %v3206
        %vm3210 = vc.u32 %v3204, %v3206
        %v3211 = vadd.s32 %v3207, 1
        %v3212 = vsel %vm3210, %v3211, %v3207
        %v3213 = vadd.s32 %v3208, %v3212
        %v3214 = vadd.s32 %v3213, 536870912
        %v3215 = vshrl.u32 %v3214, 30
        %v3216 = vshll.u32 %v3215, 30
        %v3217 = vsub.s32 %v3213, %v3216
        %vm3218 = vcmp.lt.s32.totalorder %v3217, 0
        %v3219 = vsub.s32 0, %v3217
        %v3220 = vsel %vm3218, %v3219, %v3217
        %v3221 = vclz %v3220
        %v3222 = vsub.s32 %v3221, 2
        %vm3223 = vcmp.gt.s32.totalorder 0, %v3222
        %v3224 = vsel %vm3223, 0, %v3222
        %v3225 = vsub.s32 32, %v3224
        %v3226 = vshll.u32 %v3217, %v3224
        %v3227 = vshrl.u32 %v3209, %v3225
        %v3228 = vor.u32 %v3226, %v3227
        %v3229 = vsub.s32 4294967266, %v3224
        %v3230 = vadd.s32 %v3229, 127
        %v3231 = vshll.u32 %v3230, 23
        %v3232 = vor.u32 4788187, %v3231
        %v3233 = vand.u32 2147483647, %v3232
        %v3235 = vcvt.s32.f32 %v3228
        %v3236 = vmul.f32 %v3235, %v3233
        %v3237 = vxor.u32 %v3236, 2147483648
        %v3238 = vsel %vm3155, %v3237, %v3236
        %v3239 = vsub.s32 4, %v3215
        %v3240 = vsel %vm3155, %v3239, %v3215
        %v3241 = vsel %vm3154, %v545, %v3238
        %v3242 = vsel %vm3154, 0, %v3240
        %v3243 = vcosq.f32.pop %v3241
        %v3244 = vsinq.f32.pop %v3241
        %vm3245 = vweird.f32 %v545
        %v3246 = vadd.s32 %v3242, 3
        %v3247 = vand.u32 %v3246, 3
        %vm3248 = vcmp.lt.s32.totalorder %v3247, 2
        %vm3249 = vcmp.eq.s32.totalorder %v3247, 0
        %v3250 = vxor.u32 %v3244, 2147483648
        %v3251 = vsel %vm3249, %v3243, %v3250
        %vm3252 = vcmp.eq.s32.totalorder %v3247, 2
        %v3253 = vxor.u32 %v3243, 2147483648
        %v3254 = vsel %vm3252, %v3253, %v3244
        %v3255 = vsel %vm3248, %v3251, %v3254
        %v3256 = vsel %vm3245, nan, %v3255
        %v3257 = vand.u32 2147483647, %v546
        %vm3258 = vcmp.le.f32.partialorder %v3257, 0.7853982
        %vm3259 = vcmp.lt.s32.totalorder %v546, 0
        %v3260 = vand.u32 %v546, 2139095040
        %v3261 = vshrl.u32 %v3260, 23
        %v3262 = vsub.s32 %v3261, 127
        %v3263 = vand.u32 2147483647, %v546
        %v3264 = vand.u32 %v3263, 8388607
        %v3265 = vor.u32 %v3264, 8388608
        %v3266 = vsub.s32 0, %v3265
        %v3267 = vadd.s32 %v3262, 1
        %vm3268 = vcmp.gt.s32.totalorder %v3267, 0
        %v3269 = vsel %vm3268, %v3267, 0
        %v3270 = vshrl.u32 %v3269, 5
        %v3271 = vand.u32 %v3269, 31
        %v3272 = vsub.s32 32, %v3271
        %v3273 = vshrl.u32 683565275, %v3272
        %v3274 = vshll.u32 683565275, %v3271
        %v3275 = vshrl.u32 2475754826, %v3272
        %v3276 = vor.u32 %v3274, %v3275
        %v3277 = vshll.u32 2475754826, %v3271
        %v3278 = vshrl.u32 2131351028, %v3272
        %v3279 = vor.u32 %v3277, %v3278
        %v3280 = vshll.u32 2131351028, %v3271
        %v3281 = vshrl.u32 2102212464, %v3272
        %v3282 = vor.u32 %v3280, %v3281
        %v3283 = vshll.u32 2102212464, %v3271
        %v3284 = vshrl.u32 920167782, %v3272
        %v3285 = vor.u32 %v3283, %v3284
        %v3286 = vshll.u32 920167782, %v3271
        %v3287 = vshrl.u32 1326507024, %v3272
        %v3288 = vor.u32 %v3286, %v3287
        %vm3289 = vcmp.lt.s32.totalorder %v3270, 1
        %vm3290 = vcmp.lt.s32.totalorder %v3270, 2
        %vm3291 = vcmp.lt.s32.totalorder %v3270, 3
        %vm3292 = vcmp.lt.s32.totalorder %v3270, 4
        %v3293 = vsel %vm3289, %v3273, %v3276
        %v3294 = vsel %vm3292, %v3282, 2102212464
        %v3295 = vsel %vm3291, %v3279, %v3294
        %v3296 = vsel %vm3290, %v3293, %v3295
        %v3297 = vsel %vm3289, %v3276, %v3279
        %v3298 = vsel %vm3292, %v3285, 920167782
        %v3299 = vsel %vm3291, %v3282, %v3298
        %v3300 = vsel %vm3290, %v3297, %v3299
        %v3301 = vsel %vm3289, %v3279, %v3282
        %v3302 = vsel %vm3292, %v3288, 1326507024
        %v3303 = vsel %vm3291, %v3285, %v3302
        %v3304 = vsel %vm3290, %v3301, %v3303
        %v3305 = vshll.u32 %v3265, 8
        %v3306 = vmul.u32.u64.compose %v3305, %v3304
        %v3307 = vextract.low.u32 %v3306
        %v3308 = vextract.high.u32 %v3306
        %v3309 = vmul.u32.u64.compose %v3305, %v3300
        %v3310 = vextract.low.u32 %v3309
        %v3311 = vextract.high.u32 %v3309
        %v3312 = vmul.u32 %v3305, %v3296
        %v3313 = vadd.s32 %v3308, %v3310
        %vm3314 = vc.u32 %v3308, %v3310
        %v3315 = vadd.s32 %v3311, 1
        %v3316 = vsel %vm3314, %v3315, %v3311
        %v3317 = vadd.s32 %v3312, %v3316
        %v3318 = vadd.s32 %v3317, 536870912
        %v3319 = vshrl.u32 %v3318, 30
        %v3320 = vshll.u32 %v3319, 30
        %v3321 = vsub.s32 %v3317, %v3320
        %vm3322 = vcmp.lt.s32.totalorder %v3321, 0
        %v3323 = vsub.s32 0, %v3321
        %v3324 = vsel %vm3322, %v3323, %v3321
        %v3325 = vclz %v3324
        %v3326 = vsub.s32 %v3325, 2
        %vm3327 = vcmp.gt.s32.totalorder 0, %v3326
        %v3328 = vsel %vm3327, 0, %v3326
        %v3329 = vsub.s32 32, %v3328
        %v3330 = vshll.u32 %v3321, %v3328
        %v3331 = vshrl.u32 %v3313, %v3329
        %v3332 = vor.u32 %v3330, %v3331
        %v3333 = vsub.s32 4294967266, %v3328
        %v3334 = vadd.s32 %v3333, 127
        %v3335 = vshll.u32 %v3334, 23
        %v3336 = vor.u32 4788187, %v3335
        %v3337 = vand.u32 2147483647, %v3336
        %v3339 = vcvt.s32.f32 %v3332
        %v3340 = vmul.f32 %v3339, %v3337
        %v3341 = vxor.u32 %v3340, 2147483648
        %v3342 = vsel %vm3259, %v3341, %v3340
        %v3343 = vsub.s32 4, %v3319
        %v3344 = vsel %vm3259, %v3343, %v3319
        %v3345 = vsel %vm3258, %v546, %v3342
        %v3346 = vsel %vm3258, 0, %v3344
        %v3347 = vcosq.f32.pop %v3345
        %v3348 = vsinq.f32.pop %v3345
        %vm3349 = vweird.f32 %v546
        %v3350 = vadd.s32 %v3346, 3
        %v3351 = vand.u32 %v3350, 3
        %vm3352 = vcmp.lt.s32.totalorder %v3351, 2
        %vm3353 = vcmp.eq.s32.totalorder %v3351, 0
        %v3354 = vxor.u32 %v3348, 2147483648
        %v3355 = vsel %vm3353, %v3347, %v3354
        %vm3356 = vcmp.eq.s32.totalorder %v3351, 2
        %v3357 = vxor.u32 %v3347, 2147483648
        %v3358 = vsel %vm3356, %v3357, %v3348
        %v3359 = vsel %vm3352, %v3355, %v3358
        %v3360 = vsel %vm3349, nan, %v3359
        %v3361 = vand.u32 2147483647, %v547
        %vm3362 = vcmp.le.f32.partialorder %v3361, 0.7853982
        %vm3363 = vcmp.lt.s32.totalorder %v547, 0
        %v3364 = vand.u32 %v547, 2139095040
        %v3365 = vshrl.u32 %v3364, 23
        %v3366 = vsub.s32 %v3365, 127
        %v3367 = vand.u32 2147483647, %v547
        %v3368 = vand.u32 %v3367, 8388607
        %v3369 = vor.u32 %v3368, 8388608
        %v3370 = vsub.s32 0, %v3369
        %v3371 = vadd.s32 %v3366, 1
        %vm3372 = vcmp.gt.s32.totalorder %v3371, 0
        %v3373 = vsel %vm3372, %v3371, 0
        %v3374 = vshrl.u32 %v3373, 5
        %v3375 = vand.u32 %v3373, 31
        %v3376 = vsub.s32 32, %v3375
        %v3377 = vshrl.u32 683565275, %v3376
        %v3378 = vshll.u32 683565275, %v3375
        %v3379 = vshrl.u32 2475754826, %v3376
        %v3380 = vor.u32 %v3378, %v3379
        %v3381 = vshll.u32 2475754826, %v3375
        %v3382 = vshrl.u32 2131351028, %v3376
        %v3383 = vor.u32 %v3381, %v3382
        %v3384 = vshll.u32 2131351028, %v3375
        %v3385 = vshrl.u32 2102212464, %v3376
        %v3386 = vor.u32 %v3384, %v3385
        %v3387 = vshll.u32 2102212464, %v3375
        %v3388 = vshrl.u32 920167782, %v3376
        %v3389 = vor.u32 %v3387, %v3388
        %v3390 = vshll.u32 920167782, %v3375
        %v3391 = vshrl.u32 1326507024, %v3376
        %v3392 = vor.u32 %v3390, %v3391
        %vm3393 = vcmp.lt.s32.totalorder %v3374, 1
        %vm3394 = vcmp.lt.s32.totalorder %v3374, 2
        %vm3395 = vcmp.lt.s32.totalorder %v3374, 3
        %vm3396 = vcmp.lt.s32.totalorder %v3374, 4
        %v3397 = vsel %vm3393, %v3377, %v3380
        %v3398 = vsel %vm3396, %v3386, 2102212464
        %v3399 = vsel %vm3395, %v3383, %v3398
        %v3400 = vsel %vm3394, %v3397, %v3399
        %v3401 = vsel %vm3393, %v3380, %v3383
        %v3402 = vsel %vm3396, %v3389, 920167782
        %v3403 = vsel %vm3395, %v3386, %v3402
        %v3404 = vsel %vm3394, %v3401, %v3403
        %v3405 = vsel %vm3393, %v3383, %v3386
        %v3406 = vsel %vm3396, %v3392, 1326507024
        %v3407 = vsel %vm3395, %v3389, %v3406
        %v3408 = vsel %vm3394, %v3405, %v3407
        %v3409 = vshll.u32 %v3369, 8
        %v3410 = vmul.u32.u64.compose %v3409, %v3408
        %v3411 = vextract.low.u32 %v3410
        %v3412 = vextract.high.u32 %v3410
        %v3413 = vmul.u32.u64.compose %v3409, %v3404
        %v3414 = vextract.low.u32 %v3413
        %v3415 = vextract.high.u32 %v3413
        %v3416 = vmul.u32 %v3409, %v3400
        %v3417 = vadd.s32 %v3412, %v3414
        %vm3418 = vc.u32 %v3412, %v3414
        %v3419 = vadd.s32 %v3415, 1
        %v3420 = vsel %vm3418, %v3419, %v3415
        %v3421 = vadd.s32 %v3416, %v3420
        %v3422 = vadd.s32 %v3421, 536870912
        %v3423 = vshrl.u32 %v3422, 30
        %v3424 = vshll.u32 %v3423, 30
        %v3425 = vsub.s32 %v3421, %v3424
        %vm3426 = vcmp.lt.s32.totalorder %v3425, 0
        %v3427 = vsub.s32 0, %v3425
        %v3428 = vsel %vm3426, %v3427, %v3425
        %v3429 = vclz %v3428
        %v3430 = vsub.s32 %v3429, 2
        %vm3431 = vcmp.gt.s32.totalorder 0, %v3430
        %v3432 = vsel %vm3431, 0, %v3430
        %v3433 = vsub.s32 32, %v3432
        %v3434 = vshll.u32 %v3425, %v3432
        %v3435 = vshrl.u32 %v3417, %v3433
        %v3436 = vor.u32 %v3434, %v3435
        %v3437 = vsub.s32 4294967266, %v3432
        %v3438 = vadd.s32 %v3437, 127
        %v3439 = vshll.u32 %v3438, 23
        %v3440 = vor.u32 4788187, %v3439
        %v3441 = vand.u32 2147483647, %v3440
        %v3443 = vcvt.s32.f32 %v3436
        %v3444 = vmul.f32 %v3443, %v3441
        %v3445 = vxor.u32 %v3444, 2147483648
        %v3446 = vsel %vm3363, %v3445, %v3444
        %v3447 = vsub.s32 4, %v3423
        %v3448 = vsel %vm3363, %v3447, %v3423
        %v3449 = vsel %vm3362, %v547, %v3446
        %v3450 = vsel %vm3362, 0, %v3448
        %v3451 = vcosq.f32.pop %v3449
        %v3452 = vsinq.f32.pop %v3449
        %vm3453 = vweird.f32 %v547
        %v3454 = vadd.s32 %v3450, 3
        %v3455 = vand.u32 %v3454, 3
        %vm3456 = vcmp.lt.s32.totalorder %v3455, 2
        %vm3457 = vcmp.eq.s32.totalorder %v3455, 0
        %v3458 = vxor.u32 %v3452, 2147483648
        %v3459 = vsel %vm3457, %v3451, %v3458
        %vm3460 = vcmp.eq.s32.totalorder %v3455, 2
        %v3461 = vxor.u32 %v3451, 2147483648
        %v3462 = vsel %vm3460, %v3461, %v3452
        %v3463 = vsel %vm3456, %v3459, %v3462
        %v3464 = vsel %vm3453, nan, %v3463
        %v3465 = vand.u32 2147483647, %v548
        %vm3466 = vcmp.le.f32.partialorder %v3465, 0.7853982
        %vm3467 = vcmp.lt.s32.totalorder %v548, 0
        %v3468 = vand.u32 %v548, 2139095040
        %v3469 = vshrl.u32 %v3468, 23
        %v3470 = vsub.s32 %v3469, 127
        %v3471 = vand.u32 2147483647, %v548
        %v3472 = vand.u32 %v3471, 8388607
        %v3473 = vor.u32 %v3472, 8388608
        %v3474 = vsub.s32 0, %v3473
        %v3475 = vadd.s32 %v3470, 1
        %vm3476 = vcmp.gt.s32.totalorder %v3475, 0
        %v3477 = vsel %vm3476, %v3475, 0
        %v3478 = vshrl.u32 %v3477, 5
        %v3479 = vand.u32 %v3477, 31
        %v3480 = vsub.s32 32, %v3479
        %v3481 = vshrl.u32 683565275, %v3480
        %v3482 = vshll.u32 683565275, %v3479
        %v3483 = vshrl.u32 2475754826, %v3480
        %v3484 = vor.u32 %v3482, %v3483
        %v3485 = vshll.u32 2475754826, %v3479
        %v3486 = vshrl.u32 2131351028, %v3480
        %v3487 = vor.u32 %v3485, %v3486
        %v3488 = vshll.u32 2131351028, %v3479
        %v3489 = vshrl.u32 2102212464, %v3480
        %v3490 = vor.u32 %v3488, %v3489
        %v3491 = vshll.u32 2102212464, %v3479
        %v3492 = vshrl.u32 920167782, %v3480
        %v3493 = vor.u32 %v3491, %v3492
        %v3494 = vshll.u32 920167782, %v3479
        %v3495 = vshrl.u32 1326507024, %v3480
        %v3496 = vor.u32 %v3494, %v3495
        %vm3497 = vcmp.lt.s32.totalorder %v3478, 1
        %vm3498 = vcmp.lt.s32.totalorder %v3478, 2
        %vm3499 = vcmp.lt.s32.totalorder %v3478, 3
        %vm3500 = vcmp.lt.s32.totalorder %v3478, 4
        %v3501 = vsel %vm3497, %v3481, %v3484
        %v3502 = vsel %vm3500, %v3490, 2102212464
        %v3503 = vsel %vm3499, %v3487, %v3502
        %v3504 = vsel %vm3498, %v3501, %v3503
        %v3505 = vsel %vm3497, %v3484, %v3487
        %v3506 = vsel %vm3500, %v3493, 920167782
        %v3507 = vsel %vm3499, %v3490, %v3506
        %v3508 = vsel %vm3498, %v3505, %v3507
        %v3509 = vsel %vm3497, %v3487, %v3490
        %v3510 = vsel %vm3500, %v3496, 1326507024
        %v3511 = vsel %vm3499, %v3493, %v3510
        %v3512 = vsel %vm3498, %v3509, %v3511
        %v3513 = vshll.u32 %v3473, 8
        %v3514 = vmul.u32.u64.compose %v3513, %v3512
        %v3515 = vextract.low.u32 %v3514
        %v3516 = vextract.high.u32 %v3514
        %v3517 = vmul.u32.u64.compose %v3513, %v3508
        %v3518 = vextract.low.u32 %v3517
        %v3519 = vextract.high.u32 %v3517
        %v3520 = vmul.u32 %v3513, %v3504
        %v3521 = vadd.s32 %v3516, %v3518
        %vm3522 = vc.u32 %v3516, %v3518
        %v3523 = vadd.s32 %v3519, 1
        %v3524 = vsel %vm3522, %v3523, %v3519
        %v3525 = vadd.s32 %v3520, %v3524
        %v3526 = vadd.s32 %v3525, 536870912
        %v3527 = vshrl.u32 %v3526, 30
        %v3528 = vshll.u32 %v3527, 30
        %v3529 = vsub.s32 %v3525, %v3528
        %vm3530 = vcmp.lt.s32.totalorder %v3529, 0
        %v3531 = vsub.s32 0, %v3529
        %v3532 = vsel %vm3530, %v3531, %v3529
        %v3533 = vclz %v3532
        %v3534 = vsub.s32 %v3533, 2
        %vm3535 = vcmp.gt.s32.totalorder 0, %v3534
        %v3536 = vsel %vm3535, 0, %v3534
        %v3537 = vsub.s32 32, %v3536
        %v3538 = vshll.u32 %v3529, %v3536
        %v3539 = vshrl.u32 %v3521, %v3537
        %v3540 = vor.u32 %v3538, %v3539
        %v3541 = vsub.s32 4294967266, %v3536
        %v3542 = vadd.s32 %v3541, 127
        %v3543 = vshll.u32 %v3542, 23
        %v3544 = vor.u32 4788187, %v3543
        %v3545 = vand.u32 2147483647, %v3544
        %v3547 = vcvt.s32.f32 %v3540
        %v3548 = vmul.f32 %v3547, %v3545
        %v3549 = vxor.u32 %v3548, 2147483648
        %v3550 = vsel %vm3467, %v3549, %v3548
        %v3551 = vsub.s32 4, %v3527
        %v3552 = vsel %vm3467, %v3551, %v3527
        %v3553 = vsel %vm3466, %v548, %v3550
        %v3554 = vsel %vm3466, 0, %v3552
        %v3555 = vcosq.f32.pop %v3553
        %v3556 = vsinq.f32.pop %v3553
        %vm3557 = vweird.f32 %v548
        %v3558 = vadd.s32 %v3554, 3
        %v3559 = vand.u32 %v3558, 3
        %vm3560 = vcmp.lt.s32.totalorder %v3559, 2
        %vm3561 = vcmp.eq.s32.totalorder %v3559, 0
        %v3562 = vxor.u32 %v3556, 2147483648
        %v3563 = vsel %vm3561, %v3555, %v3562
        %vm3564 = vcmp.eq.s32.totalorder %v3559, 2
        %v3565 = vxor.u32 %v3555, 2147483648
        %v3566 = vsel %vm3564, %v3565, %v3556
        %v3567 = vsel %vm3560, %v3563, %v3566
        %v3568 = vsel %vm3557, nan, %v3567
        %v3569 = vand.u32 2147483647, %v549
        %vm3570 = vcmp.le.f32.partialorder %v3569, 0.7853982
        %vm3571 = vcmp.lt.s32.totalorder %v549, 0
        %v3572 = vand.u32 %v549, 2139095040
        %v3573 = vshrl.u32 %v3572, 23
        %v3574 = vsub.s32 %v3573, 127
        %v3575 = vand.u32 2147483647, %v549
        %v3576 = vand.u32 %v3575, 8388607
        %v3577 = vor.u32 %v3576, 8388608
        %v3578 = vsub.s32 0, %v3577
        %v3579 = vadd.s32 %v3574, 1
        %vm3580 = vcmp.gt.s32.totalorder %v3579, 0
        %v3581 = vsel %vm3580, %v3579, 0
        %v3582 = vshrl.u32 %v3581, 5
        %v3583 = vand.u32 %v3581, 31
        %v3584 = vsub.s32 32, %v3583
        %v3585 = vshrl.u32 683565275, %v3584
        %v3586 = vshll.u32 683565275, %v3583
        %v3587 = vshrl.u32 2475754826, %v3584
        %v3588 = vor.u32 %v3586, %v3587
        %v3589 = vshll.u32 2475754826, %v3583
        %v3590 = vshrl.u32 2131351028, %v3584
        %v3591 = vor.u32 %v3589, %v3590
        %v3592 = vshll.u32 2131351028, %v3583
        %v3593 = vshrl.u32 2102212464, %v3584
        %v3594 = vor.u32 %v3592, %v3593
        %v3595 = vshll.u32 2102212464, %v3583
        %v3596 = vshrl.u32 920167782, %v3584
        %v3597 = vor.u32 %v3595, %v3596
        %v3598 = vshll.u32 920167782, %v3583
        %v3599 = vshrl.u32 1326507024, %v3584
        %v3600 = vor.u32 %v3598, %v3599
        %vm3601 = vcmp.lt.s32.totalorder %v3582, 1
        %vm3602 = vcmp.lt.s32.totalorder %v3582, 2
        %vm3603 = vcmp.lt.s32.totalorder %v3582, 3
        %vm3604 = vcmp.lt.s32.totalorder %v3582, 4
        %v3605 = vsel %vm3601, %v3585, %v3588
        %v3606 = vsel %vm3604, %v3594, 2102212464
        %v3607 = vsel %vm3603, %v3591, %v3606
        %v3608 = vsel %vm3602, %v3605, %v3607
        %v3609 = vsel %vm3601, %v3588, %v3591
        %v3610 = vsel %vm3604, %v3597, 920167782
        %v3611 = vsel %vm3603, %v3594, %v3610
        %v3612 = vsel %vm3602, %v3609, %v3611
        %v3613 = vsel %vm3601, %v3591, %v3594
        %v3614 = vsel %vm3604, %v3600, 1326507024
        %v3615 = vsel %vm3603, %v3597, %v3614
        %v3616 = vsel %vm3602, %v3613, %v3615
        %v3617 = vshll.u32 %v3577, 8
        %v3618 = vmul.u32.u64.compose %v3617, %v3616
        %v3619 = vextract.low.u32 %v3618
        %v3620 = vextract.high.u32 %v3618
        %v3621 = vmul.u32.u64.compose %v3617, %v3612
        %v3622 = vextract.low.u32 %v3621
        %v3623 = vextract.high.u32 %v3621
        %v3624 = vmul.u32 %v3617, %v3608
        %v3625 = vadd.s32 %v3620, %v3622
        %vm3626 = vc.u32 %v3620, %v3622
        %v3627 = vadd.s32 %v3623, 1
        %v3628 = vsel %vm3626, %v3627, %v3623
        %v3629 = vadd.s32 %v3624, %v3628
        %v3630 = vadd.s32 %v3629, 536870912
        %v3631 = vshrl.u32 %v3630, 30
        %v3632 = vshll.u32 %v3631, 30
        %v3633 = vsub.s32 %v3629, %v3632
        %vm3634 = vcmp.lt.s32.totalorder %v3633, 0
        %v3635 = vsub.s32 0, %v3633
        %v3636 = vsel %vm3634, %v3635, %v3633
        %v3637 = vclz %v3636
        %v3638 = vsub.s32 %v3637, 2
        %vm3639 = vcmp.gt.s32.totalorder 0, %v3638
        %v3640 = vsel %vm3639, 0, %v3638
        %v3641 = vsub.s32 32, %v3640
        %v3642 = vshll.u32 %v3633, %v3640
        %v3643 = vshrl.u32 %v3625, %v3641
        %v3644 = vor.u32 %v3642, %v3643
        %v3645 = vsub.s32 4294967266, %v3640
        %v3646 = vadd.s32 %v3645, 127
        %v3647 = vshll.u32 %v3646, 23
        %v3648 = vor.u32 4788187, %v3647
        %v3649 = vand.u32 2147483647, %v3648
        %v3651 = vcvt.s32.f32 %v3644
        %v3652 = vmul.f32 %v3651, %v3649
        %v3653 = vxor.u32 %v3652, 2147483648
        %v3654 = vsel %vm3571, %v3653, %v3652
        %v3655 = vsub.s32 4, %v3631
        %v3656 = vsel %vm3571, %v3655, %v3631
        %v3657 = vsel %vm3570, %v549, %v3654
        %v3658 = vsel %vm3570, 0, %v3656
        %v3659 = vcosq.f32.pop %v3657
        %v3660 = vsinq.f32.pop %v3657
        %vm3661 = vweird.f32 %v549
        %v3662 = vadd.s32 %v3658, 3
        %v3663 = vand.u32 %v3662, 3
        %vm3664 = vcmp.lt.s32.totalorder %v3663, 2
        %vm3665 = vcmp.eq.s32.totalorder %v3663, 0
        %v3666 = vxor.u32 %v3660, 2147483648
        %v3667 = vsel %vm3665, %v3659, %v3666
        %vm3668 = vcmp.eq.s32.totalorder %v3663, 2
        %v3669 = vxor.u32 %v3659, 2147483648
        %v3670 = vsel %vm3668, %v3669, %v3660
        %v3671 = vsel %vm3664, %v3667, %v3670
        %v3672 = vsel %vm3661, nan, %v3671
        %v3673 = vand.u32 2147483647, %v550
        %vm3674 = vcmp.le.f32.partialorder %v3673, 0.7853982
        %vm3675 = vcmp.lt.s32.totalorder %v550, 0
        %v3676 = vand.u32 %v550, 2139095040
        %v3677 = vshrl.u32 %v3676, 23
        %v3678 = vsub.s32 %v3677, 127
        %v3679 = vand.u32 2147483647, %v550
        %v3680 = vand.u32 %v3679, 8388607
        %v3681 = vor.u32 %v3680, 8388608
        %v3682 = vsub.s32 0, %v3681
        %v3683 = vadd.s32 %v3678, 1
        %vm3684 = vcmp.gt.s32.totalorder %v3683, 0
        %v3685 = vsel %vm3684, %v3683, 0
        %v3686 = vshrl.u32 %v3685, 5
        %v3687 = vand.u32 %v3685, 31
        %v3688 = vsub.s32 32, %v3687
        %v3689 = vshrl.u32 683565275, %v3688
        %v3690 = vshll.u32 683565275, %v3687
        %v3691 = vshrl.u32 2475754826, %v3688
        %v3692 = vor.u32 %v3690, %v3691
        %v3693 = vshll.u32 2475754826, %v3687
        %v3694 = vshrl.u32 2131351028, %v3688
        %v3695 = vor.u32 %v3693, %v3694
        %v3696 = vshll.u32 2131351028, %v3687
        %v3697 = vshrl.u32 2102212464, %v3688
        %v3698 = vor.u32 %v3696, %v3697
        %v3699 = vshll.u32 2102212464, %v3687
        %v3700 = vshrl.u32 920167782, %v3688
        %v3701 = vor.u32 %v3699, %v3700
        %v3702 = vshll.u32 920167782, %v3687
        %v3703 = vshrl.u32 1326507024, %v3688
        %v3704 = vor.u32 %v3702, %v3703
        %vm3705 = vcmp.lt.s32.totalorder %v3686, 1
        %vm3706 = vcmp.lt.s32.totalorder %v3686, 2
        %vm3707 = vcmp.lt.s32.totalorder %v3686, 3
        %vm3708 = vcmp.lt.s32.totalorder %v3686, 4
        %v3709 = vsel %vm3705, %v3689, %v3692
        %v3710 = vsel %vm3708, %v3698, 2102212464
        %v3711 = vsel %vm3707, %v3695, %v3710
        %v3712 = vsel %vm3706, %v3709, %v3711
        %v3713 = vsel %vm3705, %v3692, %v3695
        %v3714 = vsel %vm3708, %v3701, 920167782
        %v3715 = vsel %vm3707, %v3698, %v3714
        %v3716 = vsel %vm3706, %v3713, %v3715
        %v3717 = vsel %vm3705, %v3695, %v3698
        %v3718 = vsel %vm3708, %v3704, 1326507024
        %v3719 = vsel %vm3707, %v3701, %v3718
        %v3720 = vsel %vm3706, %v3717, %v3719
        %v3721 = vshll.u32 %v3681, 8
        %v3722 = vmul.u32.u64.compose %v3721, %v3720
        %v3723 = vextract.low.u32 %v3722
        %v3724 = vextract.high.u32 %v3722
        %v3725 = vmul.u32.u64.compose %v3721, %v3716
        %v3726 = vextract.low.u32 %v3725
        %v3727 = vextract.high.u32 %v3725
        %v3728 = vmul.u32 %v3721, %v3712
        %v3729 = vadd.s32 %v3724, %v3726
        %vm3730 = vc.u32 %v3724, %v3726
        %v3731 = vadd.s32 %v3727, 1
        %v3732 = vsel %vm3730, %v3731, %v3727
        %v3733 = vadd.s32 %v3728, %v3732
        %v3734 = vadd.s32 %v3733, 536870912
        %v3735 = vshrl.u32 %v3734, 30
        %v3736 = vshll.u32 %v3735, 30
        %v3737 = vsub.s32 %v3733, %v3736
        %vm3738 = vcmp.lt.s32.totalorder %v3737, 0
        %v3739 = vsub.s32 0, %v3737
        %v3740 = vsel %vm3738, %v3739, %v3737
        %v3741 = vclz %v3740
        %v3742 = vsub.s32 %v3741, 2
        %vm3743 = vcmp.gt.s32.totalorder 0, %v3742
        %v3744 = vsel %vm3743, 0, %v3742
        %v3745 = vsub.s32 32, %v3744
        %v3746 = vshll.u32 %v3737, %v3744
        %v3747 = vshrl.u32 %v3729, %v3745
        %v3748 = vor.u32 %v3746, %v3747
        %v3749 = vsub.s32 4294967266, %v3744
        %v3750 = vadd.s32 %v3749, 127
        %v3751 = vshll.u32 %v3750, 23
        %v3752 = vor.u32 4788187, %v3751
        %v3753 = vand.u32 2147483647, %v3752
        %v3755 = vcvt.s32.f32 %v3748
        %v3756 = vmul.f32 %v3755, %v3753
        %v3757 = vxor.u32 %v3756, 2147483648
        %v3758 = vsel %vm3675, %v3757, %v3756
        %v3759 = vsub.s32 4, %v3735
        %v3760 = vsel %vm3675, %v3759, %v3735
        %v3761 = vsel %vm3674, %v550, %v3758
        %v3762 = vsel %vm3674, 0, %v3760
        %v3763 = vcosq.f32.pop %v3761
        %v3764 = vsinq.f32.pop %v3761
        %vm3765 = vweird.f32 %v550
        %v3766 = vadd.s32 %v3762, 3
        %v3767 = vand.u32 %v3766, 3
        %vm3768 = vcmp.lt.s32.totalorder %v3767, 2
        %vm3769 = vcmp.eq.s32.totalorder %v3767, 0
        %v3770 = vxor.u32 %v3764, 2147483648
        %v3771 = vsel %vm3769, %v3763, %v3770
        %vm3772 = vcmp.eq.s32.totalorder %v3767, 2
        %v3773 = vxor.u32 %v3763, 2147483648
        %v3774 = vsel %vm3772, %v3773, %v3764
        %v3775 = vsel %vm3768, %v3771, %v3774
        %v3776 = vsel %vm3765, nan, %v3775
        %v3777 = vand.u32 2147483647, %v551
        %vm3778 = vcmp.le.f32.partialorder %v3777, 0.7853982
        %vm3779 = vcmp.lt.s32.totalorder %v551, 0
        %v3780 = vand.u32 %v551, 2139095040
        %v3781 = vshrl.u32 %v3780, 23
        %v3782 = vsub.s32 %v3781, 127
        %v3783 = vand.u32 2147483647, %v551
        %v3784 = vand.u32 %v3783, 8388607
        %v3785 = vor.u32 %v3784, 8388608
        %v3786 = vsub.s32 0, %v3785
        %v3787 = vadd.s32 %v3782, 1
        %vm3788 = vcmp.gt.s32.totalorder %v3787, 0
        %v3789 = vsel %vm3788, %v3787, 0
        %v3790 = vshrl.u32 %v3789, 5
        %v3791 = vand.u32 %v3789, 31
        %v3792 = vsub.s32 32, %v3791
        %v3793 = vshrl.u32 683565275, %v3792
        %v3794 = vshll.u32 683565275, %v3791
        %v3795 = vshrl.u32 2475754826, %v3792
        %v3796 = vor.u32 %v3794, %v3795
        %v3797 = vshll.u32 2475754826, %v3791
        %v3798 = vshrl.u32 2131351028, %v3792
        %v3799 = vor.u32 %v3797, %v3798
        %v3800 = vshll.u32 2131351028, %v3791
        %v3801 = vshrl.u32 2102212464, %v3792
        %v3802 = vor.u32 %v3800, %v3801
        %v3803 = vshll.u32 2102212464, %v3791
        %v3804 = vshrl.u32 920167782, %v3792
        %v3805 = vor.u32 %v3803, %v3804
        %v3806 = vshll.u32 920167782, %v3791
        %v3807 = vshrl.u32 1326507024, %v3792
        %v3808 = vor.u32 %v3806, %v3807
        %vm3809 = vcmp.lt.s32.totalorder %v3790, 1
        %vm3810 = vcmp.lt.s32.totalorder %v3790, 2
        %vm3811 = vcmp.lt.s32.totalorder %v3790, 3
        %vm3812 = vcmp.lt.s32.totalorder %v3790, 4
        %v3813 = vsel %vm3809, %v3793, %v3796
        %v3814 = vsel %vm3812, %v3802, 2102212464
        %v3815 = vsel %vm3811, %v3799, %v3814
        %v3816 = vsel %vm3810, %v3813, %v3815
        %v3817 = vsel %vm3809, %v3796, %v3799
        %v3818 = vsel %vm3812, %v3805, 920167782
        %v3819 = vsel %vm3811, %v3802, %v3818
        %v3820 = vsel %vm3810, %v3817, %v3819
        %v3821 = vsel %vm3809, %v3799, %v3802
        %v3822 = vsel %vm3812, %v3808, 1326507024
        %v3823 = vsel %vm3811, %v3805, %v3822
        %v3824 = vsel %vm3810, %v3821, %v3823
        %v3825 = vshll.u32 %v3785, 8
        %v3826 = vmul.u32.u64.compose %v3825, %v3824
        %v3827 = vextract.low.u32 %v3826
        %v3828 = vextract.high.u32 %v3826
        %v3829 = vmul.u32.u64.compose %v3825, %v3820
        %v3830 = vextract.low.u32 %v3829
        %v3831 = vextract.high.u32 %v3829
        %v3832 = vmul.u32 %v3825, %v3816
        %v3833 = vadd.s32 %v3828, %v3830
        %vm3834 = vc.u32 %v3828, %v3830
        %v3835 = vadd.s32 %v3831, 1
        %v3836 = vsel %vm3834, %v3835, %v3831
        %v3837 = vadd.s32 %v3832, %v3836
        %v3838 = vadd.s32 %v3837, 536870912
        %v3839 = vshrl.u32 %v3838, 30
        %v3840 = vshll.u32 %v3839, 30
        %v3841 = vsub.s32 %v3837, %v3840
        %vm3842 = vcmp.lt.s32.totalorder %v3841, 0
        %v3843 = vsub.s32 0, %v3841
        %v3844 = vsel %vm3842, %v3843, %v3841
        %v3845 = vclz %v3844
        %v3846 = vsub.s32 %v3845, 2
        %vm3847 = vcmp.gt.s32.totalorder 0, %v3846
        %v3848 = vsel %vm3847, 0, %v3846
        %v3849 = vsub.s32 32, %v3848
        %v3850 = vshll.u32 %v3841, %v3848
        %v3851 = vshrl.u32 %v3833, %v3849
        %v3852 = vor.u32 %v3850, %v3851
        %v3853 = vsub.s32 4294967266, %v3848
        %v3854 = vadd.s32 %v3853, 127
        %v3855 = vshll.u32 %v3854, 23
        %v3856 = vor.u32 4788187, %v3855
        %v3857 = vand.u32 2147483647, %v3856
        %v3859 = vcvt.s32.f32 %v3852
        %v3860 = vmul.f32 %v3859, %v3857
        %v3861 = vxor.u32 %v3860, 2147483648
        %v3862 = vsel %vm3779, %v3861, %v3860
        %v3863 = vsub.s32 4, %v3839
        %v3864 = vsel %vm3779, %v3863, %v3839
        %v3865 = vsel %vm3778, %v551, %v3862
        %v3866 = vsel %vm3778, 0, %v3864
        %v3867 = vcosq.f32.pop %v3865
        %v3868 = vsinq.f32.pop %v3865
        %vm3869 = vweird.f32 %v551
        %v3870 = vadd.s32 %v3866, 3
        %v3871 = vand.u32 %v3870, 3
        %vm3872 = vcmp.lt.s32.totalorder %v3871, 2
        %vm3873 = vcmp.eq.s32.totalorder %v3871, 0
        %v3874 = vxor.u32 %v3868, 2147483648
        %v3875 = vsel %vm3873, %v3867, %v3874
        %vm3876 = vcmp.eq.s32.totalorder %v3871, 2
        %v3877 = vxor.u32 %v3867, 2147483648
        %v3878 = vsel %vm3876, %v3877, %v3868
        %v3879 = vsel %vm3872, %v3875, %v3878
        %v3880 = vsel %vm3869, nan, %v3879
        %3881 = vst.msk [vmem:[%s214] sm:$0xff] %vm2200, %v2320
        %3882 = vst.msk [vmem:[%s214 + $0x8] sm:$0xff] %vm2200, %v2424
        %3883 = vst.msk [vmem:[%s214 + $0x10] sm:$0xff] %vm2200, %v2528
        %3884 = vst.msk [vmem:[%s214 + $0x18] sm:$0xff] %vm2200, %v2632
        %3885 = vst.msk [vmem:[%s214 + $0x20] sm:$0xff] %vm2200, %v2736
        %3886 = vst.msk [vmem:[%s214 + $0x28] sm:$0xff] %vm2200, %v2840
        %3887 = vst.msk [vmem:[%s214 + $0x30] sm:$0xff] %vm2200, %v2944
        %3888 = vst.msk [vmem:[%s214 + $0x38] sm:$0xff] %vm2200, %v3048
        %3889 = vst.msk [vmem:[%s214 + $0x40] sm:$0xff] %vm2200, %v3152
        %3890 = vst.msk [vmem:[%s214 + $0x48] sm:$0xff] %vm2200, %v3256
        %3891 = vst.msk [vmem:[%s214 + $0x50] sm:$0xff] %vm2200, %v3360
        %3892 = vst.msk [vmem:[%s214 + $0x58] sm:$0xff] %vm2200, %v3464
        %3893 = vst.msk [vmem:[%s214 + $0x60] sm:$0xff] %vm2200, %v3568
        %3894 = vst.msk [vmem:[%s214 + $0x68] sm:$0xff] %vm2200, %v3672
        %3895 = vst.msk [vmem:[%s214 + $0x70] sm:$0xff] %vm2200, %v3776
        %3896 = vst.msk [vmem:[%s214 + $0x78] sm:$0xff] %vm2200, %v3880
        %s3897 = smul.u32 16, %s19
        %p3898 = scmp.lt.s32.totalorder %s3897, 31
        %s3899 = scalar_select %p3898, %s3897, 31
        %s3900 = smul.addr %s3899, 8
        %s3901 = scalar_lea.vmem %s2, %s3900
        %s3902 = smul.u32 16, %s19
        %p3903 = scmp.lt.s32.totalorder %s3902, 31
        %s3904 = scalar_select %p3903, %s3902, 31
        %s3905 = smul.addr %s3904, 8
        %s3906 = scalar_lea.vmem %s3, %s3905
        // Predicated region
        $region37: #{tpu_custom_call.1} parent=27 // pred_check
          %p3907 = pneg %p84
        $region38: #{tpu_custom_call.1} parent=27 // pred_check_branch
          %3909 = sbr.rel (%p3907) target = $region40
        $region39: #{tpu_custom_call.1} parent=27 // pred_region
          %s3910 = smul.u32 16, %s19
        $region40: #{tpu_custom_call.1} parent=27 // pred_fallthru
          _
        // Predicated region
        $region41: #{tpu_custom_call.1} parent=27 // pred_check
          %p3911 = pneg %p110
        $region42: #{tpu_custom_call.1} parent=27 // pred_check_branch
          %3913 = sbr.rel (%p3911) target = $region44
        $region43: #{tpu_custom_call.1} parent=27 // pred_region
          %s3914 = smul.u32 16, %s19
        $region44: #{tpu_custom_call.1} parent=27 // pred_fallthru
          _
      $region28: #{tpu_custom_call.1} parent=5 // pred_fallthru
        _
      %p3915 = scmp.le.s32.totalorder 2, %s14
      // Predicated region
      $region45: #{tpu_custom_call.1} parent=5 // pred_check
        %p3916 = pneg %p3915
      $region46: #{tpu_custom_call.1} parent=5 // pred_check_branch
        %3918 = sbr.rel (%p3916) target = $region48
      $region47: #{tpu_custom_call.1} parent=5 // pred_region
        %s3919 = ssub.s32 %s14, 2
        // Predicated region
        $region49: #{tpu_custom_call.1} parent=47 // pred_check
          %p3920 = pneg %p90
        $region50: #{tpu_custom_call.1} parent=47 // pred_check_branch
          %3922 = sbr.rel (%p3920) target = $region52
        $region51: #{tpu_custom_call.1} parent=47 // pred_region
          %s3923 = smul.u32 16, %s20
          %p3924 = scmp.lt.s32.totalorder %s3923, 31
          %s3925 = scalar_select %p3924, %s3923, 31
          %s3926 = smul.addr %s3925, 8
          %s3927 = scalar_lea.vmem %s2, %s3926
        $region52: #{tpu_custom_call.1} parent=47 // pred_fallthru
          _
        // Predicated region
        $region53: #{tpu_custom_call.1} parent=47 // pred_check
          %p3928 = pneg %p116
        $region54: #{tpu_custom_call.1} parent=47 // pred_check_branch
          %3930 = sbr.rel (%p3928) target = $region56
        $region55: #{tpu_custom_call.1} parent=47 // pred_region
          %s3931 = smul.u32 16, %s20
          %p3932 = scmp.lt.s32.totalorder %s3931, 31
          %s3933 = scalar_select %p3932, %s3931, 31
          %s3934 = smul.addr %s3933, 8
          %s3935 = scalar_lea.vmem %s3, %s3934
        $region56: #{tpu_custom_call.1} parent=47 // pred_fallthru
          _
      $region48: #{tpu_custom_call.1} parent=5 // pred_fallthru
        _
    $region6: #{tpu_custom_call.1} parent=1 // loop_footer
      %s18 = sadd.s32 1, %s14
    $region7: #{tpu_custom_call.1} parent=1 // loop_footer_branch
      %13 = sbr.rel target = $region3
    $region8: #{tpu_custom_call.1} parent=1 // loop_exit
      _
    %3936 = vsyncpa [#allocation3], 1
    %s3937 = scalar_lea.sflag [#allocation3], 1
    %3938 = vsyncpa %s3937, 1
    %3939 = vsyncpa [#allocation5], 1

</llo_original>
